<compile_context>
chip_gen: v6e
topology: v6e:2x2x1
jax: 0.10.0
libtpu: 0.0.40
codegen_flags: <defaults>
</compile_context>

<pallas_src>
import functools

import jax
import jax.numpy as jnp
import numpy as np
from jax import lax
from jax.experimental import pallas as pl
from jax.experimental.pallas import tpu as pltpu


def _bigru_attention_kernel(
    inp_ref,     # SMEM (B*L,) int32   token ids, row-major (b, t)
    emb_ref,     # VMEM (V+2, D)       embedding table
    wih_ref,     # VMEM (2D, 3*GP)     block input weights [fwd rows | bwd rows]
    bx_ref,      # VMEM (1, 3*GP)      folded input bias (b_ih + b_hh for r,z)
    whh_ref,     # VMEM (2H, 3*GP)     block recurrent weights
    bhhn_ref,    # VMEM (1, 2H)        b_hh of the n gate [fwd | bwd]
    wattn_ref,   # VMEM (2H, 1)        attention weight
    battn_ref,   # SMEM (1,)           attention bias (true scalar)
    wout_ref,    # VMEM (2H, C)        output projection
    bout_ref,    # VMEM (1, C)
    out_ref,     # VMEM (B, C)
    x_scr,       # VMEM (L*BP, 2D)     gathered rows [x_t | x_{L-1-t}]
    gx_scr,      # VMEM (L*BP, 3*GP)   hoisted input-gate pre-activations
    h_scr,       # VMEM (L*BP, 2H)     bidirectional output sequence
    *, L, B, BP, H, D, GP,
):
    H2 = 2 * H
    D2 = 2 * D

    # ---- fused embedding gather: build [x_t | x_{L-1-t}] rows directly in VMEM.
    x_scr[...] = jnp.zeros_like(x_scr)                   # padded batch rows stay 0
    for t in range(L):
        for b in range(B):
            row = emb_ref[pl.ds(inp_ref[b * L + t], 1), :]            # (1, D)
            r_fwd = t * BP + b
            r_bwd = (L - 1 - t) * BP + b
            x_scr[r_fwd:r_fwd + 1, 0:D] = row            # fwd direction sees x_t
            x_scr[r_bwd:r_bwd + 1, D:D2] = row           # bwd direction sees x_{L-1-t}

    # ---- hoisted input projection: ONE MXU matmul for all steps & both directions.
    gx_scr[...] = (jnp.dot(x_scr[...], wih_ref[...],
                           preferred_element_type=jnp.float32) + bx_ref[...])

    # ---- fused fwd/bwd GRU recurrence, fully unrolled (L is small & static).
    # Carried state h = [h_fwd(t=i) | h_bwd(t=L-1-i)] on lanes 0:H / H:2H.
    bhh_n = jnp.broadcast_to(bhhn_ref[...], (BP, H2))    # hoisted broadcast
    h = jnp.zeros((BP, H2), jnp.float32)
    for i in range(L):
        gx_i = gx_scr[i * BP:(i + 1) * BP, :]            # (BP, 3*GP), sublane-aligned
        gh = jnp.dot(h, whh_ref[...],                    # whh streamed from VMEM
                     preferred_element_type=jnp.float32)
        r = jax.nn.sigmoid(gx_i[:, 0:H2] + gh[:, 0:H2])
        z = jax.nn.sigmoid(gx_i[:, GP:GP + H2] + gh[:, GP:GP + H2])
        n = jnp.tanh(gx_i[:, 2 * GP:2 * GP + H2]
                     + r * (gh[:, 2 * GP:2 * GP + H2] + bhh_n))
        h = (1.0 - z) * n + z * h
        # store the output sequence: fwd half at time i, bwd half at time L-1-i
        h_scr[i * BP:(i + 1) * BP, 0:H] = h[:, 0:H]
        h_scr[(L - 1 - i) * BP:(L - i) * BP, H:H2] = h[:, H:H2]

    # ---- attention: one batched score matmul (off the recurrence chain).
    hseq = h_scr[...]                                    # (L*BP, 2H)
    scores = (jnp.dot(hseq, wattn_ref[...],
                      preferred_element_type=jnp.float32)
              + battn_ref[0])                            # (L*BP, 1)
    a = [jnp.tanh(scores[t * BP:(t + 1) * BP, :]) for t in range(L)]   # (BP,1) each
    m = a[0]
    for t in range(1, L):
        m = jnp.maximum(m, a[t])
    e = [jnp.exp(a[t] - m) for t in range(L)]
    denom = e[0]
    for t in range(1, L):
        denom = denom + e[t]
    # TODO(synk): flip to approx=True in production once tolerance allows.
    inv = pl.reciprocal(denom, approx=False)             # (BP, 1)

    ctx = e[0] * hseq[0:BP, :]
    for t in range(1, L):
        ctx = ctx + e[t] * hseq[t * BP:(t + 1) * BP, :]
    ctx = ctx * inv                                      # (BP, 2H)

    # ---- output projection + class softmax.
    o = (jnp.dot(ctx, wout_ref[...], preferred_element_type=jnp.float32)
         + bout_ref[...])                                # (BP, C)
    o = o - jnp.max(o, axis=1, keepdims=True)
    eo = jnp.exp(o)
    probs = eo * pl.reciprocal(jnp.sum(eo, axis=1, keepdims=True), approx=False)
    out_ref[...] = probs[0:B, :]


def prepare_params(params):
    """One-time packing of weights into the kernel's padded block layout.

    Gate slabs are 128-lane aligned: cols [s*GP : s*GP+H] = fwd gate s,
    [s*GP+H : s*GP+2H] = bwd gate s, rest zero (s = 0:r, 1:z, 2:n).
    Call this ONCE (e.g. after init / checkpoint load), never per forward.
    """
    H = params["w_hh_f"].shape[1]
    D = params["w_ih_f"].shape[1]
    C = params["b_out"].shape[0]
    GP = 128 * ((2 * H + 127) // 128)            # gate slab pitch (lane-aligned)

    wih = jnp.zeros((2 * D, 3 * GP), jnp.float32)
    whh = jnp.zeros((2 * H, 3 * GP), jnp.float32)
    bx = jnp.zeros((1, 3 * GP), jnp.float32)
    wift, wibt = params["w_ih_f"].T, params["w_ih_b"].T      # (D, 3H)
    whft, whbt = params["w_hh_f"].T, params["w_hh_b"].T      # (H, 3H)
    bif, bhf = params["b_ih_f"], params["b_hh_f"]
    bib, bhb = params["b_ih_b"], params["b_hh_b"]
    for s in range(3):                                       # gate slabs: r, z, n
        g = slice(s * H, (s + 1) * H)
        wih = wih.at[0:D, s * GP:s * GP + H].set(wift[:, g])
        wih = wih.at[D:2 * D, s * GP + H:s * GP + 2 * H].set(wibt[:, g])
        whh = whh.at[0:H, s * GP:s * GP + H].set(whft[:, g])
        whh = whh.at[H:2 * H, s * GP + H:s * GP + 2 * H].set(whbt[:, g])
        # b_hh folded in for r/z; the n-gate b_hh stays inside r*(...) (PyTorch GRU)
        bxf = (bif[g] + bhf[g]) if s < 2 else bif[g]
        bxb = (bib[g] + bhb[g]) if s < 2 else bib[g]
        bx = bx.at[0, s * GP:s * GP + H].set(bxf)
        bx = bx.at[0, s * GP + H:s * GP + 2 * H].set(bxb)
    bhh_n = jnp.concatenate([bhf[2 * H:3 * H], bhb[2 * H:3 * H]]).reshape(1, 2 * H)

    return dict(
        emb=params["embedding"].astype(jnp.float32),
        wih=wih, bx=bx, whh=whh, bhh_n=bhh_n,
        wattn=params["w_attn"].T.astype(jnp.float32),            # (2H, 1)
        battn=params["b_attn"].reshape(1).astype(jnp.float32),   # SMEM scalar
        wout=params["w_out"].T.astype(jnp.float32),              # (2H, C)
        bout=params["b_out"].reshape(1, C).astype(jnp.float32),
    )


def bigru_attention_forward(inp, packed):
    """One fused kernel launch; all layout prep lives in prepare_params()."""
    B, L = inp.shape
    D = packed["emb"].shape[1]
    H2, C = packed["wout"].shape
    H = H2 // 2
    GP = packed["wih"].shape[1] // 3
    BP = 8 * ((max(B, 1) + 7) // 8)              # pad batch rows to the 8-sublane tile
    LBP = L * BP

    kernel = functools.partial(_bigru_attention_kernel,
                               L=L, B=B, BP=BP, H=H, D=D, GP=GP)
    vmem = pl.BlockSpec(memory_space=pltpu.MemorySpace.VMEM)
    smem = pl.BlockSpec(memory_space=pltpu.MemorySpace.SMEM)

    flops = (2 * LBP * (2 * D) * (3 * GP)        # hoisted input projection
             + L * 2 * BP * H2 * (3 * GP)        # recurrent dots
             + 2 * LBP * H2                      # attention scores
             + 2 * BP * H2 * C)                  # output projection
    transcendentals = L * BP * 6 * H + 2 * LBP + BP * C
    bytes_accessed = 4 * int(B * L + packed["emb"].size + packed["wih"].size
                             + packed["bx"].size + packed["whh"].size
                             + packed["bhh_n"].size + packed["wattn"].size + 1
                             + packed["wout"].size + packed["bout"].size + B * C)

    return pl.pallas_call(
        kernel,
        out_shape=jax.ShapeDtypeStruct((B, C), jnp.float32),
        in_specs=[smem, vmem, vmem, vmem, vmem, vmem, vmem, smem, vmem, vmem],
        out_specs=vmem,
        scratch_shapes=[
            pltpu.VMEM((LBP, 2 * D), jnp.float32),      # gathered x rows
            pltpu.VMEM((LBP, 3 * GP), jnp.float32),     # hoisted gate pre-activations
            pltpu.VMEM((LBP, H2), jnp.float32),         # BiGRU output sequence
        ],
        cost_estimate=pl.CostEstimate(flops=flops,
                                      transcendentals=transcendentals,
                                      bytes_accessed=bytes_accessed),
    )(inp.reshape(-1).astype(jnp.int32),
      packed["emb"], packed["wih"], packed["bx"], packed["whh"],
      packed["bhh_n"], packed["wattn"], packed["battn"],
      packed["wout"], packed["bout"])


def ref_forward(inp, params):
    """Pure-JAX reference mirroring the PyTorch forward exactly."""
    x = params["embedding"][inp].astype(jnp.float32)     # (B, L, D)
    B, L, _ = x.shape

    def gru_dir(wih, whh, bih, bhh, reverse):
        Hn = whh.shape[1]
        xs = jnp.transpose(x, (1, 0, 2))
        if reverse:
            xs = xs[::-1]

        def cell(h, x_t):
            gx = x_t @ wih.T + bih
            gh = h @ whh.T + bhh
            r = jax.nn.sigmoid(gx[:, :Hn] + gh[:, :Hn])
            z = jax.nn.sigmoid(gx[:, Hn:2 * Hn] + gh[:, Hn:2 * Hn])
            n = jnp.tanh(gx[:, 2 * Hn:] + r * gh[:, 2 * Hn:])
            h_new = (1.0 - z) * n + z * h
            return h_new, h_new

        h0 = jnp.zeros((x.shape[0], Hn), jnp.float32)
        _, outs = lax.scan(cell, h0, xs)
        if reverse:
            outs = outs[::-1]
        return jnp.transpose(outs, (1, 0, 2))            # (B, L, H)

    out_f = gru_dir(params["w_ih_f"], params["w_hh_f"],
                    params["b_ih_f"], params["b_hh_f"], False)
    out_b = gru_dir(params["w_ih_b"], params["w_hh_b"],
                    params["b_ih_b"], params["b_hh_b"], True)
    output = jnp.concatenate([out_f, out_b], axis=-1)                    # (B, L, 2H)
    att = jnp.tanh(output @ params["w_attn"].T + params["b_attn"])       # (B, L, 1)
    w = jax.nn.softmax(att, axis=1).reshape(B, 1, L)                     # view(B,1,L)
    ctx = jnp.matmul(w, output).reshape(B, -1)                           # (B, 2H)
    o = ctx @ params["w_out"].T + params["b_out"]
    return jax.nn.softmax(o, axis=1)


def init_params(key, vocab, D, H, C):
    ks = jax.random.split(key, 13)

    def rn(k, shape, scale=0.1):
        return (scale * jax.random.normal(k, shape)).astype(jnp.float32)

    emb = rn(ks[0], (vocab + 2, D))
    emb = emb.at[vocab + 1].set(0.0)                     # padding_idx = VOCAB_SIZE + 1
    return dict(
        embedding=emb,
        w_ih_f=rn(ks[1], (3 * H, D)), w_hh_f=rn(ks[2], (3 * H, H)),
        b_ih_f=rn(ks[3], (3 * H,)), b_hh_f=rn(ks[4], (3 * H,)),
        w_ih_b=rn(ks[5], (3 * H, D)), w_hh_b=rn(ks[6], (3 * H, H)),
        b_ih_b=rn(ks[7], (3 * H,)), b_hh_b=rn(ks[8], (3 * H,)),
        w_attn=rn(ks[9], (1, 2 * H)), b_attn=rn(ks[10], (1,)),
        w_out=rn(ks[11], (C, 2 * H)), b_out=rn(ks[12], (C,)),
    )


if __name__ == "__main__":
    B, L, D, H, C, VOCAB = 2, 8, 16, 32, 3, 20           # MAX_SENT_LEN=8, hidden_size=32
    key = jax.random.PRNGKey(0)
    k_inp, k_par = jax.random.split(key)
    inp = jax.random.randint(k_inp, (B, L), 0, VOCAB + 2)
    params = init_params(k_par, VOCAB, D, H, C)
    packed = prepare_params(params)                      # one-time layout packing

    out = bigru_attention_forward(inp, packed)
    out = jax.block_until_ready(out)

    ref = ref_forward(inp, params)
    np.testing.assert_allclose(np.asarray(out), np.asarray(ref), atol=1e-3, rtol=1e-3)
    print("KERNEL_OK")
</pallas_src>

<mosaic_0001>
module attributes {stable_mosaic.version = 11 : i64} {
  func.func @_bigru_attention_kernel(%arg0: memref<16xi32, #tpu.memory_space<smem>>, %arg1: memref<22x16xf32, #tpu.memory_space<vmem>>, %arg2: memref<32x384xf32, #tpu.memory_space<vmem>>, %arg3: memref<1x384xf32, #tpu.memory_space<vmem>>, %arg4: memref<64x384xf32, #tpu.memory_space<vmem>>, %arg5: memref<1x64xf32, #tpu.memory_space<vmem>>, %arg6: memref<64x1xf32, #tpu.memory_space<vmem>>, %arg7: memref<1xf32, #tpu.memory_space<smem>>, %arg8: memref<64x3xf32, #tpu.memory_space<vmem>>, %arg9: memref<1x3xf32, #tpu.memory_space<vmem>>, %arg10: memref<2x3xf32, #tpu.memory_space<vmem>>, %arg11: memref<64x32xf32, #tpu.memory_space<vmem>>, %arg12: memref<64x384xf32, #tpu.memory_space<vmem>>, %arg13: memref<64x64xf32, #tpu.memory_space<vmem>>) attributes {dimension_semantics = [], scalar_prefetch = 0 : i64, scratch_operands = 3 : i64, tpu.core_type = #tpu.core_type<tc>} {
    %cst = arith.constant 0.000000e+00 : f32
    %0 = vector.broadcast %cst : f32 to vector<64x32xf32>
    %c0 = arith.constant 0 : index
    %c0_0 = arith.constant 0 : index
    %1 = vector.load %arg11[%c0, %c0_0] : memref<64x32xf32, #tpu.memory_space<vmem>>, vector<64x32xf32>
    tpu.vector_store %arg11[%c0, %c0_0], %0 {strides = array<i32>} : memref<64x32xf32, #tpu.memory_space<vmem>>, vector<64x32xf32>,
    %c0_1 = arith.constant 0 : index
    %2 = memref.load %arg0[%c0_1] : memref<16xi32, #tpu.memory_space<smem>>
    %3 = arith.index_cast %2 : i32 to index
    %c0_2 = arith.constant 0 : index
    %4 = vector.load %arg1[%3, %c0_2] : memref<22x16xf32, #tpu.memory_space<vmem>>, vector<1x16xf32>
    %c0_3 = arith.constant 0 : index
    %c0_4 = arith.constant 0 : index
    %5 = vector.load %arg11[%c0_3, %c0_4] : memref<64x32xf32, #tpu.memory_space<vmem>>, vector<1x16xf32>
    tpu.vector_store %arg11[%c0_3, %c0_4], %4 {strides = array<i32>} : memref<64x32xf32, #tpu.memory_space<vmem>>, vector<1x16xf32>,
    %c56 = arith.constant 56 : index
    %c16 = arith.constant 16 : index
    %6 = vector.load %arg11[%c56, %c16] : memref<64x32xf32, #tpu.memory_space<vmem>>, vector<1x16xf32>
    tpu.vector_store %arg11[%c56, %c16], %4 {strides = array<i32>} : memref<64x32xf32, #tpu.memory_space<vmem>>, vector<1x16xf32>,
    %c8 = arith.constant 8 : index
    %7 = memref.load %arg0[%c8] : memref<16xi32, #tpu.memory_space<smem>>
    %8 = arith.index_cast %7 : i32 to index
    %c0_5 = arith.constant 0 : index
    %9 = vector.load %arg1[%8, %c0_5] : memref<22x16xf32, #tpu.memory_space<vmem>>, vector<1x16xf32>
    %c1 = arith.constant 1 : index
    %c0_6 = arith.constant 0 : index
    %10 = vector.load %arg11[%c1, %c0_6] : memref<64x32xf32, #tpu.memory_space<vmem>>, vector<1x16xf32>
    tpu.vector_store %arg11[%c1, %c0_6], %9 {strides = array<i32>} : memref<64x32xf32, #tpu.memory_space<vmem>>, vector<1x16xf32>,
    %c57 = arith.constant 57 : index
    %c16_7 = arith.constant 16 : index
    %11 = vector.load %arg11[%c57, %c16_7] : memref<64x32xf32, #tpu.memory_space<vmem>>, vector<1x16xf32>
    tpu.vector_store %arg11[%c57, %c16_7], %9 {strides = array<i32>} : memref<64x32xf32, #tpu.memory_space<vmem>>, vector<1x16xf32>,
    %c1_8 = arith.constant 1 : index
    %12 = memref.load %arg0[%c1_8] : memref<16xi32, #tpu.memory_space<smem>>
    %13 = arith.index_cast %12 : i32 to index
    %c0_9 = arith.constant 0 : index
    %14 = vector.load %arg1[%13, %c0_9] : memref<22x16xf32, #tpu.memory_space<vmem>>, vector<1x16xf32>
    %c8_10 = arith.constant 8 : index
    %c0_11 = arith.constant 0 : index
    %15 = vector.load %arg11[%c8_10, %c0_11] : memref<64x32xf32, #tpu.memory_space<vmem>>, vector<1x16xf32>
    tpu.vector_store %arg11[%c8_10, %c0_11], %14 {strides = array<i32>} : memref<64x32xf32, #tpu.memory_space<vmem>>, vector<1x16xf32>,
    %c48 = arith.constant 48 : index
    %c16_12 = arith.constant 16 : index
    %16 = vector.load %arg11[%c48, %c16_12] : memref<64x32xf32, #tpu.memory_space<vmem>>, vector<1x16xf32>
    tpu.vector_store %arg11[%c48, %c16_12], %14 {strides = array<i32>} : memref<64x32xf32, #tpu.memory_space<vmem>>, vector<1x16xf32>,
    %c9 = arith.constant 9 : index
    %17 = memref.load %arg0[%c9] : memref<16xi32, #tpu.memory_space<smem>>
    %18 = arith.index_cast %17 : i32 to index
    %c0_13 = arith.constant 0 : index
    %19 = vector.load %arg1[%18, %c0_13] : memref<22x16xf32, #tpu.memory_space<vmem>>, vector<1x16xf32>
    %c9_14 = arith.constant 9 : index
    %c0_15 = arith.constant 0 : index
    %20 = vector.load %arg11[%c9_14, %c0_15] : memref<64x32xf32, #tpu.memory_space<vmem>>, vector<1x16xf32>
    tpu.vector_store %arg11[%c9_14, %c0_15], %19 {strides = array<i32>} : memref<64x32xf32, #tpu.memory_space<vmem>>, vector<1x16xf32>,
    %c49 = arith.constant 49 : index
    %c16_16 = arith.constant 16 : index
    %21 = vector.load %arg11[%c49, %c16_16] : memref<64x32xf32, #tpu.memory_space<vmem>>, vector<1x16xf32>
    tpu.vector_store %arg11[%c49, %c16_16], %19 {strides = array<i32>} : memref<64x32xf32, #tpu.memory_space<vmem>>, vector<1x16xf32>,
    %c2 = arith.constant 2 : index
    %22 = memref.load %arg0[%c2] : memref<16xi32, #tpu.memory_space<smem>>
    %23 = arith.index_cast %22 : i32 to index
    %c0_17 = arith.constant 0 : index
    %24 = vector.load %arg1[%23, %c0_17] : memref<22x16xf32, #tpu.memory_space<vmem>>, vector<1x16xf32>
    %c16_18 = arith.constant 16 : index
    %c0_19 = arith.constant 0 : index
    %25 = vector.load %arg11[%c16_18, %c0_19] : memref<64x32xf32, #tpu.memory_space<vmem>>, vector<1x16xf32>
    tpu.vector_store %arg11[%c16_18, %c0_19], %24 {strides = array<i32>} : memref<64x32xf32, #tpu.memory_space<vmem>>, vector<1x16xf32>,
    %c40 = arith.constant 40 : index
    %c16_20 = arith.constant 16 : index
    %26 = vector.load %arg11[%c40, %c16_20] : memref<64x32xf32, #tpu.memory_space<vmem>>, vector<1x16xf32>
    tpu.vector_store %arg11[%c40, %c16_20], %24 {strides = array<i32>} : memref<64x32xf32, #tpu.memory_space<vmem>>, vector<1x16xf32>,
    %c10 = arith.constant 10 : index
    %27 = memref.load %arg0[%c10] : memref<16xi32, #tpu.memory_space<smem>>
    %28 = arith.index_cast %27 : i32 to index
    %c0_21 = arith.constant 0 : index
    %29 = vector.load %arg1[%28, %c0_21] : memref<22x16xf32, #tpu.memory_space<vmem>>, vector<1x16xf32>
    %c17 = arith.constant 17 : index
    %c0_22 = arith.constant 0 : index
    %30 = vector.load %arg11[%c17, %c0_22] : memref<64x32xf32, #tpu.memory_space<vmem>>, vector<1x16xf32>
    tpu.vector_store %arg11[%c17, %c0_22], %29 {strides = array<i32>} : memref<64x32xf32, #tpu.memory_space<vmem>>, vector<1x16xf32>,
    %c41 = arith.constant 41 : index
    %c16_23 = arith.constant 16 : index
    %31 = vector.load %arg11[%c41, %c16_23] : memref<64x32xf32, #tpu.memory_space<vmem>>, vector<1x16xf32>
    tpu.vector_store %arg11[%c41, %c16_23], %29 {strides = array<i32>} : memref<64x32xf32, #tpu.memory_space<vmem>>, vector<1x16xf32>,
    %c3 = arith.constant 3 : index
    %32 = memref.load %arg0[%c3] : memref<16xi32, #tpu.memory_space<smem>>
    %33 = arith.index_cast %32 : i32 to index
    %c0_24 = arith.constant 0 : index
    %34 = vector.load %arg1[%33, %c0_24] : memref<22x16xf32, #tpu.memory_space<vmem>>, vector<1x16xf32>
    %c24 = arith.constant 24 : index
    %c0_25 = arith.constant 0 : index
    %35 = vector.load %arg11[%c24, %c0_25] : memref<64x32xf32, #tpu.memory_space<vmem>>, vector<1x16xf32>
    tpu.vector_store %arg11[%c24, %c0_25], %34 {strides = array<i32>} : memref<64x32xf32, #tpu.memory_space<vmem>>, vector<1x16xf32>,
    %c32 = arith.constant 32 : index
    %c16_26 = arith.constant 16 : index
    %36 = vector.load %arg11[%c32, %c16_26] : memref<64x32xf32, #tpu.memory_space<vmem>>, vector<1x16xf32>
    tpu.vector_store %arg11[%c32, %c16_26], %34 {strides = array<i32>} : memref<64x32xf32, #tpu.memory_space<vmem>>, vector<1x16xf32>,
    %c11 = arith.constant 11 : index
    %37 = memref.load %arg0[%c11] : memref<16xi32, #tpu.memory_space<smem>>
    %38 = arith.index_cast %37 : i32 to index
    %c0_27 = arith.constant 0 : index
    %39 = vector.load %arg1[%38, %c0_27] : memref<22x16xf32, #tpu.memory_space<vmem>>, vector<1x16xf32>
    %c25 = arith.constant 25 : index
    %c0_28 = arith.constant 0 : index
    %40 = vector.load %arg11[%c25, %c0_28] : memref<64x32xf32, #tpu.memory_space<vmem>>, vector<1x16xf32>
    tpu.vector_store %arg11[%c25, %c0_28], %39 {strides = array<i32>} : memref<64x32xf32, #tpu.memory_space<vmem>>, vector<1x16xf32>,
    %c33 = arith.constant 33 : index
    %c16_29 = arith.constant 16 : index
    %41 = vector.load %arg11[%c33, %c16_29] : memref<64x32xf32, #tpu.memory_space<vmem>>, vector<1x16xf32>
    tpu.vector_store %arg11[%c33, %c16_29], %39 {strides = array<i32>} : memref<64x32xf32, #tpu.memory_space<vmem>>, vector<1x16xf32>,
    %c4 = arith.constant 4 : index
    %42 = memref.load %arg0[%c4] : memref<16xi32, #tpu.memory_space<smem>>
    %43 = arith.index_cast %42 : i32 to index
    %c0_30 = arith.constant 0 : index
    %44 = vector.load %arg1[%43, %c0_30] : memref<22x16xf32, #tpu.memory_space<vmem>>, vector<1x16xf32>
    %c32_31 = arith.constant 32 : index
    %c0_32 = arith.constant 0 : index
    %45 = vector.load %arg11[%c32_31, %c0_32] : memref<64x32xf32, #tpu.memory_space<vmem>>, vector<1x16xf32>
    tpu.vector_store %arg11[%c32_31, %c0_32], %44 {strides = array<i32>} : memref<64x32xf32, #tpu.memory_space<vmem>>, vector<1x16xf32>,
    %c24_33 = arith.constant 24 : index
    %c16_34 = arith.constant 16 : index
    %46 = vector.load %arg11[%c24_33, %c16_34] : memref<64x32xf32, #tpu.memory_space<vmem>>, vector<1x16xf32>
    tpu.vector_store %arg11[%c24_33, %c16_34], %44 {strides = array<i32>} : memref<64x32xf32, #tpu.memory_space<vmem>>, vector<1x16xf32>,
    %c12 = arith.constant 12 : index
    %47 = memref.load %arg0[%c12] : memref<16xi32, #tpu.memory_space<smem>>
    %48 = arith.index_cast %47 : i32 to index
    %c0_35 = arith.constant 0 : index
    %49 = vector.load %arg1[%48, %c0_35] : memref<22x16xf32, #tpu.memory_space<vmem>>, vector<1x16xf32>
    %c33_36 = arith.constant 33 : index
    %c0_37 = arith.constant 0 : index
    %50 = vector.load %arg11[%c33_36, %c0_37] : memref<64x32xf32, #tpu.memory_space<vmem>>, vector<1x16xf32>
    tpu.vector_store %arg11[%c33_36, %c0_37], %49 {strides = array<i32>} : memref<64x32xf32, #tpu.memory_space<vmem>>, vector<1x16xf32>,
    %c25_38 = arith.constant 25 : index
    %c16_39 = arith.constant 16 : index
    %51 = vector.load %arg11[%c25_38, %c16_39] : memref<64x32xf32, #tpu.memory_space<vmem>>, vector<1x16xf32>
    tpu.vector_store %arg11[%c25_38, %c16_39], %49 {strides = array<i32>} : memref<64x32xf32, #tpu.memory_space<vmem>>, vector<1x16xf32>,
    %c5 = arith.constant 5 : index
    %52 = memref.load %arg0[%c5] : memref<16xi32, #tpu.memory_space<smem>>
    %53 = arith.index_cast %52 : i32 to index
    %c0_40 = arith.constant 0 : index
    %54 = vector.load %arg1[%53, %c0_40] : memref<22x16xf32, #tpu.memory_space<vmem>>, vector<1x16xf32>
    %c40_41 = arith.constant 40 : index
    %c0_42 = arith.constant 0 : index
    %55 = vector.load %arg11[%c40_41, %c0_42] : memref<64x32xf32, #tpu.memory_space<vmem>>, vector<1x16xf32>
    tpu.vector_store %arg11[%c40_41, %c0_42], %54 {strides = array<i32>} : memref<64x32xf32, #tpu.memory_space<vmem>>, vector<1x16xf32>,
    %c16_43 = arith.constant 16 : index
    %c16_44 = arith.constant 16 : index
    %56 = vector.load %arg11[%c16_43, %c16_44] : memref<64x32xf32, #tpu.memory_space<vmem>>, vector<1x16xf32>
    tpu.vector_store %arg11[%c16_43, %c16_44], %54 {strides = array<i32>} : memref<64x32xf32, #tpu.memory_space<vmem>>, vector<1x16xf32>,
    %c13 = arith.constant 13 : index
    %57 = memref.load %arg0[%c13] : memref<16xi32, #tpu.memory_space<smem>>
    %58 = arith.index_cast %57 : i32 to index
    %c0_45 = arith.constant 0 : index
    %59 = vector.load %arg1[%58, %c0_45] : memref<22x16xf32, #tpu.memory_space<vmem>>, vector<1x16xf32>
    %c41_46 = arith.constant 41 : index
    %c0_47 = arith.constant 0 : index
    %60 = vector.load %arg11[%c41_46, %c0_47] : memref<64x32xf32, #tpu.memory_space<vmem>>, vector<1x16xf32>
    tpu.vector_store %arg11[%c41_46, %c0_47], %59 {strides = array<i32>} : memref<64x32xf32, #tpu.memory_space<vmem>>, vector<1x16xf32>,
    %c17_48 = arith.constant 17 : index
    %c16_49 = arith.constant 16 : index
    %61 = vector.load %arg11[%c17_48, %c16_49] : memref<64x32xf32, #tpu.memory_space<vmem>>, vector<1x16xf32>
    tpu.vector_store %arg11[%c17_48, %c16_49], %59 {strides = array<i32>} : memref<64x32xf32, #tpu.memory_space<vmem>>, vector<1x16xf32>,
    %c6 = arith.constant 6 : index
    %62 = memref.load %arg0[%c6] : memref<16xi32, #tpu.memory_space<smem>>
    %63 = arith.index_cast %62 : i32 to index
    %c0_50 = arith.constant 0 : index
    %64 = vector.load %arg1[%63, %c0_50] : memref<22x16xf32, #tpu.memory_space<vmem>>, vector<1x16xf32>
    %c48_51 = arith.constant 48 : index
    %c0_52 = arith.constant 0 : index
    %65 = vector.load %arg11[%c48_51, %c0_52] : memref<64x32xf32, #tpu.memory_space<vmem>>, vector<1x16xf32>
    tpu.vector_store %arg11[%c48_51, %c0_52], %64 {strides = array<i32>} : memref<64x32xf32, #tpu.memory_space<vmem>>, vector<1x16xf32>,
    %c8_53 = arith.constant 8 : index
    %c16_54 = arith.constant 16 : index
    %66 = vector.load %arg11[%c8_53, %c16_54] : memref<64x32xf32, #tpu.memory_space<vmem>>, vector<1x16xf32>
    tpu.vector_store %arg11[%c8_53, %c16_54], %64 {strides = array<i32>} : memref<64x32xf32, #tpu.memory_space<vmem>>, vector<1x16xf32>,
    %c14 = arith.constant 14 : index
    %67 = memref.load %arg0[%c14] : memref<16xi32, #tpu.memory_space<smem>>
    %68 = arith.index_cast %67 : i32 to index
    %c0_55 = arith.constant 0 : index
    %69 = vector.load %arg1[%68, %c0_55] : memref<22x16xf32, #tpu.memory_space<vmem>>, vector<1x16xf32>
    %c49_56 = arith.constant 49 : index
    %c0_57 = arith.constant 0 : index
    %70 = vector.load %arg11[%c49_56, %c0_57] : memref<64x32xf32, #tpu.memory_space<vmem>>, vector<1x16xf32>
    tpu.vector_store %arg11[%c49_56, %c0_57], %69 {strides = array<i32>} : memref<64x32xf32, #tpu.memory_space<vmem>>, vector<1x16xf32>,
    %c9_58 = arith.constant 9 : index
    %c16_59 = arith.constant 16 : index
    %71 = vector.load %arg11[%c9_58, %c16_59] : memref<64x32xf32, #tpu.memory_space<vmem>>, vector<1x16xf32>
    tpu.vector_store %arg11[%c9_58, %c16_59], %69 {strides = array<i32>} : memref<64x32xf32, #tpu.memory_space<vmem>>, vector<1x16xf32>,
    %c7 = arith.constant 7 : index
    %72 = memref.load %arg0[%c7] : memref<16xi32, #tpu.memory_space<smem>>
    %73 = arith.index_cast %72 : i32 to index
    %c0_60 = arith.constant 0 : index
    %74 = vector.load %arg1[%73, %c0_60] : memref<22x16xf32, #tpu.memory_space<vmem>>, vector<1x16xf32>
    %c56_61 = arith.constant 56 : index
    %c0_62 = arith.constant 0 : index
    %75 = vector.load %arg11[%c56_61, %c0_62] : memref<64x32xf32, #tpu.memory_space<vmem>>, vector<1x16xf32>
    tpu.vector_store %arg11[%c56_61, %c0_62], %74 {strides = array<i32>} : memref<64x32xf32, #tpu.memory_space<vmem>>, vector<1x16xf32>,
    %c0_63 = arith.constant 0 : index
    %c16_64 = arith.constant 16 : index
    %76 = vector.load %arg11[%c0_63, %c16_64] : memref<64x32xf32, #tpu.memory_space<vmem>>, vector<1x16xf32>
    tpu.vector_store %arg11[%c0_63, %c16_64], %74 {strides = array<i32>} : memref<64x32xf32, #tpu.memory_space<vmem>>, vector<1x16xf32>,
    %c15 = arith.constant 15 : index
    %77 = memref.load %arg0[%c15] : memref<16xi32, #tpu.memory_space<smem>>
    %78 = arith.index_cast %77 : i32 to index
    %c0_65 = arith.constant 0 : index
    %79 = vector.load %arg1[%78, %c0_65] : memref<22x16xf32, #tpu.memory_space<vmem>>, vector<1x16xf32>
    %c57_66 = arith.constant 57 : index
    %c0_67 = arith.constant 0 : index
    %80 = vector.load %arg11[%c57_66, %c0_67] : memref<64x32xf32, #tpu.memory_space<vmem>>, vector<1x16xf32>
    tpu.vector_store %arg11[%c57_66, %c0_67], %79 {strides = array<i32>} : memref<64x32xf32, #tpu.memory_space<vmem>>, vector<1x16xf32>,
    %c1_68 = arith.constant 1 : index
    %c16_69 = arith.constant 16 : index
    %81 = vector.load %arg11[%c1_68, %c16_69] : memref<64x32xf32, #tpu.memory_space<vmem>>, vector<1x16xf32>
    tpu.vector_store %arg11[%c1_68, %c16_69], %79 {strides = array<i32>} : memref<64x32xf32, #tpu.memory_space<vmem>>, vector<1x16xf32>,
    %c0_70 = arith.constant 0 : index
    %c0_71 = arith.constant 0 : index
    %82 = vector.load %arg11[%c0_70, %c0_71] : memref<64x32xf32, #tpu.memory_space<vmem>>, vector<64x32xf32>
    %c0_72 = arith.constant 0 : index
    %c0_73 = arith.constant 0 : index
    %83 = vector.load %arg2[%c0_72, %c0_73] : memref<32x384xf32, #tpu.memory_space<vmem>>, vector<32x384xf32>
    %cst_74 = arith.constant dense<0.000000e+00> : vector<64x384xf32>
    %84 = tpu.matmul %82, %83, %cst_74 {dimension_numbers = #tpu.dot_dimension_numbers<[1], [0], [0], [1], [0, 0, 1, 1], [], []>} : vector<64x32xf32>, vector<32x384xf32>, vector<64x384xf32> -> vector<64x384xf32>
    %c0_75 = arith.constant 0 : index
    %c0_76 = arith.constant 0 : index
    %85 = vector.load %arg3[%c0_75, %c0_76] : memref<1x384xf32, #tpu.memory_space<vmem>>, vector<1x384xf32>
    %86 = vector.broadcast %85 : vector<1x384xf32> to vector<64x384xf32>
    %87 = arith.addf %84, %86 : vector<64x384xf32>
    %c0_77 = arith.constant 0 : index
    %c0_78 = arith.constant 0 : index
    %88 = vector.load %arg12[%c0_77, %c0_78] : memref<64x384xf32, #tpu.memory_space<vmem>>, vector<64x384xf32>
    tpu.vector_store %arg12[%c0_77, %c0_78], %87 {strides = array<i32>} : memref<64x384xf32, #tpu.memory_space<vmem>>, vector<64x384xf32>,
    %c0_79 = arith.constant 0 : index
    %c0_80 = arith.constant 0 : index
    %89 = vector.load %arg5[%c0_79, %c0_80] : memref<1x64xf32, #tpu.memory_space<vmem>>, vector<1x64xf32>
    %90 = vector.shape_cast %89 : vector<1x64xf32> to vector<1x64xf32>
    %91 = vector.broadcast %90 : vector<1x64xf32> to vector<8x64xf32>
    %cst_81 = arith.constant 0.000000e+00 : f32
    %92 = vector.broadcast %cst_81 : f32 to vector<8x64xf32>
    %c0_82 = arith.constant 0 : index
    %c0_83 = arith.constant 0 : index
    %93 = vector.load %arg12[%c0_82, %c0_83] : memref<64x384xf32, #tpu.memory_space<vmem>>, vector<8x384xf32>
    %c0_84 = arith.constant 0 : index
    %c0_85 = arith.constant 0 : index
    %94 = vector.load %arg4[%c0_84, %c0_85] : memref<64x384xf32, #tpu.memory_space<vmem>>, vector<64x384xf32>
    %cst_86 = arith.constant dense<0.000000e+00> : vector<8x384xf32>
    %95 = tpu.matmul %92, %94, %cst_86 {dimension_numbers = #tpu.dot_dimension_numbers<[1], [0], [0], [1], [0, 0, 1, 1], [], []>} : vector<8x64xf32>, vector<64x384xf32>, vector<8x384xf32> -> vector<8x384xf32>
    %96 = vector.extract_strided_slice %93 {offsets = [0, 0], sizes = [8, 64], strides = [1, 1]} : vector<8x384xf32> to vector<8x64xf32>
    %97 = vector.extract_strided_slice %95 {offsets = [0, 0], sizes = [8, 64], strides = [1, 1]} : vector<8x384xf32> to vector<8x64xf32>
    %98 = arith.addf %96, %97 : vector<8x64xf32>
    %99 = arith.negf %98 : vector<8x64xf32>
    %100 = math.exp %99 : vector<8x64xf32>
    %cst_87 = arith.constant 1.000000e+00 : f32
    %101 = vector.broadcast %cst_87 : f32 to vector<8x64xf32>
    %102 = arith.addf %101, %100 : vector<8x64xf32>
    %103 = arith.divf %101, %102 : vector<8x64xf32>
    %104 = vector.extract_strided_slice %93 {offsets = [0, 128], sizes = [8, 64], strides = [1, 1]} : vector<8x384xf32> to vector<8x64xf32>
    %105 = vector.extract_strided_slice %95 {offsets = [0, 128], sizes = [8, 64], strides = [1, 1]} : vector<8x384xf32> to vector<8x64xf32>
    %106 = arith.addf %104, %105 : vector<8x64xf32>
    %107 = arith.negf %106 : vector<8x64xf32>
    %108 = math.exp %107 : vector<8x64xf32>
    %cst_88 = arith.constant 1.000000e+00 : f32
    %109 = vector.broadcast %cst_88 : f32 to vector<8x64xf32>
    %110 = arith.addf %109, %108 : vector<8x64xf32>
    %111 = arith.divf %109, %110 : vector<8x64xf32>
    %112 = vector.extract_strided_slice %93 {offsets = [0, 256], sizes = [8, 64], strides = [1, 1]} : vector<8x384xf32> to vector<8x64xf32>
    %113 = vector.extract_strided_slice %95 {offsets = [0, 256], sizes = [8, 64], strides = [1, 1]} : vector<8x384xf32> to vector<8x64xf32>
    %114 = arith.addf %113, %91 : vector<8x64xf32>
    %115 = arith.mulf %103, %114 : vector<8x64xf32>
    %116 = arith.addf %112, %115 : vector<8x64xf32>
    %117 = math.tanh %116 : vector<8x64xf32>
    %cst_89 = arith.constant 1.000000e+00 : f32
    %118 = vector.broadcast %cst_89 : f32 to vector<8x64xf32>
    %119 = arith.subf %118, %111 : vector<8x64xf32>
    %120 = arith.mulf %119, %117 : vector<8x64xf32>
    %121 = arith.mulf %111, %92 : vector<8x64xf32>
    %122 = arith.addf %120, %121 : vector<8x64xf32>
    %123 = vector.extract_strided_slice %122 {offsets = [0, 0], sizes = [8, 32], strides = [1, 1]} : vector<8x64xf32> to vector<8x32xf32>
    %c0_90 = arith.constant 0 : index
    %c0_91 = arith.constant 0 : index
    %124 = vector.load %arg13[%c0_90, %c0_91] : memref<64x64xf32, #tpu.memory_space<vmem>>, vector<8x32xf32>
    tpu.vector_store %arg13[%c0_90, %c0_91], %123 {strides = array<i32>} : memref<64x64xf32, #tpu.memory_space<vmem>>, vector<8x32xf32>,
    %125 = vector.extract_strided_slice %122 {offsets = [0, 32], sizes = [8, 32], strides = [1, 1]} : vector<8x64xf32> to vector<8x32xf32>
    %c56_92 = arith.constant 56 : index
    %c32_93 = arith.constant 32 : index
    %126 = vector.load %arg13[%c56_92, %c32_93] : memref<64x64xf32, #tpu.memory_space<vmem>>, vector<8x32xf32>
    tpu.vector_store %arg13[%c56_92, %c32_93], %125 {strides = array<i32>} : memref<64x64xf32, #tpu.memory_space<vmem>>, vector<8x32xf32>,
    %c8_94 = arith.constant 8 : index
    %c0_95 = arith.constant 0 : index
    %127 = vector.load %arg12[%c8_94, %c0_95] : memref<64x384xf32, #tpu.memory_space<vmem>>, vector<8x384xf32>
    %c0_96 = arith.constant 0 : index
    %c0_97 = arith.constant 0 : index
    %128 = vector.load %arg4[%c0_96, %c0_97] : memref<64x384xf32, #tpu.memory_space<vmem>>, vector<64x384xf32>
    %cst_98 = arith.constant dense<0.000000e+00> : vector<8x384xf32>
    %129 = tpu.matmul %122, %128, %cst_98 {dimension_numbers = #tpu.dot_dimension_numbers<[1], [0], [0], [1], [0, 0, 1, 1], [], []>} : vector<8x64xf32>, vector<64x384xf32>, vector<8x384xf32> -> vector<8x384xf32>
    %130 = vector.extract_strided_slice %127 {offsets = [0, 0], sizes = [8, 64], strides = [1, 1]} : vector<8x384xf32> to vector<8x64xf32>
    %131 = vector.extract_strided_slice %129 {offsets = [0, 0], sizes = [8, 64], strides = [1, 1]} : vector<8x384xf32> to vector<8x64xf32>
    %132 = arith.addf %130, %131 : vector<8x64xf32>
    %133 = arith.negf %132 : vector<8x64xf32>
    %134 = math.exp %133 : vector<8x64xf32>
    %cst_99 = arith.constant 1.000000e+00 : f32
    %135 = vector.broadcast %cst_99 : f32 to vector<8x64xf32>
    %136 = arith.addf %135, %134 : vector<8x64xf32>
    %137 = arith.divf %135, %136 : vector<8x64xf32>
    %138 = vector.extract_strided_slice %127 {offsets = [0, 128], sizes = [8, 64], strides = [1, 1]} : vector<8x384xf32> to vector<8x64xf32>
    %139 = vector.extract_strided_slice %129 {offsets = [0, 128], sizes = [8, 64], strides = [1, 1]} : vector<8x384xf32> to vector<8x64xf32>
    %140 = arith.addf %138, %139 : vector<8x64xf32>
    %141 = arith.negf %140 : vector<8x64xf32>
    %142 = math.exp %141 : vector<8x64xf32>
    %cst_100 = arith.constant 1.000000e+00 : f32
    %143 = vector.broadcast %cst_100 : f32 to vector<8x64xf32>
    %144 = arith.addf %143, %142 : vector<8x64xf32>
    %145 = arith.divf %143, %144 : vector<8x64xf32>
    %146 = vector.extract_strided_slice %127 {offsets = [0, 256], sizes = [8, 64], strides = [1, 1]} : vector<8x384xf32> to vector<8x64xf32>
    %147 = vector.extract_strided_slice %129 {offsets = [0, 256], sizes = [8, 64], strides = [1, 1]} : vector<8x384xf32> to vector<8x64xf32>
    %148 = arith.addf %147, %91 : vector<8x64xf32>
    %149 = arith.mulf %137, %148 : vector<8x64xf32>
    %150 = arith.addf %146, %149 : vector<8x64xf32>
    %151 = math.tanh %150 : vector<8x64xf32>
    %cst_101 = arith.constant 1.000000e+00 : f32
    %152 = vector.broadcast %cst_101 : f32 to vector<8x64xf32>
    %153 = arith.subf %152, %145 : vector<8x64xf32>
    %154 = arith.mulf %153, %151 : vector<8x64xf32>
    %155 = arith.mulf %145, %122 : vector<8x64xf32>
    %156 = arith.addf %154, %155 : vector<8x64xf32>
    %157 = vector.extract_strided_slice %156 {offsets = [0, 0], sizes = [8, 32], strides = [1, 1]} : vector<8x64xf32> to vector<8x32xf32>
    %c8_102 = arith.constant 8 : index
    %c0_103 = arith.constant 0 : index
    %158 = vector.load %arg13[%c8_102, %c0_103] : memref<64x64xf32, #tpu.memory_space<vmem>>, vector<8x32xf32>
    tpu.vector_store %arg13[%c8_102, %c0_103], %157 {strides = array<i32>} : memref<64x64xf32, #tpu.memory_space<vmem>>, vector<8x32xf32>,
    %159 = vector.extract_strided_slice %156 {offsets = [0, 32], sizes = [8, 32], strides = [1, 1]} : vector<8x64xf32> to vector<8x32xf32>
    %c48_104 = arith.constant 48 : index
    %c32_105 = arith.constant 32 : index
    %160 = vector.load %arg13[%c48_104, %c32_105] : memref<64x64xf32, #tpu.memory_space<vmem>>, vector<8x32xf32>
    tpu.vector_store %arg13[%c48_104, %c32_105], %159 {strides = array<i32>} : memref<64x64xf32, #tpu.memory_space<vmem>>, vector<8x32xf32>,
    %c16_106 = arith.constant 16 : index
    %c0_107 = arith.constant 0 : index
    %161 = vector.load %arg12[%c16_106, %c0_107] : memref<64x384xf32, #tpu.memory_space<vmem>>, vector<8x384xf32>
    %c0_108 = arith.constant 0 : index
    %c0_109 = arith.constant 0 : index
    %162 = vector.load %arg4[%c0_108, %c0_109] : memref<64x384xf32, #tpu.memory_space<vmem>>, vector<64x384xf32>
    %cst_110 = arith.constant dense<0.000000e+00> : vector<8x384xf32>
    %163 = tpu.matmul %156, %162, %cst_110 {dimension_numbers = #tpu.dot_dimension_numbers<[1], [0], [0], [1], [0, 0, 1, 1], [], []>} : vector<8x64xf32>, vector<64x384xf32>, vector<8x384xf32> -> vector<8x384xf32>
    %164 = vector.extract_strided_slice %161 {offsets = [0, 0], sizes = [8, 64], strides = [1, 1]} : vector<8x384xf32> to vector<8x64xf32>
    %165 = vector.extract_strided_slice %163 {offsets = [0, 0], sizes = [8, 64], strides = [1, 1]} : vector<8x384xf32> to vector<8x64xf32>
    %166 = arith.addf %164, %165 : vector<8x64xf32>
    %167 = arith.negf %166 : vector<8x64xf32>
    %168 = math.exp %167 : vector<8x64xf32>
    %cst_111 = arith.constant 1.000000e+00 : f32
    %169 = vector.broadcast %cst_111 : f32 to vector<8x64xf32>
    %170 = arith.addf %169, %168 : vector<8x64xf32>
    %171 = arith.divf %169, %170 : vector<8x64xf32>
    %172 = vector.extract_strided_slice %161 {offsets = [0, 128], sizes = [8, 64], strides = [1, 1]} : vector<8x384xf32> to vector<8x64xf32>
    %173 = vector.extract_strided_slice %163 {offsets = [0, 128], sizes = [8, 64], strides = [1, 1]} : vector<8x384xf32> to vector<8x64xf32>
    %174 = arith.addf %172, %173 : vector<8x64xf32>
    %175 = arith.negf %174 : vector<8x64xf32>
    %176 = math.exp %175 : vector<8x64xf32>
    %cst_112 = arith.constant 1.000000e+00 : f32
    %177 = vector.broadcast %cst_112 : f32 to vector<8x64xf32>
    %178 = arith.addf %177, %176 : vector<8x64xf32>
    %179 = arith.divf %177, %178 : vector<8x64xf32>
    %180 = vector.extract_strided_slice %161 {offsets = [0, 256], sizes = [8, 64], strides = [1, 1]} : vector<8x384xf32> to vector<8x64xf32>
    %181 = vector.extract_strided_slice %163 {offsets = [0, 256], sizes = [8, 64], strides = [1, 1]} : vector<8x384xf32> to vector<8x64xf32>
    %182 = arith.addf %181, %91 : vector<8x64xf32>
    %183 = arith.mulf %171, %182 : vector<8x64xf32>
    %184 = arith.addf %180, %183 : vector<8x64xf32>
    %185 = math.tanh %184 : vector<8x64xf32>
    %cst_113 = arith.constant 1.000000e+00 : f32
    %186 = vector.broadcast %cst_113 : f32 to vector<8x64xf32>
    %187 = arith.subf %186, %179 : vector<8x64xf32>
    %188 = arith.mulf %187, %185 : vector<8x64xf32>
    %189 = arith.mulf %179, %156 : vector<8x64xf32>
    %190 = arith.addf %188, %189 : vector<8x64xf32>
    %191 = vector.extract_strided_slice %190 {offsets = [0, 0], sizes = [8, 32], strides = [1, 1]} : vector<8x64xf32> to vector<8x32xf32>
    %c16_114 = arith.constant 16 : index
    %c0_115 = arith.constant 0 : index
    %192 = vector.load %arg13[%c16_114, %c0_115] : memref<64x64xf32, #tpu.memory_space<vmem>>, vector<8x32xf32>
    tpu.vector_store %arg13[%c16_114, %c0_115], %191 {strides = array<i32>} : memref<64x64xf32, #tpu.memory_space<vmem>>, vector<8x32xf32>,
    %193 = vector.extract_strided_slice %190 {offsets = [0, 32], sizes = [8, 32], strides = [1, 1]} : vector<8x64xf32> to vector<8x32xf32>
    %c40_116 = arith.constant 40 : index
    %c32_117 = arith.constant 32 : index
    %194 = vector.load %arg13[%c40_116, %c32_117] : memref<64x64xf32, #tpu.memory_space<vmem>>, vector<8x32xf32>
    tpu.vector_store %arg13[%c40_116, %c32_117], %193 {strides = array<i32>} : memref<64x64xf32, #tpu.memory_space<vmem>>, vector<8x32xf32>,
    %c24_118 = arith.constant 24 : index
    %c0_119 = arith.constant 0 : index
    %195 = vector.load %arg12[%c24_118, %c0_119] : memref<64x384xf32, #tpu.memory_space<vmem>>, vector<8x384xf32>
    %c0_120 = arith.constant 0 : index
    %c0_121 = arith.constant 0 : index
    %196 = vector.load %arg4[%c0_120, %c0_121] : memref<64x384xf32, #tpu.memory_space<vmem>>, vector<64x384xf32>
    %cst_122 = arith.constant dense<0.000000e+00> : vector<8x384xf32>
    %197 = tpu.matmul %190, %196, %cst_122 {dimension_numbers = #tpu.dot_dimension_numbers<[1], [0], [0], [1], [0, 0, 1, 1], [], []>} : vector<8x64xf32>, vector<64x384xf32>, vector<8x384xf32> -> vector<8x384xf32>
    %198 = vector.extract_strided_slice %195 {offsets = [0, 0], sizes = [8, 64], strides = [1, 1]} : vector<8x384xf32> to vector<8x64xf32>
    %199 = vector.extract_strided_slice %197 {offsets = [0, 0], sizes = [8, 64], strides = [1, 1]} : vector<8x384xf32> to vector<8x64xf32>
    %200 = arith.addf %198, %199 : vector<8x64xf32>
    %201 = arith.negf %200 : vector<8x64xf32>
    %202 = math.exp %201 : vector<8x64xf32>
    %cst_123 = arith.constant 1.000000e+00 : f32
    %203 = vector.broadcast %cst_123 : f32 to vector<8x64xf32>
    %204 = arith.addf %203, %202 : vector<8x64xf32>
    %205 = arith.divf %203, %204 : vector<8x64xf32>
    %206 = vector.extract_strided_slice %195 {offsets = [0, 128], sizes = [8, 64], strides = [1, 1]} : vector<8x384xf32> to vector<8x64xf32>
    %207 = vector.extract_strided_slice %197 {offsets = [0, 128], sizes = [8, 64], strides = [1, 1]} : vector<8x384xf32> to vector<8x64xf32>
    %208 = arith.addf %206, %207 : vector<8x64xf32>
    %209 = arith.negf %208 : vector<8x64xf32>
    %210 = math.exp %209 : vector<8x64xf32>
    %cst_124 = arith.constant 1.000000e+00 : f32
    %211 = vector.broadcast %cst_124 : f32 to vector<8x64xf32>
    %212 = arith.addf %211, %210 : vector<8x64xf32>
    %213 = arith.divf %211, %212 : vector<8x64xf32>
    %214 = vector.extract_strided_slice %195 {offsets = [0, 256], sizes = [8, 64], strides = [1, 1]} : vector<8x384xf32> to vector<8x64xf32>
    %215 = vector.extract_strided_slice %197 {offsets = [0, 256], sizes = [8, 64], strides = [1, 1]} : vector<8x384xf32> to vector<8x64xf32>
    %216 = arith.addf %215, %91 : vector<8x64xf32>
    %217 = arith.mulf %205, %216 : vector<8x64xf32>
    %218 = arith.addf %214, %217 : vector<8x64xf32>
    %219 = math.tanh %218 : vector<8x64xf32>
    %cst_125 = arith.constant 1.000000e+00 : f32
    %220 = vector.broadcast %cst_125 : f32 to vector<8x64xf32>
    %221 = arith.subf %220, %213 : vector<8x64xf32>
    %222 = arith.mulf %221, %219 : vector<8x64xf32>
    %223 = arith.mulf %213, %190 : vector<8x64xf32>
    %224 = arith.addf %222, %223 : vector<8x64xf32>
    %225 = vector.extract_strided_slice %224 {offsets = [0, 0], sizes = [8, 32], strides = [1, 1]} : vector<8x64xf32> to vector<8x32xf32>
    %c24_126 = arith.constant 24 : index
    %c0_127 = arith.constant 0 : index
    %226 = vector.load %arg13[%c24_126, %c0_127] : memref<64x64xf32, #tpu.memory_space<vmem>>, vector<8x32xf32>
    tpu.vector_store %arg13[%c24_126, %c0_127], %225 {strides = array<i32>} : memref<64x64xf32, #tpu.memory_space<vmem>>, vector<8x32xf32>,
    %227 = vector.extract_strided_slice %224 {offsets = [0, 32], sizes = [8, 32], strides = [1, 1]} : vector<8x64xf32> to vector<8x32xf32>
    %c32_128 = arith.constant 32 : index
    %c32_129 = arith.constant 32 : index
    %228 = vector.load %arg13[%c32_128, %c32_129] : memref<64x64xf32, #tpu.memory_space<vmem>>, vector<8x32xf32>
    tpu.vector_store %arg13[%c32_128, %c32_129], %227 {strides = array<i32>} : memref<64x64xf32, #tpu.memory_space<vmem>>, vector<8x32xf32>,
    %c32_130 = arith.constant 32 : index
    %c0_131 = arith.constant 0 : index
    %229 = vector.load %arg12[%c32_130, %c0_131] : memref<64x384xf32, #tpu.memory_space<vmem>>, vector<8x384xf32>
    %c0_132 = arith.constant 0 : index
    %c0_133 = arith.constant 0 : index
    %230 = vector.load %arg4[%c0_132, %c0_133] : memref<64x384xf32, #tpu.memory_space<vmem>>, vector<64x384xf32>
    %cst_134 = arith.constant dense<0.000000e+00> : vector<8x384xf32>
    %231 = tpu.matmul %224, %230, %cst_134 {dimension_numbers = #tpu.dot_dimension_numbers<[1], [0], [0], [1], [0, 0, 1, 1], [], []>} : vector<8x64xf32>, vector<64x384xf32>, vector<8x384xf32> -> vector<8x384xf32>
    %232 = vector.extract_strided_slice %229 {offsets = [0, 0], sizes = [8, 64], strides = [1, 1]} : vector<8x384xf32> to vector<8x64xf32>
    %233 = vector.extract_strided_slice %231 {offsets = [0, 0], sizes = [8, 64], strides = [1, 1]} : vector<8x384xf32> to vector<8x64xf32>
    %234 = arith.addf %232, %233 : vector<8x64xf32>
    %235 = arith.negf %234 : vector<8x64xf32>
    %236 = math.exp %235 : vector<8x64xf32>
    %cst_135 = arith.constant 1.000000e+00 : f32
    %237 = vector.broadcast %cst_135 : f32 to vector<8x64xf32>
    %238 = arith.addf %237, %236 : vector<8x64xf32>
    %239 = arith.divf %237, %238 : vector<8x64xf32>
    %240 = vector.extract_strided_slice %229 {offsets = [0, 128], sizes = [8, 64], strides = [1, 1]} : vector<8x384xf32> to vector<8x64xf32>
    %241 = vector.extract_strided_slice %231 {offsets = [0, 128], sizes = [8, 64], strides = [1, 1]} : vector<8x384xf32> to vector<8x64xf32>
    %242 = arith.addf %240, %241 : vector<8x64xf32>
    %243 = arith.negf %242 : vector<8x64xf32>
    %244 = math.exp %243 : vector<8x64xf32>
    %cst_136 = arith.constant 1.000000e+00 : f32
    %245 = vector.broadcast %cst_136 : f32 to vector<8x64xf32>
    %246 = arith.addf %245, %244 : vector<8x64xf32>
    %247 = arith.divf %245, %246 : vector<8x64xf32>
    %248 = vector.extract_strided_slice %229 {offsets = [0, 256], sizes = [8, 64], strides = [1, 1]} : vector<8x384xf32> to vector<8x64xf32>
    %249 = vector.extract_strided_slice %231 {offsets = [0, 256], sizes = [8, 64], strides = [1, 1]} : vector<8x384xf32> to vector<8x64xf32>
    %250 = arith.addf %249, %91 : vector<8x64xf32>
    %251 = arith.mulf %239, %250 : vector<8x64xf32>
    %252 = arith.addf %248, %251 : vector<8x64xf32>
    %253 = math.tanh %252 : vector<8x64xf32>
    %cst_137 = arith.constant 1.000000e+00 : f32
    %254 = vector.broadcast %cst_137 : f32 to vector<8x64xf32>
    %255 = arith.subf %254, %247 : vector<8x64xf32>
    %256 = arith.mulf %255, %253 : vector<8x64xf32>
    %257 = arith.mulf %247, %224 : vector<8x64xf32>
    %258 = arith.addf %256, %257 : vector<8x64xf32>
    %259 = vector.extract_strided_slice %258 {offsets = [0, 0], sizes = [8, 32], strides = [1, 1]} : vector<8x64xf32> to vector<8x32xf32>
    %c32_138 = arith.constant 32 : index
    %c0_139 = arith.constant 0 : index
    %260 = vector.load %arg13[%c32_138, %c0_139] : memref<64x64xf32, #tpu.memory_space<vmem>>, vector<8x32xf32>
    tpu.vector_store %arg13[%c32_138, %c0_139], %259 {strides = array<i32>} : memref<64x64xf32, #tpu.memory_space<vmem>>, vector<8x32xf32>,
    %261 = vector.extract_strided_slice %258 {offsets = [0, 32], sizes = [8, 32], strides = [1, 1]} : vector<8x64xf32> to vector<8x32xf32>
    %c24_140 = arith.constant 24 : index
    %c32_141 = arith.constant 32 : index
    %262 = vector.load %arg13[%c24_140, %c32_141] : memref<64x64xf32, #tpu.memory_space<vmem>>, vector<8x32xf32>
    tpu.vector_store %arg13[%c24_140, %c32_141], %261 {strides = array<i32>} : memref<64x64xf32, #tpu.memory_space<vmem>>, vector<8x32xf32>,
    %c40_142 = arith.constant 40 : index
    %c0_143 = arith.constant 0 : index
    %263 = vector.load %arg12[%c40_142, %c0_143] : memref<64x384xf32, #tpu.memory_space<vmem>>, vector<8x384xf32>
    %c0_144 = arith.constant 0 : index
    %c0_145 = arith.constant 0 : index
    %264 = vector.load %arg4[%c0_144, %c0_145] : memref<64x384xf32, #tpu.memory_space<vmem>>, vector<64x384xf32>
    %cst_146 = arith.constant dense<0.000000e+00> : vector<8x384xf32>
    %265 = tpu.matmul %258, %264, %cst_146 {dimension_numbers = #tpu.dot_dimension_numbers<[1], [0], [0], [1], [0, 0, 1, 1], [], []>} : vector<8x64xf32>, vector<64x384xf32>, vector<8x384xf32> -> vector<8x384xf32>
    %266 = vector.extract_strided_slice %263 {offsets = [0, 0], sizes = [8, 64], strides = [1, 1]} : vector<8x384xf32> to vector<8x64xf32>
    %267 = vector.extract_strided_slice %265 {offsets = [0, 0], sizes = [8, 64], strides = [1, 1]} : vector<8x384xf32> to vector<8x64xf32>
    %268 = arith.addf %266, %267 : vector<8x64xf32>
    %269 = arith.negf %268 : vector<8x64xf32>
    %270 = math.exp %269 : vector<8x64xf32>
    %cst_147 = arith.constant 1.000000e+00 : f32
    %271 = vector.broadcast %cst_147 : f32 to vector<8x64xf32>
    %272 = arith.addf %271, %270 : vector<8x64xf32>
    %273 = arith.divf %271, %272 : vector<8x64xf32>
    %274 = vector.extract_strided_slice %263 {offsets = [0, 128], sizes = [8, 64], strides = [1, 1]} : vector<8x384xf32> to vector<8x64xf32>
    %275 = vector.extract_strided_slice %265 {offsets = [0, 128], sizes = [8, 64], strides = [1, 1]} : vector<8x384xf32> to vector<8x64xf32>
    %276 = arith.addf %274, %275 : vector<8x64xf32>
    %277 = arith.negf %276 : vector<8x64xf32>
    %278 = math.exp %277 : vector<8x64xf32>
    %cst_148 = arith.constant 1.000000e+00 : f32
    %279 = vector.broadcast %cst_148 : f32 to vector<8x64xf32>
    %280 = arith.addf %279, %278 : vector<8x64xf32>
    %281 = arith.divf %279, %280 : vector<8x64xf32>
    %282 = vector.extract_strided_slice %263 {offsets = [0, 256], sizes = [8, 64], strides = [1, 1]} : vector<8x384xf32> to vector<8x64xf32>
    %283 = vector.extract_strided_slice %265 {offsets = [0, 256], sizes = [8, 64], strides = [1, 1]} : vector<8x384xf32> to vector<8x64xf32>
    %284 = arith.addf %283, %91 : vector<8x64xf32>
    %285 = arith.mulf %273, %284 : vector<8x64xf32>
    %286 = arith.addf %282, %285 : vector<8x64xf32>
    %287 = math.tanh %286 : vector<8x64xf32>
    %cst_149 = arith.constant 1.000000e+00 : f32
    %288 = vector.broadcast %cst_149 : f32 to vector<8x64xf32>
    %289 = arith.subf %288, %281 : vector<8x64xf32>
    %290 = arith.mulf %289, %287 : vector<8x64xf32>
    %291 = arith.mulf %281, %258 : vector<8x64xf32>
    %292 = arith.addf %290, %291 : vector<8x64xf32>
    %293 = vector.extract_strided_slice %292 {offsets = [0, 0], sizes = [8, 32], strides = [1, 1]} : vector<8x64xf32> to vector<8x32xf32>
    %c40_150 = arith.constant 40 : index
    %c0_151 = arith.constant 0 : index
    %294 = vector.load %arg13[%c40_150, %c0_151] : memref<64x64xf32, #tpu.memory_space<vmem>>, vector<8x32xf32>
    tpu.vector_store %arg13[%c40_150, %c0_151], %293 {strides = array<i32>} : memref<64x64xf32, #tpu.memory_space<vmem>>, vector<8x32xf32>,
    %295 = vector.extract_strided_slice %292 {offsets = [0, 32], sizes = [8, 32], strides = [1, 1]} : vector<8x64xf32> to vector<8x32xf32>
    %c16_152 = arith.constant 16 : index
    %c32_153 = arith.constant 32 : index
    %296 = vector.load %arg13[%c16_152, %c32_153] : memref<64x64xf32, #tpu.memory_space<vmem>>, vector<8x32xf32>
    tpu.vector_store %arg13[%c16_152, %c32_153], %295 {strides = array<i32>} : memref<64x64xf32, #tpu.memory_space<vmem>>, vector<8x32xf32>,
    %c48_154 = arith.constant 48 : index
    %c0_155 = arith.constant 0 : index
    %297 = vector.load %arg12[%c48_154, %c0_155] : memref<64x384xf32, #tpu.memory_space<vmem>>, vector<8x384xf32>
    %c0_156 = arith.constant 0 : index
    %c0_157 = arith.constant 0 : index
    %298 = vector.load %arg4[%c0_156, %c0_157] : memref<64x384xf32, #tpu.memory_space<vmem>>, vector<64x384xf32>
    %cst_158 = arith.constant dense<0.000000e+00> : vector<8x384xf32>
    %299 = tpu.matmul %292, %298, %cst_158 {dimension_numbers = #tpu.dot_dimension_numbers<[1], [0], [0], [1], [0, 0, 1, 1], [], []>} : vector<8x64xf32>, vector<64x384xf32>, vector<8x384xf32> -> vector<8x384xf32>
    %300 = vector.extract_strided_slice %297 {offsets = [0, 0], sizes = [8, 64], strides = [1, 1]} : vector<8x384xf32> to vector<8x64xf32>
    %301 = vector.extract_strided_slice %299 {offsets = [0, 0], sizes = [8, 64], strides = [1, 1]} : vector<8x384xf32> to vector<8x64xf32>
    %302 = arith.addf %300, %301 : vector<8x64xf32>
    %303 = arith.negf %302 : vector<8x64xf32>
    %304 = math.exp %303 : vector<8x64xf32>
    %cst_159 = arith.constant 1.000000e+00 : f32
    %305 = vector.broadcast %cst_159 : f32 to vector<8x64xf32>
    %306 = arith.addf %305, %304 : vector<8x64xf32>
    %307 = arith.divf %305, %306 : vector<8x64xf32>
    %308 = vector.extract_strided_slice %297 {offsets = [0, 128], sizes = [8, 64], strides = [1, 1]} : vector<8x384xf32> to vector<8x64xf32>
    %309 = vector.extract_strided_slice %299 {offsets = [0, 128], sizes = [8, 64], strides = [1, 1]} : vector<8x384xf32> to vector<8x64xf32>
    %310 = arith.addf %308, %309 : vector<8x64xf32>
    %311 = arith.negf %310 : vector<8x64xf32>
    %312 = math.exp %311 : vector<8x64xf32>
    %cst_160 = arith.constant 1.000000e+00 : f32
    %313 = vector.broadcast %cst_160 : f32 to vector<8x64xf32>
    %314 = arith.addf %313, %312 : vector<8x64xf32>
    %315 = arith.divf %313, %314 : vector<8x64xf32>
    %316 = vector.extract_strided_slice %297 {offsets = [0, 256], sizes = [8, 64], strides = [1, 1]} : vector<8x384xf32> to vector<8x64xf32>
    %317 = vector.extract_strided_slice %299 {offsets = [0, 256], sizes = [8, 64], strides = [1, 1]} : vector<8x384xf32> to vector<8x64xf32>
    %318 = arith.addf %317, %91 : vector<8x64xf32>
    %319 = arith.mulf %307, %318 : vector<8x64xf32>
    %320 = arith.addf %316, %319 : vector<8x64xf32>
    %321 = math.tanh %320 : vector<8x64xf32>
    %cst_161 = arith.constant 1.000000e+00 : f32
    %322 = vector.broadcast %cst_161 : f32 to vector<8x64xf32>
    %323 = arith.subf %322, %315 : vector<8x64xf32>
    %324 = arith.mulf %323, %321 : vector<8x64xf32>
    %325 = arith.mulf %315, %292 : vector<8x64xf32>
    %326 = arith.addf %324, %325 : vector<8x64xf32>
    %327 = vector.extract_strided_slice %326 {offsets = [0, 0], sizes = [8, 32], strides = [1, 1]} : vector<8x64xf32> to vector<8x32xf32>
    %c48_162 = arith.constant 48 : index
    %c0_163 = arith.constant 0 : index
    %328 = vector.load %arg13[%c48_162, %c0_163] : memref<64x64xf32, #tpu.memory_space<vmem>>, vector<8x32xf32>
    tpu.vector_store %arg13[%c48_162, %c0_163], %327 {strides = array<i32>} : memref<64x64xf32, #tpu.memory_space<vmem>>, vector<8x32xf32>,
    %329 = vector.extract_strided_slice %326 {offsets = [0, 32], sizes = [8, 32], strides = [1, 1]} : vector<8x64xf32> to vector<8x32xf32>
    %c8_164 = arith.constant 8 : index
    %c32_165 = arith.constant 32 : index
    %330 = vector.load %arg13[%c8_164, %c32_165] : memref<64x64xf32, #tpu.memory_space<vmem>>, vector<8x32xf32>
    tpu.vector_store %arg13[%c8_164, %c32_165], %329 {strides = array<i32>} : memref<64x64xf32, #tpu.memory_space<vmem>>, vector<8x32xf32>,
    %c56_166 = arith.constant 56 : index
    %c0_167 = arith.constant 0 : index
    %331 = vector.load %arg12[%c56_166, %c0_167] : memref<64x384xf32, #tpu.memory_space<vmem>>, vector<8x384xf32>
    %c0_168 = arith.constant 0 : index
    %c0_169 = arith.constant 0 : index
    %332 = vector.load %arg4[%c0_168, %c0_169] : memref<64x384xf32, #tpu.memory_space<vmem>>, vector<64x384xf32>
    %cst_170 = arith.constant dense<0.000000e+00> : vector<8x384xf32>
    %333 = tpu.matmul %326, %332, %cst_170 {dimension_numbers = #tpu.dot_dimension_numbers<[1], [0], [0], [1], [0, 0, 1, 1], [], []>} : vector<8x64xf32>, vector<64x384xf32>, vector<8x384xf32> -> vector<8x384xf32>
    %334 = vector.extract_strided_slice %331 {offsets = [0, 0], sizes = [8, 64], strides = [1, 1]} : vector<8x384xf32> to vector<8x64xf32>
    %335 = vector.extract_strided_slice %333 {offsets = [0, 0], sizes = [8, 64], strides = [1, 1]} : vector<8x384xf32> to vector<8x64xf32>
    %336 = arith.addf %334, %335 : vector<8x64xf32>
    %337 = arith.negf %336 : vector<8x64xf32>
    %338 = math.exp %337 : vector<8x64xf32>
    %cst_171 = arith.constant 1.000000e+00 : f32
    %339 = vector.broadcast %cst_171 : f32 to vector<8x64xf32>
    %340 = arith.addf %339, %338 : vector<8x64xf32>
    %341 = arith.divf %339, %340 : vector<8x64xf32>
    %342 = vector.extract_strided_slice %331 {offsets = [0, 128], sizes = [8, 64], strides = [1, 1]} : vector<8x384xf32> to vector<8x64xf32>
    %343 = vector.extract_strided_slice %333 {offsets = [0, 128], sizes = [8, 64], strides = [1, 1]} : vector<8x384xf32> to vector<8x64xf32>
    %344 = arith.addf %342, %343 : vector<8x64xf32>
    %345 = arith.negf %344 : vector<8x64xf32>
    %346 = math.exp %345 : vector<8x64xf32>
    %cst_172 = arith.constant 1.000000e+00 : f32
    %347 = vector.broadcast %cst_172 : f32 to vector<8x64xf32>
    %348 = arith.addf %347, %346 : vector<8x64xf32>
    %349 = arith.divf %347, %348 : vector<8x64xf32>
    %350 = vector.extract_strided_slice %331 {offsets = [0, 256], sizes = [8, 64], strides = [1, 1]} : vector<8x384xf32> to vector<8x64xf32>
    %351 = vector.extract_strided_slice %333 {offsets = [0, 256], sizes = [8, 64], strides = [1, 1]} : vector<8x384xf32> to vector<8x64xf32>
    %352 = arith.addf %351, %91 : vector<8x64xf32>
    %353 = arith.mulf %341, %352 : vector<8x64xf32>
    %354 = arith.addf %350, %353 : vector<8x64xf32>
    %355 = math.tanh %354 : vector<8x64xf32>
    %cst_173 = arith.constant 1.000000e+00 : f32
    %356 = vector.broadcast %cst_173 : f32 to vector<8x64xf32>
    %357 = arith.subf %356, %349 : vector<8x64xf32>
    %358 = arith.mulf %357, %355 : vector<8x64xf32>
    %359 = arith.mulf %349, %326 : vector<8x64xf32>
    %360 = arith.addf %358, %359 : vector<8x64xf32>
    %361 = vector.extract_strided_slice %360 {offsets = [0, 0], sizes = [8, 32], strides = [1, 1]} : vector<8x64xf32> to vector<8x32xf32>
    %c56_174 = arith.constant 56 : index
    %c0_175 = arith.constant 0 : index
    %362 = vector.load %arg13[%c56_174, %c0_175] : memref<64x64xf32, #tpu.memory_space<vmem>>, vector<8x32xf32>
    tpu.vector_store %arg13[%c56_174, %c0_175], %361 {strides = array<i32>} : memref<64x64xf32, #tpu.memory_space<vmem>>, vector<8x32xf32>,
    %363 = vector.extract_strided_slice %360 {offsets = [0, 32], sizes = [8, 32], strides = [1, 1]} : vector<8x64xf32> to vector<8x32xf32>
    %c0_176 = arith.constant 0 : index
    %c32_177 = arith.constant 32 : index
    %364 = vector.load %arg13[%c0_176, %c32_177] : memref<64x64xf32, #tpu.memory_space<vmem>>, vector<8x32xf32>
    tpu.vector_store %arg13[%c0_176, %c32_177], %363 {strides = array<i32>} : memref<64x64xf32, #tpu.memory_space<vmem>>, vector<8x32xf32>,
    %c0_178 = arith.constant 0 : index
    %c0_179 = arith.constant 0 : index
    %365 = vector.load %arg13[%c0_178, %c0_179] : memref<64x64xf32, #tpu.memory_space<vmem>>, vector<64x64xf32>
    %c0_180 = arith.constant 0 : index
    %c0_181 = arith.constant 0 : index
    %366 = vector.load %arg6[%c0_180, %c0_181] : memref<64x1xf32, #tpu.memory_space<vmem>>, vector<64x1xf32>
    %cst_182 = arith.constant dense<0.000000e+00> : vector<64x1xf32>
    %367 = tpu.matmul %365, %366, %cst_182 {dimension_numbers = #tpu.dot_dimension_numbers<[1], [0], [0], [1], [0, 0, 1, 1], [], []>} : vector<64x64xf32>, vector<64x1xf32>, vector<64x1xf32> -> vector<64x1xf32>
    %c0_183 = arith.constant 0 : index
    %368 = memref.load %arg7[%c0_183] : memref<1xf32, #tpu.memory_space<smem>>
    %369 = vector.broadcast %368 : f32 to vector<64x1xf32>
    %370 = arith.addf %367, %369 : vector<64x1xf32>
    %371 = vector.extract_strided_slice %370 {offsets = [0, 0], sizes = [8, 1], strides = [1, 1]} : vector<64x1xf32> to vector<8x1xf32>
    %372 = math.tanh %371 : vector<8x1xf32>
    %373 = vector.extract_strided_slice %370 {offsets = [8, 0], sizes = [8, 1], strides = [1, 1]} : vector<64x1xf32> to vector<8x1xf32>
    %374 = math.tanh %373 : vector<8x1xf32>
    %375 = vector.extract_strided_slice %370 {offsets = [16, 0], sizes = [8, 1], strides = [1, 1]} : vector<64x1xf32> to vector<8x1xf32>
    %376 = math.tanh %375 : vector<8x1xf32>
    %377 = vector.extract_strided_slice %370 {offsets = [24, 0], sizes = [8, 1], strides = [1, 1]} : vector<64x1xf32> to vector<8x1xf32>
    %378 = math.tanh %377 : vector<8x1xf32>
    %379 = vector.extract_strided_slice %370 {offsets = [32, 0], sizes = [8, 1], strides = [1, 1]} : vector<64x1xf32> to vector<8x1xf32>
    %380 = math.tanh %379 : vector<8x1xf32>
    %381 = vector.extract_strided_slice %370 {offsets = [40, 0], sizes = [8, 1], strides = [1, 1]} : vector<64x1xf32> to vector<8x1xf32>
    %382 = math.tanh %381 : vector<8x1xf32>
    %383 = vector.extract_strided_slice %370 {offsets = [48, 0], sizes = [8, 1], strides = [1, 1]} : vector<64x1xf32> to vector<8x1xf32>
    %384 = math.tanh %383 : vector<8x1xf32>
    %385 = vector.extract_strided_slice %370 {offsets = [56, 0], sizes = [8, 1], strides = [1, 1]} : vector<64x1xf32> to vector<8x1xf32>
    %386 = math.tanh %385 : vector<8x1xf32>
    %387 = arith.maximumf %372, %374 : vector<8x1xf32>
    %388 = arith.maximumf %387, %376 : vector<8x1xf32>
    %389 = arith.maximumf %388, %378 : vector<8x1xf32>
    %390 = arith.maximumf %389, %380 : vector<8x1xf32>
    %391 = arith.maximumf %390, %382 : vector<8x1xf32>
    %392 = arith.maximumf %391, %384 : vector<8x1xf32>
    %393 = arith.maximumf %392, %386 : vector<8x1xf32>
    %394 = arith.subf %372, %393 : vector<8x1xf32>
    %395 = math.exp %394 : vector<8x1xf32>
    %396 = arith.subf %374, %393 : vector<8x1xf32>
    %397 = math.exp %396 : vector<8x1xf32>
    %398 = arith.subf %376, %393 : vector<8x1xf32>
    %399 = math.exp %398 : vector<8x1xf32>
    %400 = arith.subf %378, %393 : vector<8x1xf32>
    %401 = math.exp %400 : vector<8x1xf32>
    %402 = arith.subf %380, %393 : vector<8x1xf32>
    %403 = math.exp %402 : vector<8x1xf32>
    %404 = arith.subf %382, %393 : vector<8x1xf32>
    %405 = math.exp %404 : vector<8x1xf32>
    %406 = arith.subf %384, %393 : vector<8x1xf32>
    %407 = math.exp %406 : vector<8x1xf32>
    %408 = arith.subf %386, %393 : vector<8x1xf32>
    %409 = math.exp %408 : vector<8x1xf32>
    %410 = arith.addf %395, %397 : vector<8x1xf32>
    %411 = arith.addf %410, %399 : vector<8x1xf32>
    %412 = arith.addf %411, %401 : vector<8x1xf32>
    %413 = arith.addf %412, %403 : vector<8x1xf32>
    %414 = arith.addf %413, %405 : vector<8x1xf32>
    %415 = arith.addf %414, %407 : vector<8x1xf32>
    %416 = arith.addf %415, %409 : vector<8x1xf32>
    %417 = tpu.reciprocal %416 : vector<8x1xf32> -> vector<8x1xf32>
    %418 = vector.extract_strided_slice %365 {offsets = [0, 0], sizes = [8, 64], strides = [1, 1]} : vector<64x64xf32> to vector<8x64xf32>
    %419 = vector.broadcast %395 : vector<8x1xf32> to vector<8x64xf32>
    %420 = arith.mulf %419, %418 : vector<8x64xf32>
    %421 = vector.extract_strided_slice %365 {offsets = [8, 0], sizes = [8, 64], strides = [1, 1]} : vector<64x64xf32> to vector<8x64xf32>
    %422 = vector.broadcast %397 : vector<8x1xf32> to vector<8x64xf32>
    %423 = arith.mulf %422, %421 : vector<8x64xf32>
    %424 = arith.addf %420, %423 : vector<8x64xf32>
    %425 = vector.extract_strided_slice %365 {offsets = [16, 0], sizes = [8, 64], strides = [1, 1]} : vector<64x64xf32> to vector<8x64xf32>
    %426 = vector.broadcast %399 : vector<8x1xf32> to vector<8x64xf32>
    %427 = arith.mulf %426, %425 : vector<8x64xf32>
    %428 = arith.addf %424, %427 : vector<8x64xf32>
    %429 = vector.extract_strided_slice %365 {offsets = [24, 0], sizes = [8, 64], strides = [1, 1]} : vector<64x64xf32> to vector<8x64xf32>
    %430 = vector.broadcast %401 : vector<8x1xf32> to vector<8x64xf32>
    %431 = arith.mulf %430, %429 : vector<8x64xf32>
    %432 = arith.addf %428, %431 : vector<8x64xf32>
    %433 = vector.extract_strided_slice %365 {offsets = [32, 0], sizes = [8, 64], strides = [1, 1]} : vector<64x64xf32> to vector<8x64xf32>
    %434 = vector.broadcast %403 : vector<8x1xf32> to vector<8x64xf32>
    %435 = arith.mulf %434, %433 : vector<8x64xf32>
    %436 = arith.addf %432, %435 : vector<8x64xf32>
    %437 = vector.extract_strided_slice %365 {offsets = [40, 0], sizes = [8, 64], strides = [1, 1]} : vector<64x64xf32> to vector<8x64xf32>
    %438 = vector.broadcast %405 : vector<8x1xf32> to vector<8x64xf32>
    %439 = arith.mulf %438, %437 : vector<8x64xf32>
    %440 = arith.addf %436, %439 : vector<8x64xf32>
    %441 = vector.extract_strided_slice %365 {offsets = [48, 0], sizes = [8, 64], strides = [1, 1]} : vector<64x64xf32> to vector<8x64xf32>
    %442 = vector.broadcast %407 : vector<8x1xf32> to vector<8x64xf32>
    %443 = arith.mulf %442, %441 : vector<8x64xf32>
    %444 = arith.addf %440, %443 : vector<8x64xf32>
    %445 = vector.extract_strided_slice %365 {offsets = [56, 0], sizes = [8, 64], strides = [1, 1]} : vector<64x64xf32> to vector<8x64xf32>
    %446 = vector.broadcast %409 : vector<8x1xf32> to vector<8x64xf32>
    %447 = arith.mulf %446, %445 : vector<8x64xf32>
    %448 = arith.addf %444, %447 : vector<8x64xf32>
    %449 = vector.broadcast %417 : vector<8x1xf32> to vector<8x64xf32>
    %450 = arith.mulf %448, %449 : vector<8x64xf32>
    %c0_184 = arith.constant 0 : index
    %c0_185 = arith.constant 0 : index
    %451 = vector.load %arg8[%c0_184, %c0_185] : memref<64x3xf32, #tpu.memory_space<vmem>>, vector<64x3xf32>
    %cst_186 = arith.constant dense<0.000000e+00> : vector<8x3xf32>
    %452 = tpu.matmul %450, %451, %cst_186 {dimension_numbers = #tpu.dot_dimension_numbers<[1], [0], [0], [1], [0, 0, 1, 1], [], []>} : vector<8x64xf32>, vector<64x3xf32>, vector<8x3xf32> -> vector<8x3xf32>
    %c0_187 = arith.constant 0 : index
    %c0_188 = arith.constant 0 : index
    %453 = vector.load %arg9[%c0_187, %c0_188] : memref<1x3xf32, #tpu.memory_space<vmem>>, vector<1x3xf32>
    %454 = vector.broadcast %453 : vector<1x3xf32> to vector<8x3xf32>
    %455 = arith.addf %452, %454 : vector<8x3xf32>
    %cst_189 = arith.constant dense<0xFF800000> : vector<8xf32>
    %456 = vector.multi_reduction <maximumf>, %455, %cst_189 [1] : vector<8x3xf32> to vector<8xf32>
    %457 = vector.shape_cast %456 : vector<8xf32> to vector<8x1xf32>
    %458 = vector.broadcast %457 : vector<8x1xf32> to vector<8x3xf32>
    %459 = arith.subf %455, %458 : vector<8x3xf32>
    %460 = math.exp %459 : vector<8x3xf32>
    %cst_190 = arith.constant dense<0.000000e+00> : vector<8xf32>
    %461 = vector.multi_reduction <add>, %460, %cst_190 [1] : vector<8x3xf32> to vector<8xf32>
    %462 = vector.shape_cast %461 : vector<8xf32> to vector<8x1xf32>
    %463 = tpu.reciprocal %462 : vector<8x1xf32> -> vector<8x1xf32>
    %464 = vector.broadcast %463 : vector<8x1xf32> to vector<8x3xf32>
    %465 = arith.mulf %460, %464 : vector<8x3xf32>
    %466 = vector.extract_strided_slice %465 {offsets = [0, 0], sizes = [2, 3], strides = [1, 1]} : vector<8x3xf32> to vector<2x3xf32>
    %c0_191 = arith.constant 0 : index
    %c0_192 = arith.constant 0 : index
    %467 = vector.load %arg10[%c0_191, %c0_192] : memref<2x3xf32, #tpu.memory_space<vmem>>, vector<2x3xf32>
    tpu.vector_store %arg10[%c0_191, %c0_192], %466 {strides = array<i32>} : memref<2x3xf32, #tpu.memory_space<vmem>>, vector<2x3xf32>,
    return
  }
}

</mosaic_0001>

<llo_original>
// kernel: tpu_custom_call.1
$region0: #{tpu_custom_call.1}
  #allocation0 [shape = 'u32[]', space=smem, size = 0x4, offset = 0x4, fixed_abs, tag = 'smem constant byte address 0x4 - core index']
  #allocation1 [shape = 'u32[144,128]{1,0:T(1,128)}', space=vmem, size = 0x12000, scoped, tag = 'internal scratch']
  #allocation2 [shape = 'f32[64,32]{1,0:T(8,128)}', space=vmem, size = 0x8000, scoped, tag = 'scratch operand']
  #allocation3 [shape = 'f32[64,384]{1,0:T(8,128)}', space=vmem, size = 0x18000, scoped, tag = 'scratch operand']
  #allocation4 [shape = 'f32[64,64]{1,0:T(8,128)}', space=vmem, size = 0x8000, scoped, tag = 'scratch operand']
  #allocation5 [shape = 'f32[1]{0:T(128)S(6)}', space=smem, size = 0x200, scoped, tag = 'scoped memory for tpu_custom_call.1']
  %s0 = inlined_call_operand.vmem [shape: s32[16], index: 0, kind: input, shape index: {}]
  %s1 = inlined_call_operand.vmem [shape: f32[22,16], index: 1, kind: input, shape index: {}]
  %s2 = inlined_call_operand.vmem [shape: f32[32,384], index: 2, kind: input, shape index: {}]
  %s3 = inlined_call_operand.vmem [shape: f32[1,384], index: 3, kind: input, shape index: {}]
  %s4 = inlined_call_operand.hbm [shape: f32[64,384], index: 4, kind: input, shape index: {}]
  %s5 = inlined_call_operand.vmem [shape: f32[1,64], index: 5, kind: input, shape index: {}]
  %s6 = inlined_call_operand.vmem [shape: f32[64,1], index: 6, kind: input, shape index: {}]
  %s7 = inlined_call_operand.<no memory space> [shape: f32[1], index: 7, kind: input, shape index: {}]
  %s8 = inlined_call_operand.vmem [shape: f32[64,3], index: 8, kind: input, shape index: {}]
  %s9 = inlined_call_operand.vmem [shape: f32[1,3], index: 9, kind: input, shape index: {}]
  %s10 = inlined_call_operand.hbm [shape: f32[2,3], index: 10, kind: output, shape index: {}]
  %s11 = sld [smem:[#allocation0]]
  $region58: #{tpu_custom_call.1} parent=0
    _
  %s13 = ssub.s32 1, %s11
  %s14 = scalar_select 0, %s13, %s11
  %15 = sst [smem:[#allocation5]] %s7
  $region1: #{tpu_custom_call.1} parent=0
    #allocation6 [shape = 'u8[512]{0}', space=smem, size = 0x200, scoped, tag = 'input window, operand 0, single buffered']
    #allocation7 [shape = 's32[1]{0}', space=sflag, size = 0x4, scoped, tag = 'scoped memory for tpu_custom_call.1']
    #allocation8 [shape = 's32[1]{0}', space=sflag, size = 0x4, scoped, tag = 'scoped memory for tpu_custom_call.1']
    #allocation9 [shape = 's32[1]{0}', space=sflag, size = 0x4, scoped, tag = 'scoped memory for tpu_custom_call.1']
    #allocation10 [shape = 'u8[98304]{0}', space=vmem, size = 0x18000, scoped, tag = 'input window, operand 4, single buffered']
    #allocation11 [shape = 'u8[1024]{0}', space=vmem, size = 0x400, scoped, tag = 'output window, operand 0, single buffered']
    %16 = vsyncpa [#allocation9], 0
    %17 = vsyncpa [#allocation7], 0
    %18 = vsyncpa [#allocation8], 0
    // Predicated region
    $region2: #{tpu_custom_call.1} parent=1 // pred_check
      _
    $region3: #{tpu_custom_call.1} parent=1 // pred_check_branch
      %20 = sbr.rel (0) target = $region5
    $region4: #{tpu_custom_call.1} parent=1 // pred_region
      %s22 = ssub.s32 16, 16
      %23 = vsyncadd [#allocation9], %s22
      %s25 = sshll.u32 %s0, 4
      %s26 = int_to_ptr.vmem [resolvable:$true] %s25
      %28 = dma.vmem_to_smem %s26, 16, [#allocation6], [#allocation9]
    $region5: #{tpu_custom_call.1} parent=1 // pred_fallthru
      _
    // Predicated region
    $region6: #{tpu_custom_call.1} parent=1 // pred_check
      _
    $region7: #{tpu_custom_call.1} parent=1 // pred_check_branch
      %30 = sbr.rel (0) target = $region9
    $region8: #{tpu_custom_call.1} parent=1 // pred_region
      _
    $region9: #{tpu_custom_call.1} parent=1 // pred_fallthru
      _
    // Predicated region
    $region10: #{tpu_custom_call.1} parent=1 // pred_check
      _
    $region11: #{tpu_custom_call.1} parent=1 // pred_check_branch
      %32 = sbr.rel (0) target = $region13
    $region12: #{tpu_custom_call.1} parent=1 // pred_region
      _
    $region13: #{tpu_custom_call.1} parent=1 // pred_fallthru
      _
    // Predicated region
    $region14: #{tpu_custom_call.1} parent=1 // pred_check
      _
    $region15: #{tpu_custom_call.1} parent=1 // pred_check_branch
      %34 = sbr.rel (0) target = $region17
    $region16: #{tpu_custom_call.1} parent=1 // pred_region
      _
    $region17: #{tpu_custom_call.1} parent=1 // pred_fallthru
      _
    // Predicated region
    $region18: #{tpu_custom_call.1} parent=1 // pred_check
      _
    $region19: #{tpu_custom_call.1} parent=1 // pred_check_branch
      %36 = sbr.rel (0) target = $region21
    $region20: #{tpu_custom_call.1} parent=1 // pred_region
      %s38 = ssub.s32 3072, 3072
      %39 = vsyncadd [#allocation7], %s38
      %s40 = sshll.u32 [#allocation10], 4
      %s41 = int_to_ptr.vmem [resolvable:$true] %s40
      %46 = dma.hbm_to_vmem [thread:$0]  %s4, 3072, %s41, [#allocation7], 384, 384, 24
    $region21: #{tpu_custom_call.1} parent=1 // pred_fallthru
      _
    // Predicated region
    $region22: #{tpu_custom_call.1} parent=1 // pred_check
      _
    $region23: #{tpu_custom_call.1} parent=1 // pred_check_branch
      %48 = sbr.rel (0) target = $region25
    $region24: #{tpu_custom_call.1} parent=1 // pred_region
      _
    $region25: #{tpu_custom_call.1} parent=1 // pred_fallthru
      _
    // Predicated region
    $region26: #{tpu_custom_call.1} parent=1 // pred_check
      _
    $region27: #{tpu_custom_call.1} parent=1 // pred_check_branch
      %50 = sbr.rel (0) target = $region29
    $region28: #{tpu_custom_call.1} parent=1 // pred_region
      _
    $region29: #{tpu_custom_call.1} parent=1 // pred_fallthru
      _
    // Predicated region
    $region30: #{tpu_custom_call.1} parent=1 // pred_check
      _
    $region31: #{tpu_custom_call.1} parent=1 // pred_check_branch
      %52 = sbr.rel (0) target = $region33
    $region32: #{tpu_custom_call.1} parent=1 // pred_region
      _
    $region33: #{tpu_custom_call.1} parent=1 // pred_fallthru
      _
    // Predicated region
    $region34: #{tpu_custom_call.1} parent=1 // pred_check
      _
    $region35: #{tpu_custom_call.1} parent=1 // pred_check_branch
      %54 = sbr.rel (0) target = $region37
    $region36: #{tpu_custom_call.1} parent=1 // pred_region
      _
    $region37: #{tpu_custom_call.1} parent=1 // pred_fallthru
      _
    // Predicated region
    $region38: #{tpu_custom_call.1} parent=1 // pred_check
      _
    $region39: #{tpu_custom_call.1} parent=1 // pred_check_branch
      %56 = sbr.rel (0) target = $region41
    $region40: #{tpu_custom_call.1} parent=1 // pred_region
      _
    $region41: #{tpu_custom_call.1} parent=1 // pred_fallthru
      _
    // Predicated region
    $region42: #{tpu_custom_call.1} parent=1 // pred_check
      _
    $region43: #{tpu_custom_call.1} parent=1 // pred_check_branch
      %58 = sbr.rel (0) target = $region45
    $region44: #{tpu_custom_call.1} parent=1 // pred_region
      %59 = dma.done [#allocation9], 16
    $region45: #{tpu_custom_call.1} parent=1 // pred_fallthru
      _
    // Predicated region
    $region46: #{tpu_custom_call.1} parent=1 // pred_check
      _
    $region47: #{tpu_custom_call.1} parent=1 // pred_check_branch
      %61 = sbr.rel (0) target = $region49
    $region48: #{tpu_custom_call.1} parent=1 // pred_region
      %62 = dma.done [#allocation7], 3072
    $region49: #{tpu_custom_call.1} parent=1 // pred_fallthru
      _
    %63 = sfence
    %vm64 = vcmask 261120
    %65 = vst.msk [vmem:[#allocation2] sm:$0xff] %vm64, 0.0
    %66 = vst.msk [vmem:[#allocation2 + $0x8] sm:$0xff] %vm64, 0.0
    %67 = vst.msk [vmem:[#allocation2 + $0x10] sm:$0xff] %vm64, 0.0
    %68 = vst.msk [vmem:[#allocation2 + $0x18] sm:$0xff] %vm64, 0.0
    %69 = vst.msk [vmem:[#allocation2 + $0x20] sm:$0xff] %vm64, 0.0
    %70 = vst.msk [vmem:[#allocation2 + $0x28] sm:$0xff] %vm64, 0.0
    %71 = vst.msk [vmem:[#allocation2 + $0x30] sm:$0xff] %vm64, 0.0
    %72 = vst.msk [vmem:[#allocation2 + $0x38] sm:$0xff] %vm64, 0.0
    %s73 = sld [smem:[#allocation6]]
    %s74 = scalar_lea.vmem %s1, %s73
    %v75 = vld [vmem:[%s74] sm:$0x1]
    %vm76 = vcmask 122880
    %77 = vst.msk [vmem:[#allocation2] sm:$0x1] %vm76, %v75
    %79 = vrot.lane.b32.xlu0 %v75, 16
    %v80 = vpop.permute.xlu0 %79
    %vm82 = vcmask 254080
    %83 = vst.msk [vmem:[#allocation2 + $0x38] sm:$0x1] %vm82, %v80
    %s84 = sld [smem:[#allocation6 + $0x8]]
    %s85 = scalar_lea.vmem %s1, %s84
    %v86 = vld [vmem:[%s85] sm:$0x1]
    %87 = vst.msk [vmem:[#allocation2 + $0x1] sm:$0x1] %vm76, %v86
    %89 = vrot.lane.b32.xlu0 %v86, 16
    %v90 = vpop.permute.xlu0 %89
    %92 = vst.msk [vmem:[#allocation2 + $0x39] sm:$0x1] %vm82, %v90
    %s93 = sld [smem:[#allocation6 + $0x1]]
    %s94 = scalar_lea.vmem %s1, %s93
    %v95 = vld [vmem:[%s94] sm:$0x1]
    %96 = vst.msk [vmem:[#allocation2 + $0x8] sm:$0x1] %vm76, %v95
    %98 = vrot.lane.b32.xlu0 %v95, 16
    %v99 = vpop.permute.xlu0 %98
    %101 = vst.msk [vmem:[#allocation2 + $0x30] sm:$0x1] %vm82, %v99
    %s102 = sld [smem:[#allocation6 + $0x9]]
    %s103 = scalar_lea.vmem %s1, %s102
    %v104 = vld [vmem:[%s103] sm:$0x1]
    %105 = vst.msk [vmem:[#allocation2 + $0x9] sm:$0x1] %vm76, %v104
    %107 = vrot.lane.b32.xlu0 %v104, 16
    %v108 = vpop.permute.xlu0 %107
    %110 = vst.msk [vmem:[#allocation2 + $0x31] sm:$0x1] %vm82, %v108
    %s111 = sld [smem:[#allocation6 + $0x2]]
    %s112 = scalar_lea.vmem %s1, %s111
    %v113 = vld [vmem:[%s112] sm:$0x1]
    %114 = vst.msk [vmem:[#allocation2 + $0x10] sm:$0x1] %vm76, %v113
    %116 = vrot.lane.b32.xlu0 %v113, 16
    %v117 = vpop.permute.xlu0 %116
    %119 = vst.msk [vmem:[#allocation2 + $0x28] sm:$0x1] %vm82, %v117
    %s120 = sld [smem:[#allocation6 + $0xa]]
    %s121 = scalar_lea.vmem %s1, %s120
    %v122 = vld [vmem:[%s121] sm:$0x1]
    %123 = vst.msk [vmem:[#allocation2 + $0x11] sm:$0x1] %vm76, %v122
    %125 = vrot.lane.b32.xlu0 %v122, 16
    %v126 = vpop.permute.xlu0 %125
    %128 = vst.msk [vmem:[#allocation2 + $0x29] sm:$0x1] %vm82, %v126
    %s129 = sld [smem:[#allocation6 + $0x3]]
    %s130 = scalar_lea.vmem %s1, %s129
    %v131 = vld [vmem:[%s130] sm:$0x1]
    %132 = vst.msk [vmem:[#allocation2 + $0x18] sm:$0x1] %vm76, %v131
    %134 = vrot.lane.b32.xlu0 %v131, 16
    %v135 = vpop.permute.xlu0 %134
    %137 = vst.msk [vmem:[#allocation2 + $0x20] sm:$0x1] %vm82, %v135
    %s138 = sld [smem:[#allocation6 + $0xb]]
    %s139 = scalar_lea.vmem %s1, %s138
    %v140 = vld [vmem:[%s139] sm:$0x1]
    %141 = vst.msk [vmem:[#allocation2 + $0x19] sm:$0x1] %vm76, %v140
    %143 = vrot.lane.b32.xlu0 %v140, 16
    %v144 = vpop.permute.xlu0 %143
    %146 = vst.msk [vmem:[#allocation2 + $0x21] sm:$0x1] %vm82, %v144
    %s147 = sld [smem:[#allocation6 + $0x4]]
    %s148 = scalar_lea.vmem %s1, %s147
    %v149 = vld [vmem:[%s148] sm:$0x1]
    %150 = vst.msk [vmem:[#allocation2 + $0x20] sm:$0x1] %vm76, %v149
    %152 = vrot.lane.b32.xlu0 %v149, 16
    %v153 = vpop.permute.xlu0 %152
    %155 = vst.msk [vmem:[#allocation2 + $0x18] sm:$0x1] %vm82, %v153
    %s156 = sld [smem:[#allocation6 + $0xc]]
    %s157 = scalar_lea.vmem %s1, %s156
    %v158 = vld [vmem:[%s157] sm:$0x1]
    %159 = vst.msk [vmem:[#allocation2 + $0x21] sm:$0x1] %vm76, %v158
    %161 = vrot.lane.b32.xlu0 %v158, 16
    %v162 = vpop.permute.xlu0 %161
    %164 = vst.msk [vmem:[#allocation2 + $0x19] sm:$0x1] %vm82, %v162
    %s165 = sld [smem:[#allocation6 + $0x5]]
    %s166 = scalar_lea.vmem %s1, %s165
    %v167 = vld [vmem:[%s166] sm:$0x1]
    %168 = vst.msk [vmem:[#allocation2 + $0x28] sm:$0x1] %vm76, %v167
    %170 = vrot.lane.b32.xlu0 %v167, 16
    %v171 = vpop.permute.xlu0 %170
    %173 = vst.msk [vmem:[#allocation2 + $0x10] sm:$0x1] %vm82, %v171
    %s174 = sld [smem:[#allocation6 + $0xd]]
    %s175 = scalar_lea.vmem %s1, %s174
    %v176 = vld [vmem:[%s175] sm:$0x1]
    %177 = vst.msk [vmem:[#allocation2 + $0x29] sm:$0x1] %vm76, %v176
    %179 = vrot.lane.b32.xlu0 %v176, 16
    %v180 = vpop.permute.xlu0 %179
    %182 = vst.msk [vmem:[#allocation2 + $0x11] sm:$0x1] %vm82, %v180
    %s183 = sld [smem:[#allocation6 + $0x6]]
    %s184 = scalar_lea.vmem %s1, %s183
    %v185 = vld [vmem:[%s184] sm:$0x1]
    %186 = vst.msk [vmem:[#allocation2 + $0x30] sm:$0x1] %vm76, %v185
    %188 = vrot.lane.b32.xlu0 %v185, 16
    %v189 = vpop.permute.xlu0 %188
    %191 = vst.msk [vmem:[#allocation2 + $0x8] sm:$0x1] %vm82, %v189
    %s192 = sld [smem:[#allocation6 + $0xe]]
    %s193 = scalar_lea.vmem %s1, %s192
    %v194 = vld [vmem:[%s193] sm:$0x1]
    %195 = vst.msk [vmem:[#allocation2 + $0x31] sm:$0x1] %vm76, %v194
    %197 = vrot.lane.b32.xlu0 %v194, 16
    %v198 = vpop.permute.xlu0 %197
    %200 = vst.msk [vmem:[#allocation2 + $0x9] sm:$0x1] %vm82, %v198
    %s201 = sld [smem:[#allocation6 + $0x7]]
    %s202 = scalar_lea.vmem %s1, %s201
    %v203 = vld [vmem:[%s202] sm:$0x1]
    %204 = vst.msk [vmem:[#allocation2 + $0x38] sm:$0x1] %vm76, %v203
    %206 = vrot.lane.b32.xlu0 %v203, 16
    %v207 = vpop.permute.xlu0 %206
    %209 = vst.msk [vmem:[#allocation2] sm:$0x1] %vm82, %v207
    %s210 = sld [smem:[#allocation6 + $0xf]]
    %s211 = scalar_lea.vmem %s1, %s210
    %v212 = vld [vmem:[%s211] sm:$0x1]
    %213 = vst.msk [vmem:[#allocation2 + $0x39] sm:$0x1] %vm76, %v212
    %215 = vrot.lane.b32.xlu0 %v212, 16
    %v216 = vpop.permute.xlu0 %215
    %218 = vst.msk [vmem:[#allocation2 + $0x1] sm:$0x1] %vm82, %v216
    %v219 = vld [vmem:[#allocation2] sm:$0xff]
    %v220 = vld [vmem:[#allocation2 + $0x8] sm:$0xff]
    %v221 = vld [vmem:[#allocation2 + $0x10] sm:$0xff]
    %v222 = vld [vmem:[#allocation2 + $0x18] sm:$0xff]
    %v223 = vld [vmem:[#allocation2 + $0x20] sm:$0xff]
    %v224 = vld [vmem:[#allocation2 + $0x28] sm:$0xff]
    %v225 = vld [vmem:[#allocation2 + $0x30] sm:$0xff]
    %v226 = vld [vmem:[#allocation2 + $0x38] sm:$0xff]
    %v227 = vld [vmem:[%s2] sm:$0xff]
    %v228 = vld [vmem:[%s2 + $0x8] sm:$0xff]
    %v229 = vld [vmem:[%s2 + $0x10] sm:$0xff]
    %v230 = vld [vmem:[%s2 + $0x18] sm:$0xff]
    %v231 = vld [vmem:[%s2 + $0x20] sm:$0xff]
    %v232 = vld [vmem:[%s2 + $0x28] sm:$0xff]
    %v233 = vld [vmem:[%s2 + $0x30] sm:$0xff]
    %v234 = vld [vmem:[%s2 + $0x38] sm:$0xff]
    %v235 = vld [vmem:[%s2 + $0x40] sm:$0xff]
    %v236 = vld [vmem:[%s2 + $0x48] sm:$0xff]
    %v237 = vld [vmem:[%s2 + $0x50] sm:$0xff]
    %v238 = vld [vmem:[%s2 + $0x58] sm:$0xff]
    %v239 = vld [vmem:[%s3] sm:$0x7]
    %v241 = vlaneseq
    %v242 = vshrl.u32 %v241, 7
    %v243 = vsub.s32 0, %v242
    %v244 = vrot.slane %v239, %v243
    %v245 = vlaneseq
    %v246 = vshrl.u32 %v245, 7
    %v247 = vsub.s32 1, %v246
    %v248 = vrot.slane %v239, %v247
    %v249 = vlaneseq
    %v250 = vshrl.u32 %v249, 7
    %v251 = vsub.s32 2, %v250
    %v252 = vrot.slane %v239, %v251
    %v257 = vsel %vm64, %v219, 0
    %v260 = vsel %vm64, %v220, 0
    %v263 = vsel %vm64, %v221, 0
    %v266 = vsel %vm64, %v222, 0
    %v269 = vsel %vm64, %v223, 0
    %v272 = vsel %vm64, %v224, 0
    %v275 = vsel %vm64, %v225, 0
    %v278 = vsel %vm64, %v226, 0
    %280 = vmatprep.subr.mxu0 0.0
    %281 = vmatpush1.msra.mxu0 0.0
    %282 = vmatprep.subr.mxu0 0.0
    %283 = vmatpush1.msra.mxu0 0.0
    %284 = vmatprep.subr.mxu0 0.0
    %285 = vmatpush1.msra.mxu0 0.0
    %286 = vmatprep.subr.mxu0 0.0
    %287 = vmatpush1.msra.mxu0 0.0
    %288 = vmatprep.subr.mxu0 0.0
    %289 = vmatpush1.msra.mxu0 0.0
    %290 = vmatprep.subr.mxu0 0.0
    %291 = vmatpush1.msra.mxu0 0.0
    %292 = vmatprep.subr.mxu0 0.0
    %293 = vmatpush1.msra.mxu0 0.0
    %294 = vmatprep.subr.mxu0 0.0
    %295 = vmatpush1.msra.mxu0 0.0
    %296 = vmatprep.subr.mxu0 0.0
    %297 = vmatpush1.msra.mxu0 0.0
    %298 = vmatprep.subr.mxu0 0.0
    %299 = vmatpush1.msra.mxu0 0.0
    %300 = vmatprep.subr.mxu0 0.0
    %301 = vmatpush1.msra.mxu0 0.0
    %302 = vmatprep.subr.mxu0 0.0
    %303 = vmatpush1.msra.mxu0 0.0
    %304 = vmatprep.subr.mxu0 %v237
    %305 = vmatpush1.msra.mxu0 %v236
    %306 = vmatprep.subr.mxu0 %v234
    %307 = vmatpush1.msra.mxu0 %v233
    %308 = vmatprep.subr.mxu0 %v231
    %309 = vmatpush1.msra.mxu0 %v230
    %310 = vmatprep.subr.mxu0 %v228
    %311 = vmatpush1.msra.mxu0 %v227
    %312 = vmatprep.subr.mxu0 0.0
    %313 = vmatpush2.msra.mxu0 0.0
    %314 = vmatprep.subr.mxu0 0.0
    %315 = vmatpush2.msra.mxu0 0.0
    %316 = vmatprep.subr.mxu0 0.0
    %317 = vmatpush2.msra.mxu0 0.0
    %318 = vmatprep.subr.mxu0 0.0
    %319 = vmatpush2.msra.mxu0 0.0
    %320 = vmatprep.subr.mxu0 0.0
    %321 = vmatpush2.msra.mxu0 0.0
    %322 = vmatprep.subr.mxu0 0.0
    %323 = vmatpush2.msra.mxu0 0.0
    %324 = vmatprep.subr.mxu0 0.0
    %325 = vmatpush2.msra.mxu0 0.0
    %326 = vmatprep.subr.mxu0 0.0
    %327 = vmatpush2.msra.mxu0 0.0
    %328 = vmatprep.subr.mxu0 0.0
    %329 = vmatpush2.msra.mxu0 0.0
    %330 = vmatprep.subr.mxu0 0.0
    %331 = vmatpush2.msra.mxu0 0.0
    %332 = vmatprep.subr.mxu0 0.0
    %333 = vmatpush2.msra.mxu0 0.0
    %334 = vmatprep.subr.mxu0 0.0
    %335 = vmatpush2.msra.mxu0 0.0
    %336 = vmatprep.subr.mxu0 0.0
    %337 = vmatpush2.msra.mxu0 0.0
    %338 = vmatprep.subr.mxu0 0.0
    %339 = vmatpush2.msra.mxu0 0.0
    %340 = vmatprep.subr.mxu0 0.0
    %341 = vmatpush2.msra.mxu0 0.0
    %342 = vmatprep.subr.mxu0 0.0
    %343 = vmatpush2.msra.mxu0 0.0
    %344 = vmatprep.mubr.f32.mxu0 0.0
    %345 = vmatmul.mubr.f32.gmra.mxu0 %v257
    %v346 = vpop.f32.mrf.mxu0
    %v347 = vadd.f32 %v244, %v346
    %v348 = vpop.f32.mrf.mxu0
    %v349 = vadd.f32 %v248, %v348
    %350 = vmatprep.mubr.f32.mxu0 0.0
    %351 = vmatmul.mubr.f32.gmra.mxu0 %v260
    %v352 = vpop.f32.mrf.mxu0
    %v353 = vadd.f32 %v244, %v352
    %v354 = vpop.f32.mrf.mxu0
    %v355 = vadd.f32 %v248, %v354
    %356 = vmatprep.mubr.f32.mxu0 0.0
    %357 = vmatmul.mubr.f32.gmra.mxu0 %v263
    %v358 = vpop.f32.mrf.mxu0
    %v359 = vadd.f32 %v244, %v358
    %v360 = vpop.f32.mrf.mxu0
    %v361 = vadd.f32 %v248, %v360
    %362 = vmatprep.mubr.f32.mxu0 0.0
    %363 = vmatmul.mubr.f32.gmra.mxu0 %v266
    %v364 = vpop.f32.mrf.mxu0
    %v365 = vadd.f32 %v244, %v364
    %v366 = vpop.f32.mrf.mxu0
    %v367 = vadd.f32 %v248, %v366
    %368 = vmatprep.mubr.f32.mxu0 0.0
    %369 = vmatmul.mubr.f32.gmra.mxu0 %v269
    %v370 = vpop.f32.mrf.mxu0
    %v371 = vadd.f32 %v244, %v370
    %v372 = vpop.f32.mrf.mxu0
    %v373 = vadd.f32 %v248, %v372
    %374 = vmatprep.mubr.f32.mxu0 0.0
    %375 = vmatmul.mubr.f32.gmra.mxu0 %v272
    %v376 = vpop.f32.mrf.mxu0
    %v377 = vadd.f32 %v244, %v376
    %v378 = vpop.f32.mrf.mxu0
    %v379 = vadd.f32 %v248, %v378
    %380 = vmatprep.mubr.f32.mxu0 0.0
    %381 = vmatmul.mubr.f32.gmra.mxu0 %v275
    %v382 = vpop.f32.mrf.mxu0
    %v383 = vadd.f32 %v244, %v382
    %v384 = vpop.f32.mrf.mxu0
    %v385 = vadd.f32 %v248, %v384
    %386 = vmatprep.mubr.f32.mxu0 0.0
    %387 = vmatmul.mubr.f32.gmra.mxu0 %v278
    %v388 = vpop.f32.mrf.mxu0
    %v389 = vadd.f32 %v244, %v388
    %v390 = vpop.f32.mrf.mxu0
    %v391 = vadd.f32 %v248, %v390
    %392 = vdwg.mxu0
    %393 = vmatprep.subr.mxu0 0.0
    %394 = vmatpush1.msra.mxu0 0.0
    %395 = vmatprep.subr.mxu0 0.0
    %396 = vmatpush1.msra.mxu0 0.0
    %397 = vmatprep.subr.mxu0 0.0
    %398 = vmatpush1.msra.mxu0 0.0
    %399 = vmatprep.subr.mxu0 0.0
    %400 = vmatpush1.msra.mxu0 0.0
    %401 = vmatprep.subr.mxu0 0.0
    %402 = vmatpush1.msra.mxu0 0.0
    %403 = vmatprep.subr.mxu0 0.0
    %404 = vmatpush1.msra.mxu0 0.0
    %405 = vmatprep.subr.mxu0 0.0
    %406 = vmatpush1.msra.mxu0 0.0
    %407 = vmatprep.subr.mxu0 0.0
    %408 = vmatpush1.msra.mxu0 0.0
    %409 = vmatprep.subr.mxu0 0.0
    %410 = vmatpush1.msra.mxu0 0.0
    %411 = vmatprep.subr.mxu0 0.0
    %412 = vmatpush1.msra.mxu0 0.0
    %413 = vmatprep.subr.mxu0 0.0
    %414 = vmatpush1.msra.mxu0 0.0
    %415 = vmatprep.subr.mxu0 0.0
    %416 = vmatpush1.msra.mxu0 0.0
    %417 = vmatprep.subr.mxu0 0.0
    %418 = vmatpush1.msra.mxu0 %v238
    %419 = vmatprep.subr.mxu0 0.0
    %420 = vmatpush1.msra.mxu0 %v235
    %421 = vmatprep.subr.mxu0 0.0
    %422 = vmatpush1.msra.mxu0 %v232
    %423 = vmatprep.subr.mxu0 0.0
    %424 = vmatpush1.msra.mxu0 %v229
    %425 = vmatprep.subr.mxu0 0.0
    %426 = vmatpush2.msra.mxu0 0.0
    %427 = vmatprep.subr.mxu0 0.0
    %428 = vmatpush2.msra.mxu0 0.0
    %429 = vmatprep.subr.mxu0 0.0
    %430 = vmatpush2.msra.mxu0 0.0
    %431 = vmatprep.subr.mxu0 0.0
    %432 = vmatpush2.msra.mxu0 0.0
    %433 = vmatprep.subr.mxu0 0.0
    %434 = vmatpush2.msra.mxu0 0.0
    %435 = vmatprep.subr.mxu0 0.0
    %436 = vmatpush2.msra.mxu0 0.0
    %437 = vmatprep.subr.mxu0 0.0
    %438 = vmatpush2.msra.mxu0 0.0
    %439 = vmatprep.subr.mxu0 0.0
    %440 = vmatpush2.msra.mxu0 0.0
    %441 = vmatprep.subr.mxu0 0.0
    %442 = vmatpush2.msra.mxu0 0.0
    %443 = vmatprep.subr.mxu0 0.0
    %444 = vmatpush2.msra.mxu0 0.0
    %445 = vmatprep.subr.mxu0 0.0
    %446 = vmatpush2.msra.mxu0 0.0
    %447 = vmatprep.subr.mxu0 0.0
    %448 = vmatpush2.msra.mxu0 0.0
    %449 = vmatprep.subr.mxu0 0.0
    %450 = vmatpush2.msra.mxu0 0.0
    %451 = vmatprep.subr.mxu0 0.0
    %452 = vmatpush2.msra.mxu0 0.0
    %453 = vmatprep.subr.mxu0 0.0
    %454 = vmatpush2.msra.mxu0 0.0
    %455 = vmatprep.subr.mxu0 0.0
    %456 = vmatpush2.msra.mxu0 0.0
    %457 = vmatprep.mubr.f32.mxu0 0.0
    %458 = vmatmul.mubr.f32.gmra.mxu0 %v257
    %v459 = vpop.f32.mrf.mxu0
    %v460 = vadd.f32 %v252, %v459
    %v461 = vpop.f32.mrf.mxu0
    %462 = vmatprep.mubr.f32.mxu0 0.0
    %463 = vmatmul.mubr.f32.gmra.mxu0 %v260
    %v464 = vpop.f32.mrf.mxu0
    %v465 = vadd.f32 %v252, %v464
    %v466 = vpop.f32.mrf.mxu0
    %467 = vmatprep.mubr.f32.mxu0 0.0
    %468 = vmatmul.mubr.f32.gmra.mxu0 %v263
    %v469 = vpop.f32.mrf.mxu0
    %v470 = vadd.f32 %v252, %v469
    %v471 = vpop.f32.mrf.mxu0
    %472 = vmatprep.mubr.f32.mxu0 0.0
    %473 = vmatmul.mubr.f32.gmra.mxu0 %v266
    %v474 = vpop.f32.mrf.mxu0
    %v475 = vadd.f32 %v252, %v474
    %v476 = vpop.f32.mrf.mxu0
    %477 = vmatprep.mubr.f32.mxu0 0.0
    %478 = vmatmul.mubr.f32.gmra.mxu0 %v269
    %v479 = vpop.f32.mrf.mxu0
    %v480 = vadd.f32 %v252, %v479
    %v481 = vpop.f32.mrf.mxu0
    %482 = vmatprep.mubr.f32.mxu0 0.0
    %483 = vmatmul.mubr.f32.gmra.mxu0 %v272
    %v484 = vpop.f32.mrf.mxu0
    %v485 = vadd.f32 %v252, %v484
    %v486 = vpop.f32.mrf.mxu0
    %487 = vmatprep.mubr.f32.mxu0 0.0
    %488 = vmatmul.mubr.f32.gmra.mxu0 %v275
    %v489 = vpop.f32.mrf.mxu0
    %v490 = vadd.f32 %v252, %v489
    %v491 = vpop.f32.mrf.mxu0
    %492 = vmatprep.mubr.f32.mxu0 0.0
    %493 = vmatmul.mubr.f32.gmra.mxu0 %v278
    %v494 = vpop.f32.mrf.mxu0
    %v495 = vadd.f32 %v252, %v494
    %v496 = vpop.f32.mrf.mxu0
    %497 = vdwg.mxu0
    %498 = vst [vmem:[#allocation3] sm:$0xff] %v347
    %499 = vst [vmem:[#allocation3 + $0x8] sm:$0xff] %v349
    %500 = vst [vmem:[#allocation3 + $0x10] sm:$0xff] %v460
    %501 = vst [vmem:[#allocation3 + $0x18] sm:$0xff] %v353
    %502 = vst [vmem:[#allocation3 + $0x20] sm:$0xff] %v355
    %503 = vst [vmem:[#allocation3 + $0x28] sm:$0xff] %v465
    %504 = vst [vmem:[#allocation3 + $0x30] sm:$0xff] %v359
    %505 = vst [vmem:[#allocation3 + $0x38] sm:$0xff] %v361
    %506 = vst [vmem:[#allocation3 + $0x40] sm:$0xff] %v470
    %507 = vst [vmem:[#allocation3 + $0x48] sm:$0xff] %v365
    %508 = vst [vmem:[#allocation3 + $0x50] sm:$0xff] %v367
    %509 = vst [vmem:[#allocation3 + $0x58] sm:$0xff] %v475
    %510 = vst [vmem:[#allocation3 + $0x60] sm:$0xff] %v371
    %511 = vst [vmem:[#allocation3 + $0x68] sm:$0xff] %v373
    %512 = vst [vmem:[#allocation3 + $0x70] sm:$0xff] %v480
    %513 = vst [vmem:[#allocation3 + $0x78] sm:$0xff] %v377
    %514 = vst [vmem:[#allocation3 + $0x80] sm:$0xff] %v379
    %515 = vst [vmem:[#allocation3 + $0x88] sm:$0xff] %v485
    %516 = vst [vmem:[#allocation3 + $0x90] sm:$0xff] %v383
    %517 = vst [vmem:[#allocation3 + $0x98] sm:$0xff] %v385
    %518 = vst [vmem:[#allocation3 + $0xa0] sm:$0xff] %v490
    %519 = vst [vmem:[#allocation3 + $0xa8] sm:$0xff] %v389
    %520 = vst [vmem:[#allocation3 + $0xb0] sm:$0xff] %v391
    %521 = vst [vmem:[#allocation3 + $0xb8] sm:$0xff] %v495
    %v522 = vld [vmem:[%s5] sm:$0x1]
    %v524 = vlaneseq
    %v525 = vshrl.u32 %v524, 7
    %v526 = vsub.s32 0, %v525
    %v527 = vrot.slane %v522, %v526
    %v529 = vld [vmem:[#allocation3] sm:$0xff]
    %v530 = vld [vmem:[#allocation3 + $0x8] sm:$0xff]
    %v531 = vld [vmem:[#allocation3 + $0x10] sm:$0xff]
    %v532 = vld [vmem:[#allocation10] sm:$0xff]
    %v533 = vld [vmem:[#allocation10 + $0x8] sm:$0xff]
    %v534 = vld [vmem:[#allocation10 + $0x10] sm:$0xff]
    %v535 = vld [vmem:[#allocation10 + $0x18] sm:$0xff]
    %v536 = vld [vmem:[#allocation10 + $0x20] sm:$0xff]
    %v537 = vld [vmem:[#allocation10 + $0x28] sm:$0xff]
    %v538 = vld [vmem:[#allocation10 + $0x30] sm:$0xff]
    %v539 = vld [vmem:[#allocation10 + $0x38] sm:$0xff]
    %v540 = vld [vmem:[#allocation10 + $0x40] sm:$0xff]
    %v541 = vld [vmem:[#allocation10 + $0x48] sm:$0xff]
    %v542 = vld [vmem:[#allocation10 + $0x50] sm:$0xff]
    %v543 = vld [vmem:[#allocation10 + $0x58] sm:$0xff]
    %v544 = vld [vmem:[#allocation10 + $0x60] sm:$0xff]
    %v545 = vld [vmem:[#allocation10 + $0x68] sm:$0xff]
    %v546 = vld [vmem:[#allocation10 + $0x70] sm:$0xff]
    %v547 = vld [vmem:[#allocation10 + $0x78] sm:$0xff]
    %v548 = vld [vmem:[#allocation10 + $0x80] sm:$0xff]
    %v549 = vld [vmem:[#allocation10 + $0x88] sm:$0xff]
    %v550 = vld [vmem:[#allocation10 + $0x90] sm:$0xff]
    %v551 = vld [vmem:[#allocation10 + $0x98] sm:$0xff]
    %v552 = vld [vmem:[#allocation10 + $0xa0] sm:$0xff]
    %v553 = vld [vmem:[#allocation10 + $0xa8] sm:$0xff]
    %v554 = vld [vmem:[#allocation10 + $0xb0] sm:$0xff]
    %v555 = vld [vmem:[#allocation10 + $0xb8] sm:$0xff]
    %vm556 = vcmask 523264
    %v558 = vsel %vm556, 0.0, 0
    %560 = vmatprep.subr.mxu0 0.0
    %561 = vmatpush1.msra.mxu0 0.0
    %562 = vmatprep.subr.mxu0 0.0
    %563 = vmatpush1.msra.mxu0 0.0
    %564 = vmatprep.subr.mxu0 0.0
    %565 = vmatpush1.msra.mxu0 0.0
    %566 = vmatprep.subr.mxu0 0.0
    %567 = vmatpush1.msra.mxu0 0.0
    %568 = vmatprep.subr.mxu0 0.0
    %569 = vmatpush1.msra.mxu0 0.0
    %570 = vmatprep.subr.mxu0 0.0
    %571 = vmatpush1.msra.mxu0 0.0
    %572 = vmatprep.subr.mxu0 0.0
    %573 = vmatpush1.msra.mxu0 0.0
    %574 = vmatprep.subr.mxu0 0.0
    %575 = vmatpush1.msra.mxu0 0.0
    %576 = vmatprep.subr.mxu0 %v554
    %577 = vmatpush1.msra.mxu0 %v553
    %578 = vmatprep.subr.mxu0 %v551
    %579 = vmatpush1.msra.mxu0 %v550
    %580 = vmatprep.subr.mxu0 %v548
    %581 = vmatpush1.msra.mxu0 %v547
    %582 = vmatprep.subr.mxu0 %v545
    %583 = vmatpush1.msra.mxu0 %v544
    %584 = vmatprep.subr.mxu0 %v542
    %585 = vmatpush1.msra.mxu0 %v541
    %586 = vmatprep.subr.mxu0 %v539
    %587 = vmatpush1.msra.mxu0 %v538
    %588 = vmatprep.subr.mxu0 %v536
    %589 = vmatpush1.msra.mxu0 %v535
    %590 = vmatprep.subr.mxu0 %v533
    %591 = vmatpush1.msra.mxu0 %v532
    %592 = vmatprep.subr.mxu0 0.0
    %593 = vmatpush2.msra.mxu0 0.0
    %594 = vmatprep.subr.mxu0 0.0
    %595 = vmatpush2.msra.mxu0 0.0
    %596 = vmatprep.subr.mxu0 0.0
    %597 = vmatpush2.msra.mxu0 0.0
    %598 = vmatprep.subr.mxu0 0.0
    %599 = vmatpush2.msra.mxu0 0.0
    %600 = vmatprep.subr.mxu0 0.0
    %601 = vmatpush2.msra.mxu0 0.0
    %602 = vmatprep.subr.mxu0 0.0
    %603 = vmatpush2.msra.mxu0 0.0
    %604 = vmatprep.subr.mxu0 0.0
    %605 = vmatpush2.msra.mxu0 0.0
    %606 = vmatprep.subr.mxu0 0.0
    %607 = vmatpush2.msra.mxu0 0.0
    %608 = vmatprep.subr.mxu0 0.0
    %609 = vmatpush2.msra.mxu0 0.0
    %610 = vmatprep.subr.mxu0 0.0
    %611 = vmatpush2.msra.mxu0 0.0
    %612 = vmatprep.subr.mxu0 0.0
    %613 = vmatpush2.msra.mxu0 0.0
    %614 = vmatprep.subr.mxu0 0.0
    %615 = vmatpush2.msra.mxu0 0.0
    %616 = vmatprep.subr.mxu0 0.0
    %617 = vmatpush2.msra.mxu0 0.0
    %618 = vmatprep.subr.mxu0 0.0
    %619 = vmatpush2.msra.mxu0 0.0
    %620 = vmatprep.subr.mxu0 0.0
    %621 = vmatpush2.msra.mxu0 0.0
    %622 = vmatprep.subr.mxu0 0.0
    %623 = vmatpush2.msra.mxu0 0.0
    %624 = vmatprep.mubr.f32.mxu0 0.0
    %625 = vmatmul.mubr.f32.gmra.mxu0 %v558
    %v626 = vpop.f32.mrf.mxu0
    %v627 = vadd.f32 0.0, %v626
    %v628 = vpop.f32.mrf.mxu0
    %v629 = vadd.f32 0.0, %v628
    %630 = vdwg.mxu0
    %631 = vmatprep.subr.mxu0 0.0
    %632 = vmatpush1.msra.mxu0 0.0
    %633 = vmatprep.subr.mxu0 0.0
    %634 = vmatpush1.msra.mxu0 0.0
    %635 = vmatprep.subr.mxu0 0.0
    %636 = vmatpush1.msra.mxu0 0.0
    %637 = vmatprep.subr.mxu0 0.0
    %638 = vmatpush1.msra.mxu0 0.0
    %639 = vmatprep.subr.mxu0 0.0
    %640 = vmatpush1.msra.mxu0 0.0
    %641 = vmatprep.subr.mxu0 0.0
    %642 = vmatpush1.msra.mxu0 0.0
    %643 = vmatprep.subr.mxu0 0.0
    %644 = vmatpush1.msra.mxu0 0.0
    %645 = vmatprep.subr.mxu0 0.0
    %646 = vmatpush1.msra.mxu0 0.0
    %647 = vmatprep.subr.mxu0 0.0
    %648 = vmatpush1.msra.mxu0 %v555
    %649 = vmatprep.subr.mxu0 0.0
    %650 = vmatpush1.msra.mxu0 %v552
    %651 = vmatprep.subr.mxu0 0.0
    %652 = vmatpush1.msra.mxu0 %v549
    %653 = vmatprep.subr.mxu0 0.0
    %654 = vmatpush1.msra.mxu0 %v546
    %655 = vmatprep.subr.mxu0 0.0
    %656 = vmatpush1.msra.mxu0 %v543
    %657 = vmatprep.subr.mxu0 0.0
    %658 = vmatpush1.msra.mxu0 %v540
    %659 = vmatprep.subr.mxu0 0.0
    %660 = vmatpush1.msra.mxu0 %v537
    %661 = vmatprep.subr.mxu0 0.0
    %662 = vmatpush1.msra.mxu0 %v534
    %663 = vmatprep.subr.mxu0 0.0
    %664 = vmatpush2.msra.mxu0 0.0
    %665 = vmatprep.subr.mxu0 0.0
    %666 = vmatpush2.msra.mxu0 0.0
    %667 = vmatprep.subr.mxu0 0.0
    %668 = vmatpush2.msra.mxu0 0.0
    %669 = vmatprep.subr.mxu0 0.0
    %670 = vmatpush2.msra.mxu0 0.0
    %671 = vmatprep.subr.mxu0 0.0
    %672 = vmatpush2.msra.mxu0 0.0
    %673 = vmatprep.subr.mxu0 0.0
    %674 = vmatpush2.msra.mxu0 0.0
    %675 = vmatprep.subr.mxu0 0.0
    %676 = vmatpush2.msra.mxu0 0.0
    %677 = vmatprep.subr.mxu0 0.0
    %678 = vmatpush2.msra.mxu0 0.0
    %679 = vmatprep.subr.mxu0 0.0
    %680 = vmatpush2.msra.mxu0 0.0
    %681 = vmatprep.subr.mxu0 0.0
    %682 = vmatpush2.msra.mxu0 0.0
    %683 = vmatprep.subr.mxu0 0.0
    %684 = vmatpush2.msra.mxu0 0.0
    %685 = vmatprep.subr.mxu0 0.0
    %686 = vmatpush2.msra.mxu0 0.0
    %687 = vmatprep.subr.mxu0 0.0
    %688 = vmatpush2.msra.mxu0 0.0
    %689 = vmatprep.subr.mxu0 0.0
    %690 = vmatpush2.msra.mxu0 0.0
    %691 = vmatprep.subr.mxu0 0.0
    %692 = vmatpush2.msra.mxu0 0.0
    %693 = vmatprep.subr.mxu0 0.0
    %694 = vmatpush2.msra.mxu0 0.0
    %695 = vmatprep.mubr.f32.mxu0 0.0
    %696 = vmatmul.mubr.f32.gmra.mxu0 %v558
    %v697 = vpop.f32.mrf.mxu0
    %v698 = vadd.f32 0.0, %v697
    %v699 = vpop.f32.mrf.mxu0
    %700 = vdwg.mxu0
    %v701 = vadd.f32 %v529, %v627
    %v702 = vxor.u32 %v701, 2147483648
    %v703 = vmul.f32 %v702, 1.442695
    %v704 = vpow.pop %v703
    %v705 = vadd.f32 %v704, 1.0
    %v706 = vrcp.pop %v705
    %v707 = vmul.f32 1.0, %v706
    %v708 = vadd.f32 %v530, %v629
    %v709 = vxor.u32 %v708, 2147483648
    %v710 = vmul.f32 %v709, 1.442695
    %v711 = vpow.pop %v710
    %v712 = vadd.f32 %v711, 1.0
    %v713 = vrcp.pop %v712
    %v714 = vmul.f32 1.0, %v713
    %v715 = vadd.f32 %v698, %v527
    %v716 = vmul.f32 %v707, %v715
    %v717 = vadd.f32 %v531, %v716
    %v718 = vtanh.pop %v717
    %v719 = vsub.f32 1.0, %v714
    %v720 = vmul.f32 %v719, %v718
    %v721 = vmul.f32 %v714, 0.0
    %v722 = vadd.f32 %v720, %v721
    %723 = vst.msk [vmem:[#allocation4] sm:$0xff] %vm64, %v722
    %vm724 = vcmask 523520
    %725 = vst.msk [vmem:[#allocation4 + $0x38] sm:$0xff] %vm724, %v722
    %v726 = vld [vmem:[#allocation3 + $0x18] sm:$0xff]
    %v727 = vld [vmem:[#allocation3 + $0x20] sm:$0xff]
    %v728 = vld [vmem:[#allocation3 + $0x28] sm:$0xff]
    %v729 = vld [vmem:[#allocation10] sm:$0xff]
    %v730 = vld [vmem:[#allocation10 + $0x8] sm:$0xff]
    %v731 = vld [vmem:[#allocation10 + $0x10] sm:$0xff]
    %v732 = vld [vmem:[#allocation10 + $0x18] sm:$0xff]
    %v733 = vld [vmem:[#allocation10 + $0x20] sm:$0xff]
    %v734 = vld [vmem:[#allocation10 + $0x28] sm:$0xff]
    %v735 = vld [vmem:[#allocation10 + $0x30] sm:$0xff]
    %v736 = vld [vmem:[#allocation10 + $0x38] sm:$0xff]
    %v737 = vld [vmem:[#allocation10 + $0x40] sm:$0xff]
    %v738 = vld [vmem:[#allocation10 + $0x48] sm:$0xff]
    %v739 = vld [vmem:[#allocation10 + $0x50] sm:$0xff]
    %v740 = vld [vmem:[#allocation10 + $0x58] sm:$0xff]
    %v741 = vld [vmem:[#allocation10 + $0x60] sm:$0xff]
    %v742 = vld [vmem:[#allocation10 + $0x68] sm:$0xff]
    %v743 = vld [vmem:[#allocation10 + $0x70] sm:$0xff]
    %v744 = vld [vmem:[#allocation10 + $0x78] sm:$0xff]
    %v745 = vld [vmem:[#allocation10 + $0x80] sm:$0xff]
    %v746 = vld [vmem:[#allocation10 + $0x88] sm:$0xff]
    %v747 = vld [vmem:[#allocation10 + $0x90] sm:$0xff]
    %v748 = vld [vmem:[#allocation10 + $0x98] sm:$0xff]
    %v749 = vld [vmem:[#allocation10 + $0xa0] sm:$0xff]
    %v750 = vld [vmem:[#allocation10 + $0xa8] sm:$0xff]
    %v751 = vld [vmem:[#allocation10 + $0xb0] sm:$0xff]
    %v752 = vld [vmem:[#allocation10 + $0xb8] sm:$0xff]
    %v754 = vsel %vm556, %v722, 0
    %756 = vmatprep.subr.mxu0 0.0
    %757 = vmatpush1.msra.mxu0 0.0
    %758 = vmatprep.subr.mxu0 0.0
    %759 = vmatpush1.msra.mxu0 0.0
    %760 = vmatprep.subr.mxu0 0.0
    %761 = vmatpush1.msra.mxu0 0.0
    %762 = vmatprep.subr.mxu0 0.0
    %763 = vmatpush1.msra.mxu0 0.0
    %764 = vmatprep.subr.mxu0 0.0
    %765 = vmatpush1.msra.mxu0 0.0
    %766 = vmatprep.subr.mxu0 0.0
    %767 = vmatpush1.msra.mxu0 0.0
    %768 = vmatprep.subr.mxu0 0.0
    %769 = vmatpush1.msra.mxu0 0.0
    %770 = vmatprep.subr.mxu0 0.0
    %771 = vmatpush1.msra.mxu0 0.0
    %772 = vmatprep.subr.mxu0 %v751
    %773 = vmatpush1.msra.mxu0 %v750
    %774 = vmatprep.subr.mxu0 %v748
    %775 = vmatpush1.msra.mxu0 %v747
    %776 = vmatprep.subr.mxu0 %v745
    %777 = vmatpush1.msra.mxu0 %v744
    %778 = vmatprep.subr.mxu0 %v742
    %779 = vmatpush1.msra.mxu0 %v741
    %780 = vmatprep.subr.mxu0 %v739
    %781 = vmatpush1.msra.mxu0 %v738
    %782 = vmatprep.subr.mxu0 %v736
    %783 = vmatpush1.msra.mxu0 %v735
    %784 = vmatprep.subr.mxu0 %v733
    %785 = vmatpush1.msra.mxu0 %v732
    %786 = vmatprep.subr.mxu0 %v730
    %787 = vmatpush1.msra.mxu0 %v729
    %788 = vmatprep.subr.mxu0 0.0
    %789 = vmatpush2.msra.mxu0 0.0
    %790 = vmatprep.subr.mxu0 0.0
    %791 = vmatpush2.msra.mxu0 0.0
    %792 = vmatprep.subr.mxu0 0.0
    %793 = vmatpush2.msra.mxu0 0.0
    %794 = vmatprep.subr.mxu0 0.0
    %795 = vmatpush2.msra.mxu0 0.0
    %796 = vmatprep.subr.mxu0 0.0
    %797 = vmatpush2.msra.mxu0 0.0
    %798 = vmatprep.subr.mxu0 0.0
    %799 = vmatpush2.msra.mxu0 0.0
    %800 = vmatprep.subr.mxu0 0.0
    %801 = vmatpush2.msra.mxu0 0.0
    %802 = vmatprep.subr.mxu0 0.0
    %803 = vmatpush2.msra.mxu0 0.0
    %804 = vmatprep.subr.mxu0 0.0
    %805 = vmatpush2.msra.mxu0 0.0
    %806 = vmatprep.subr.mxu0 0.0
    %807 = vmatpush2.msra.mxu0 0.0
    %808 = vmatprep.subr.mxu0 0.0
    %809 = vmatpush2.msra.mxu0 0.0
    %810 = vmatprep.subr.mxu0 0.0
    %811 = vmatpush2.msra.mxu0 0.0
    %812 = vmatprep.subr.mxu0 0.0
    %813 = vmatpush2.msra.mxu0 0.0
    %814 = vmatprep.subr.mxu0 0.0
    %815 = vmatpush2.msra.mxu0 0.0
    %816 = vmatprep.subr.mxu0 0.0
    %817 = vmatpush2.msra.mxu0 0.0
    %818 = vmatprep.subr.mxu0 0.0
    %819 = vmatpush2.msra.mxu0 0.0
    %820 = vmatprep.mubr.f32.mxu0 0.0
    %821 = vmatmul.mubr.f32.gmra.mxu0 %v754
    %v822 = vpop.f32.mrf.mxu0
    %v823 = vadd.f32 0.0, %v822
    %v824 = vpop.f32.mrf.mxu0
    %v825 = vadd.f32 0.0, %v824
    %826 = vdwg.mxu0
    %827 = vmatprep.subr.mxu0 0.0
    %828 = vmatpush1.msra.mxu0 0.0
    %829 = vmatprep.subr.mxu0 0.0
    %830 = vmatpush1.msra.mxu0 0.0
    %831 = vmatprep.subr.mxu0 0.0
    %832 = vmatpush1.msra.mxu0 0.0
    %833 = vmatprep.subr.mxu0 0.0
    %834 = vmatpush1.msra.mxu0 0.0
    %835 = vmatprep.subr.mxu0 0.0
    %836 = vmatpush1.msra.mxu0 0.0
    %837 = vmatprep.subr.mxu0 0.0
    %838 = vmatpush1.msra.mxu0 0.0
    %839 = vmatprep.subr.mxu0 0.0
    %840 = vmatpush1.msra.mxu0 0.0
    %841 = vmatprep.subr.mxu0 0.0
    %842 = vmatpush1.msra.mxu0 0.0
    %843 = vmatprep.subr.mxu0 0.0
    %844 = vmatpush1.msra.mxu0 %v752
    %845 = vmatprep.subr.mxu0 0.0
    %846 = vmatpush1.msra.mxu0 %v749
    %847 = vmatprep.subr.mxu0 0.0
    %848 = vmatpush1.msra.mxu0 %v746
    %849 = vmatprep.subr.mxu0 0.0
    %850 = vmatpush1.msra.mxu0 %v743
    %851 = vmatprep.subr.mxu0 0.0
    %852 = vmatpush1.msra.mxu0 %v740
    %853 = vmatprep.subr.mxu0 0.0
    %854 = vmatpush1.msra.mxu0 %v737
    %855 = vmatprep.subr.mxu0 0.0
    %856 = vmatpush1.msra.mxu0 %v734
    %857 = vmatprep.subr.mxu0 0.0
    %858 = vmatpush1.msra.mxu0 %v731
    %859 = vmatprep.subr.mxu0 0.0
    %860 = vmatpush2.msra.mxu0 0.0
    %861 = vmatprep.subr.mxu0 0.0
    %862 = vmatpush2.msra.mxu0 0.0
    %863 = vmatprep.subr.mxu0 0.0
    %864 = vmatpush2.msra.mxu0 0.0
    %865 = vmatprep.subr.mxu0 0.0
    %866 = vmatpush2.msra.mxu0 0.0
    %867 = vmatprep.subr.mxu0 0.0
    %868 = vmatpush2.msra.mxu0 0.0
    %869 = vmatprep.subr.mxu0 0.0
    %870 = vmatpush2.msra.mxu0 0.0
    %871 = vmatprep.subr.mxu0 0.0
    %872 = vmatpush2.msra.mxu0 0.0
    %873 = vmatprep.subr.mxu0 0.0
    %874 = vmatpush2.msra.mxu0 0.0
    %875 = vmatprep.subr.mxu0 0.0
    %876 = vmatpush2.msra.mxu0 0.0
    %877 = vmatprep.subr.mxu0 0.0
    %878 = vmatpush2.msra.mxu0 0.0
    %879 = vmatprep.subr.mxu0 0.0
    %880 = vmatpush2.msra.mxu0 0.0
    %881 = vmatprep.subr.mxu0 0.0
    %882 = vmatpush2.msra.mxu0 0.0
    %883 = vmatprep.subr.mxu0 0.0
    %884 = vmatpush2.msra.mxu0 0.0
    %885 = vmatprep.subr.mxu0 0.0
    %886 = vmatpush2.msra.mxu0 0.0
    %887 = vmatprep.subr.mxu0 0.0
    %888 = vmatpush2.msra.mxu0 0.0
    %889 = vmatprep.subr.mxu0 0.0
    %890 = vmatpush2.msra.mxu0 0.0
    %891 = vmatprep.mubr.f32.mxu0 0.0
    %892 = vmatmul.mubr.f32.gmra.mxu0 %v754
    %v893 = vpop.f32.mrf.mxu0
    %v894 = vadd.f32 0.0, %v893
    %v895 = vpop.f32.mrf.mxu0
    %896 = vdwg.mxu0
    %v897 = vadd.f32 %v726, %v823
    %v898 = vxor.u32 %v897, 2147483648
    %v899 = vmul.f32 %v898, 1.442695
    %v900 = vpow.pop %v899
    %v901 = vadd.f32 %v900, 1.0
    %v902 = vrcp.pop %v901
    %v903 = vmul.f32 1.0, %v902
    %v904 = vadd.f32 %v727, %v825
    %v905 = vxor.u32 %v904, 2147483648
    %v906 = vmul.f32 %v905, 1.442695
    %v907 = vpow.pop %v906
    %v908 = vadd.f32 %v907, 1.0
    %v909 = vrcp.pop %v908
    %v910 = vmul.f32 1.0, %v909
    %v911 = vadd.f32 %v894, %v527
    %v912 = vmul.f32 %v903, %v911
    %v913 = vadd.f32 %v728, %v912
    %v914 = vtanh.pop %v913
    %v915 = vsub.f32 1.0, %v910
    %v916 = vmul.f32 %v915, %v914
    %v917 = vmul.f32 %v910, %v722
    %v918 = vadd.f32 %v916, %v917
    %919 = vst.msk [vmem:[#allocation4 + $0x8] sm:$0xff] %vm64, %v918
    %920 = vst.msk [vmem:[#allocation4 + $0x30] sm:$0xff] %vm724, %v918
    %v921 = vld [vmem:[#allocation3 + $0x30] sm:$0xff]
    %v922 = vld [vmem:[#allocation3 + $0x38] sm:$0xff]
    %v923 = vld [vmem:[#allocation3 + $0x40] sm:$0xff]
    %v924 = vld [vmem:[#allocation10] sm:$0xff]
    %v925 = vld [vmem:[#allocation10 + $0x8] sm:$0xff]
    %v926 = vld [vmem:[#allocation10 + $0x10] sm:$0xff]
    %v927 = vld [vmem:[#allocation10 + $0x18] sm:$0xff]
    %v928 = vld [vmem:[#allocation10 + $0x20] sm:$0xff]
    %v929 = vld [vmem:[#allocation10 + $0x28] sm:$0xff]
    %v930 = vld [vmem:[#allocation10 + $0x30] sm:$0xff]
    %v931 = vld [vmem:[#allocation10 + $0x38] sm:$0xff]
    %v932 = vld [vmem:[#allocation10 + $0x40] sm:$0xff]
    %v933 = vld [vmem:[#allocation10 + $0x48] sm:$0xff]
    %v934 = vld [vmem:[#allocation10 + $0x50] sm:$0xff]
    %v935 = vld [vmem:[#allocation10 + $0x58] sm:$0xff]
    %v936 = vld [vmem:[#allocation10 + $0x60] sm:$0xff]
    %v937 = vld [vmem:[#allocation10 + $0x68] sm:$0xff]
    %v938 = vld [vmem:[#allocation10 + $0x70] sm:$0xff]
    %v939 = vld [vmem:[#allocation10 + $0x78] sm:$0xff]
    %v940 = vld [vmem:[#allocation10 + $0x80] sm:$0xff]
    %v941 = vld [vmem:[#allocation10 + $0x88] sm:$0xff]
    %v942 = vld [vmem:[#allocation10 + $0x90] sm:$0xff]
    %v943 = vld [vmem:[#allocation10 + $0x98] sm:$0xff]
    %v944 = vld [vmem:[#allocation10 + $0xa0] sm:$0xff]
    %v945 = vld [vmem:[#allocation10 + $0xa8] sm:$0xff]
    %v946 = vld [vmem:[#allocation10 + $0xb0] sm:$0xff]
    %v947 = vld [vmem:[#allocation10 + $0xb8] sm:$0xff]
    %v949 = vsel %vm556, %v918, 0
    %951 = vmatprep.subr.mxu0 0.0
    %952 = vmatpush1.msra.mxu0 0.0
    %953 = vmatprep.subr.mxu0 0.0
    %954 = vmatpush1.msra.mxu0 0.0
    %955 = vmatprep.subr.mxu0 0.0
    %956 = vmatpush1.msra.mxu0 0.0
    %957 = vmatprep.subr.mxu0 0.0
    %958 = vmatpush1.msra.mxu0 0.0
    %959 = vmatprep.subr.mxu0 0.0
    %960 = vmatpush1.msra.mxu0 0.0
    %961 = vmatprep.subr.mxu0 0.0
    %962 = vmatpush1.msra.mxu0 0.0
    %963 = vmatprep.subr.mxu0 0.0
    %964 = vmatpush1.msra.mxu0 0.0
    %965 = vmatprep.subr.mxu0 0.0
    %966 = vmatpush1.msra.mxu0 0.0
    %967 = vmatprep.subr.mxu0 %v946
    %968 = vmatpush1.msra.mxu0 %v945
    %969 = vmatprep.subr.mxu0 %v943
    %970 = vmatpush1.msra.mxu0 %v942
    %971 = vmatprep.subr.mxu0 %v940
    %972 = vmatpush1.msra.mxu0 %v939
    %973 = vmatprep.subr.mxu0 %v937
    %974 = vmatpush1.msra.mxu0 %v936
    %975 = vmatprep.subr.mxu0 %v934
    %976 = vmatpush1.msra.mxu0 %v933
    %977 = vmatprep.subr.mxu0 %v931
    %978 = vmatpush1.msra.mxu0 %v930
    %979 = vmatprep.subr.mxu0 %v928
    %980 = vmatpush1.msra.mxu0 %v927
    %981 = vmatprep.subr.mxu0 %v925
    %982 = vmatpush1.msra.mxu0 %v924
    %983 = vmatprep.subr.mxu0 0.0
    %984 = vmatpush2.msra.mxu0 0.0
    %985 = vmatprep.subr.mxu0 0.0
    %986 = vmatpush2.msra.mxu0 0.0
    %987 = vmatprep.subr.mxu0 0.0
    %988 = vmatpush2.msra.mxu0 0.0
    %989 = vmatprep.subr.mxu0 0.0
    %990 = vmatpush2.msra.mxu0 0.0
    %991 = vmatprep.subr.mxu0 0.0
    %992 = vmatpush2.msra.mxu0 0.0
    %993 = vmatprep.subr.mxu0 0.0
    %994 = vmatpush2.msra.mxu0 0.0
    %995 = vmatprep.subr.mxu0 0.0
    %996 = vmatpush2.msra.mxu0 0.0
    %997 = vmatprep.subr.mxu0 0.0
    %998 = vmatpush2.msra.mxu0 0.0
    %999 = vmatprep.subr.mxu0 0.0
    %1000 = vmatpush2.msra.mxu0 0.0
    %1001 = vmatprep.subr.mxu0 0.0
    %1002 = vmatpush2.msra.mxu0 0.0
    %1003 = vmatprep.subr.mxu0 0.0
    %1004 = vmatpush2.msra.mxu0 0.0
    %1005 = vmatprep.subr.mxu0 0.0
    %1006 = vmatpush2.msra.mxu0 0.0
    %1007 = vmatprep.subr.mxu0 0.0
    %1008 = vmatpush2.msra.mxu0 0.0
    %1009 = vmatprep.subr.mxu0 0.0
    %1010 = vmatpush2.msra.mxu0 0.0
    %1011 = vmatprep.subr.mxu0 0.0
    %1012 = vmatpush2.msra.mxu0 0.0
    %1013 = vmatprep.subr.mxu0 0.0
    %1014 = vmatpush2.msra.mxu0 0.0
    %1015 = vmatprep.mubr.f32.mxu0 0.0
    %1016 = vmatmul.mubr.f32.gmra.mxu0 %v949
    %v1017 = vpop.f32.mrf.mxu0
    %v1018 = vadd.f32 0.0, %v1017
    %v1019 = vpop.f32.mrf.mxu0
    %v1020 = vadd.f32 0.0, %v1019
    %1021 = vdwg.mxu0
    %1022 = vmatprep.subr.mxu0 0.0
    %1023 = vmatpush1.msra.mxu0 0.0
    %1024 = vmatprep.subr.mxu0 0.0
    %1025 = vmatpush1.msra.mxu0 0.0
    %1026 = vmatprep.subr.mxu0 0.0
    %1027 = vmatpush1.msra.mxu0 0.0
    %1028 = vmatprep.subr.mxu0 0.0
    %1029 = vmatpush1.msra.mxu0 0.0
    %1030 = vmatprep.subr.mxu0 0.0
    %1031 = vmatpush1.msra.mxu0 0.0
    %1032 = vmatprep.subr.mxu0 0.0
    %1033 = vmatpush1.msra.mxu0 0.0
    %1034 = vmatprep.subr.mxu0 0.0
    %1035 = vmatpush1.msra.mxu0 0.0
    %1036 = vmatprep.subr.mxu0 0.0
    %1037 = vmatpush1.msra.mxu0 0.0
    %1038 = vmatprep.subr.mxu0 0.0
    %1039 = vmatpush1.msra.mxu0 %v947
    %1040 = vmatprep.subr.mxu0 0.0
    %1041 = vmatpush1.msra.mxu0 %v944
    %1042 = vmatprep.subr.mxu0 0.0
    %1043 = vmatpush1.msra.mxu0 %v941
    %1044 = vmatprep.subr.mxu0 0.0
    %1045 = vmatpush1.msra.mxu0 %v938
    %1046 = vmatprep.subr.mxu0 0.0
    %1047 = vmatpush1.msra.mxu0 %v935
    %1048 = vmatprep.subr.mxu0 0.0
    %1049 = vmatpush1.msra.mxu0 %v932
    %1050 = vmatprep.subr.mxu0 0.0
    %1051 = vmatpush1.msra.mxu0 %v929
    %1052 = vmatprep.subr.mxu0 0.0
    %1053 = vmatpush1.msra.mxu0 %v926
    %1054 = vmatprep.subr.mxu0 0.0
    %1055 = vmatpush2.msra.mxu0 0.0
    %1056 = vmatprep.subr.mxu0 0.0
    %1057 = vmatpush2.msra.mxu0 0.0
    %1058 = vmatprep.subr.mxu0 0.0
    %1059 = vmatpush2.msra.mxu0 0.0
    %1060 = vmatprep.subr.mxu0 0.0
    %1061 = vmatpush2.msra.mxu0 0.0
    %1062 = vmatprep.subr.mxu0 0.0
    %1063 = vmatpush2.msra.mxu0 0.0
    %1064 = vmatprep.subr.mxu0 0.0
    %1065 = vmatpush2.msra.mxu0 0.0
    %1066 = vmatprep.subr.mxu0 0.0
    %1067 = vmatpush2.msra.mxu0 0.0
    %1068 = vmatprep.subr.mxu0 0.0
    %1069 = vmatpush2.msra.mxu0 0.0
    %1070 = vmatprep.subr.mxu0 0.0
    %1071 = vmatpush2.msra.mxu0 0.0
    %1072 = vmatprep.subr.mxu0 0.0
    %1073 = vmatpush2.msra.mxu0 0.0
    %1074 = vmatprep.subr.mxu0 0.0
    %1075 = vmatpush2.msra.mxu0 0.0
    %1076 = vmatprep.subr.mxu0 0.0
    %1077 = vmatpush2.msra.mxu0 0.0
    %1078 = vmatprep.subr.mxu0 0.0
    %1079 = vmatpush2.msra.mxu0 0.0
    %1080 = vmatprep.subr.mxu0 0.0
    %1081 = vmatpush2.msra.mxu0 0.0
    %1082 = vmatprep.subr.mxu0 0.0
    %1083 = vmatpush2.msra.mxu0 0.0
    %1084 = vmatprep.subr.mxu0 0.0
    %1085 = vmatpush2.msra.mxu0 0.0
    %1086 = vmatprep.mubr.f32.mxu0 0.0
    %1087 = vmatmul.mubr.f32.gmra.mxu0 %v949
    %v1088 = vpop.f32.mrf.mxu0
    %v1089 = vadd.f32 0.0, %v1088
    %v1090 = vpop.f32.mrf.mxu0
    %1091 = vdwg.mxu0
    %v1092 = vadd.f32 %v921, %v1018
    %v1093 = vxor.u32 %v1092, 2147483648
    %v1094 = vmul.f32 %v1093, 1.442695
    %v1095 = vpow.pop %v1094
    %v1096 = vadd.f32 %v1095, 1.0
    %v1097 = vrcp.pop %v1096
    %v1098 = vmul.f32 1.0, %v1097
    %v1099 = vadd.f32 %v922, %v1020
    %v1100 = vxor.u32 %v1099, 2147483648
    %v1101 = vmul.f32 %v1100, 1.442695
    %v1102 = vpow.pop %v1101
    %v1103 = vadd.f32 %v1102, 1.0
    %v1104 = vrcp.pop %v1103
    %v1105 = vmul.f32 1.0, %v1104
    %v1106 = vadd.f32 %v1089, %v527
    %v1107 = vmul.f32 %v1098, %v1106
    %v1108 = vadd.f32 %v923, %v1107
    %v1109 = vtanh.pop %v1108
    %v1110 = vsub.f32 1.0, %v1105
    %v1111 = vmul.f32 %v1110, %v1109
    %v1112 = vmul.f32 %v1105, %v918
    %v1113 = vadd.f32 %v1111, %v1112
    %1114 = vst.msk [vmem:[#allocation4 + $0x10] sm:$0xff] %vm64, %v1113
    %1115 = vst.msk [vmem:[#allocation4 + $0x28] sm:$0xff] %vm724, %v1113
    %v1116 = vld [vmem:[#allocation3 + $0x48] sm:$0xff]
    %v1117 = vld [vmem:[#allocation3 + $0x50] sm:$0xff]
    %v1118 = vld [vmem:[#allocation3 + $0x58] sm:$0xff]
    %v1119 = vld [vmem:[#allocation10] sm:$0xff]
    %v1120 = vld [vmem:[#allocation10 + $0x8] sm:$0xff]
    %v1121 = vld [vmem:[#allocation10 + $0x10] sm:$0xff]
    %v1122 = vld [vmem:[#allocation10 + $0x18] sm:$0xff]
    %v1123 = vld [vmem:[#allocation10 + $0x20] sm:$0xff]
    %v1124 = vld [vmem:[#allocation10 + $0x28] sm:$0xff]
    %v1125 = vld [vmem:[#allocation10 + $0x30] sm:$0xff]
    %v1126 = vld [vmem:[#allocation10 + $0x38] sm:$0xff]
    %v1127 = vld [vmem:[#allocation10 + $0x40] sm:$0xff]
    %v1128 = vld [vmem:[#allocation10 + $0x48] sm:$0xff]
    %v1129 = vld [vmem:[#allocation10 + $0x50] sm:$0xff]
    %v1130 = vld [vmem:[#allocation10 + $0x58] sm:$0xff]
    %v1131 = vld [vmem:[#allocation10 + $0x60] sm:$0xff]
    %v1132 = vld [vmem:[#allocation10 + $0x68] sm:$0xff]
    %v1133 = vld [vmem:[#allocation10 + $0x70] sm:$0xff]
    %v1134 = vld [vmem:[#allocation10 + $0x78] sm:$0xff]
    %v1135 = vld [vmem:[#allocation10 + $0x80] sm:$0xff]
    %v1136 = vld [vmem:[#allocation10 + $0x88] sm:$0xff]
    %v1137 = vld [vmem:[#allocation10 + $0x90] sm:$0xff]
    %v1138 = vld [vmem:[#allocation10 + $0x98] sm:$0xff]
    %v1139 = vld [vmem:[#allocation10 + $0xa0] sm:$0xff]
    %v1140 = vld [vmem:[#allocation10 + $0xa8] sm:$0xff]
    %v1141 = vld [vmem:[#allocation10 + $0xb0] sm:$0xff]
    %v1142 = vld [vmem:[#allocation10 + $0xb8] sm:$0xff]
    %v1144 = vsel %vm556, %v1113, 0
    %1146 = vmatprep.subr.mxu0 0.0
    %1147 = vmatpush1.msra.mxu0 0.0
    %1148 = vmatprep.subr.mxu0 0.0
    %1149 = vmatpush1.msra.mxu0 0.0
    %1150 = vmatprep.subr.mxu0 0.0
    %1151 = vmatpush1.msra.mxu0 0.0
    %1152 = vmatprep.subr.mxu0 0.0
    %1153 = vmatpush1.msra.mxu0 0.0
    %1154 = vmatprep.subr.mxu0 0.0
    %1155 = vmatpush1.msra.mxu0 0.0
    %1156 = vmatprep.subr.mxu0 0.0
    %1157 = vmatpush1.msra.mxu0 0.0
    %1158 = vmatprep.subr.mxu0 0.0
    %1159 = vmatpush1.msra.mxu0 0.0
    %1160 = vmatprep.subr.mxu0 0.0
    %1161 = vmatpush1.msra.mxu0 0.0
    %1162 = vmatprep.subr.mxu0 %v1141
    %1163 = vmatpush1.msra.mxu0 %v1140
    %1164 = vmatprep.subr.mxu0 %v1138
    %1165 = vmatpush1.msra.mxu0 %v1137
    %1166 = vmatprep.subr.mxu0 %v1135
    %1167 = vmatpush1.msra.mxu0 %v1134
    %1168 = vmatprep.subr.mxu0 %v1132
    %1169 = vmatpush1.msra.mxu0 %v1131
    %1170 = vmatprep.subr.mxu0 %v1129
    %1171 = vmatpush1.msra.mxu0 %v1128
    %1172 = vmatprep.subr.mxu0 %v1126
    %1173 = vmatpush1.msra.mxu0 %v1125
    %1174 = vmatprep.subr.mxu0 %v1123
    %1175 = vmatpush1.msra.mxu0 %v1122
    %1176 = vmatprep.subr.mxu0 %v1120
    %1177 = vmatpush1.msra.mxu0 %v1119
    %1178 = vmatprep.subr.mxu0 0.0
    %1179 = vmatpush2.msra.mxu0 0.0
    %1180 = vmatprep.subr.mxu0 0.0
    %1181 = vmatpush2.msra.mxu0 0.0
    %1182 = vmatprep.subr.mxu0 0.0
    %1183 = vmatpush2.msra.mxu0 0.0
    %1184 = vmatprep.subr.mxu0 0.0
    %1185 = vmatpush2.msra.mxu0 0.0
    %1186 = vmatprep.subr.mxu0 0.0
    %1187 = vmatpush2.msra.mxu0 0.0
    %1188 = vmatprep.subr.mxu0 0.0
    %1189 = vmatpush2.msra.mxu0 0.0
    %1190 = vmatprep.subr.mxu0 0.0
    %1191 = vmatpush2.msra.mxu0 0.0
    %1192 = vmatprep.subr.mxu0 0.0
    %1193 = vmatpush2.msra.mxu0 0.0
    %1194 = vmatprep.subr.mxu0 0.0
    %1195 = vmatpush2.msra.mxu0 0.0
    %1196 = vmatprep.subr.mxu0 0.0
    %1197 = vmatpush2.msra.mxu0 0.0
    %1198 = vmatprep.subr.mxu0 0.0
    %1199 = vmatpush2.msra.mxu0 0.0
    %1200 = vmatprep.subr.mxu0 0.0
    %1201 = vmatpush2.msra.mxu0 0.0
    %1202 = vmatprep.subr.mxu0 0.0
    %1203 = vmatpush2.msra.mxu0 0.0
    %1204 = vmatprep.subr.mxu0 0.0
    %1205 = vmatpush2.msra.mxu0 0.0
    %1206 = vmatprep.subr.mxu0 0.0
    %1207 = vmatpush2.msra.mxu0 0.0
    %1208 = vmatprep.subr.mxu0 0.0
    %1209 = vmatpush2.msra.mxu0 0.0
    %1210 = vmatprep.mubr.f32.mxu0 0.0
    %1211 = vmatmul.mubr.f32.gmra.mxu0 %v1144
    %v1212 = vpop.f32.mrf.mxu0
    %v1213 = vadd.f32 0.0, %v1212
    %v1214 = vpop.f32.mrf.mxu0
    %v1215 = vadd.f32 0.0, %v1214
    %1216 = vdwg.mxu0
    %1217 = vmatprep.subr.mxu0 0.0
    %1218 = vmatpush1.msra.mxu0 0.0
    %1219 = vmatprep.subr.mxu0 0.0
    %1220 = vmatpush1.msra.mxu0 0.0
    %1221 = vmatprep.subr.mxu0 0.0
    %1222 = vmatpush1.msra.mxu0 0.0
    %1223 = vmatprep.subr.mxu0 0.0
    %1224 = vmatpush1.msra.mxu0 0.0
    %1225 = vmatprep.subr.mxu0 0.0
    %1226 = vmatpush1.msra.mxu0 0.0
    %1227 = vmatprep.subr.mxu0 0.0
    %1228 = vmatpush1.msra.mxu0 0.0
    %1229 = vmatprep.subr.mxu0 0.0
    %1230 = vmatpush1.msra.mxu0 0.0
    %1231 = vmatprep.subr.mxu0 0.0
    %1232 = vmatpush1.msra.mxu0 0.0
    %1233 = vmatprep.subr.mxu0 0.0
    %1234 = vmatpush1.msra.mxu0 %v1142
    %1235 = vmatprep.subr.mxu0 0.0
    %1236 = vmatpush1.msra.mxu0 %v1139
    %1237 = vmatprep.subr.mxu0 0.0
    %1238 = vmatpush1.msra.mxu0 %v1136
    %1239 = vmatprep.subr.mxu0 0.0
    %1240 = vmatpush1.msra.mxu0 %v1133
    %1241 = vmatprep.subr.mxu0 0.0
    %1242 = vmatpush1.msra.mxu0 %v1130
    %1243 = vmatprep.subr.mxu0 0.0
    %1244 = vmatpush1.msra.mxu0 %v1127
    %1245 = vmatprep.subr.mxu0 0.0
    %1246 = vmatpush1.msra.mxu0 %v1124
    %1247 = vmatprep.subr.mxu0 0.0
    %1248 = vmatpush1.msra.mxu0 %v1121
    %1249 = vmatprep.subr.mxu0 0.0
    %1250 = vmatpush2.msra.mxu0 0.0
    %1251 = vmatprep.subr.mxu0 0.0
    %1252 = vmatpush2.msra.mxu0 0.0
    %1253 = vmatprep.subr.mxu0 0.0
    %1254 = vmatpush2.msra.mxu0 0.0
    %1255 = vmatprep.subr.mxu0 0.0
    %1256 = vmatpush2.msra.mxu0 0.0
    %1257 = vmatprep.subr.mxu0 0.0
    %1258 = vmatpush2.msra.mxu0 0.0
    %1259 = vmatprep.subr.mxu0 0.0
    %1260 = vmatpush2.msra.mxu0 0.0
    %1261 = vmatprep.subr.mxu0 0.0
    %1262 = vmatpush2.msra.mxu0 0.0
    %1263 = vmatprep.subr.mxu0 0.0
    %1264 = vmatpush2.msra.mxu0 0.0
    %1265 = vmatprep.subr.mxu0 0.0
    %1266 = vmatpush2.msra.mxu0 0.0
    %1267 = vmatprep.subr.mxu0 0.0
    %1268 = vmatpush2.msra.mxu0 0.0
    %1269 = vmatprep.subr.mxu0 0.0
    %1270 = vmatpush2.msra.mxu0 0.0
    %1271 = vmatprep.subr.mxu0 0.0
    %1272 = vmatpush2.msra.mxu0 0.0
    %1273 = vmatprep.subr.mxu0 0.0
    %1274 = vmatpush2.msra.mxu0 0.0
    %1275 = vmatprep.subr.mxu0 0.0
    %1276 = vmatpush2.msra.mxu0 0.0
    %1277 = vmatprep.subr.mxu0 0.0
    %1278 = vmatpush2.msra.mxu0 0.0
    %1279 = vmatprep.subr.mxu0 0.0
    %1280 = vmatpush2.msra.mxu0 0.0
    %1281 = vmatprep.mubr.f32.mxu0 0.0
    %1282 = vmatmul.mubr.f32.gmra.mxu0 %v1144
    %v1283 = vpop.f32.mrf.mxu0
    %v1284 = vadd.f32 0.0, %v1283
    %v1285 = vpop.f32.mrf.mxu0
    %1286 = vdwg.mxu0
    %v1287 = vadd.f32 %v1116, %v1213
    %v1288 = vxor.u32 %v1287, 2147483648
    %v1289 = vmul.f32 %v1288, 1.442695
    %v1290 = vpow.pop %v1289
    %v1291 = vadd.f32 %v1290, 1.0
    %v1292 = vrcp.pop %v1291
    %v1293 = vmul.f32 1.0, %v1292
    %v1294 = vadd.f32 %v1117, %v1215
    %v1295 = vxor.u32 %v1294, 2147483648
    %v1296 = vmul.f32 %v1295, 1.442695
    %v1297 = vpow.pop %v1296
    %v1298 = vadd.f32 %v1297, 1.0
    %v1299 = vrcp.pop %v1298
    %v1300 = vmul.f32 1.0, %v1299
    %v1301 = vadd.f32 %v1284, %v527
    %v1302 = vmul.f32 %v1293, %v1301
    %v1303 = vadd.f32 %v1118, %v1302
    %v1304 = vtanh.pop %v1303
    %v1305 = vsub.f32 1.0, %v1300
    %v1306 = vmul.f32 %v1305, %v1304
    %v1307 = vmul.f32 %v1300, %v1113
    %v1308 = vadd.f32 %v1306, %v1307
    %1309 = vst.msk [vmem:[#allocation4 + $0x18] sm:$0xff] %vm64, %v1308
    %1310 = vst.msk [vmem:[#allocation4 + $0x20] sm:$0xff] %vm724, %v1308
    %v1311 = vld [vmem:[#allocation3 + $0x60] sm:$0xff]
    %v1312 = vld [vmem:[#allocation3 + $0x68] sm:$0xff]
    %v1313 = vld [vmem:[#allocation3 + $0x70] sm:$0xff]
    %v1314 = vld [vmem:[#allocation10] sm:$0xff]
    %v1315 = vld [vmem:[#allocation10 + $0x8] sm:$0xff]
    %v1316 = vld [vmem:[#allocation10 + $0x10] sm:$0xff]
    %v1317 = vld [vmem:[#allocation10 + $0x18] sm:$0xff]
    %v1318 = vld [vmem:[#allocation10 + $0x20] sm:$0xff]
    %v1319 = vld [vmem:[#allocation10 + $0x28] sm:$0xff]
    %v1320 = vld [vmem:[#allocation10 + $0x30] sm:$0xff]
    %v1321 = vld [vmem:[#allocation10 + $0x38] sm:$0xff]
    %v1322 = vld [vmem:[#allocation10 + $0x40] sm:$0xff]
    %v1323 = vld [vmem:[#allocation10 + $0x48] sm:$0xff]
    %v1324 = vld [vmem:[#allocation10 + $0x50] sm:$0xff]
    %v1325 = vld [vmem:[#allocation10 + $0x58] sm:$0xff]
    %v1326 = vld [vmem:[#allocation10 + $0x60] sm:$0xff]
    %v1327 = vld [vmem:[#allocation10 + $0x68] sm:$0xff]
    %v1328 = vld [vmem:[#allocation10 + $0x70] sm:$0xff]
    %v1329 = vld [vmem:[#allocation10 + $0x78] sm:$0xff]
    %v1330 = vld [vmem:[#allocation10 + $0x80] sm:$0xff]
    %v1331 = vld [vmem:[#allocation10 + $0x88] sm:$0xff]
    %v1332 = vld [vmem:[#allocation10 + $0x90] sm:$0xff]
    %v1333 = vld [vmem:[#allocation10 + $0x98] sm:$0xff]
    %v1334 = vld [vmem:[#allocation10 + $0xa0] sm:$0xff]
    %v1335 = vld [vmem:[#allocation10 + $0xa8] sm:$0xff]
    %v1336 = vld [vmem:[#allocation10 + $0xb0] sm:$0xff]
    %v1337 = vld [vmem:[#allocation10 + $0xb8] sm:$0xff]
    %v1339 = vsel %vm556, %v1308, 0
    %1341 = vmatprep.subr.mxu0 0.0
    %1342 = vmatpush1.msra.mxu0 0.0
    %1343 = vmatprep.subr.mxu0 0.0
    %1344 = vmatpush1.msra.mxu0 0.0
    %1345 = vmatprep.subr.mxu0 0.0
    %1346 = vmatpush1.msra.mxu0 0.0
    %1347 = vmatprep.subr.mxu0 0.0
    %1348 = vmatpush1.msra.mxu0 0.0
    %1349 = vmatprep.subr.mxu0 0.0
    %1350 = vmatpush1.msra.mxu0 0.0
    %1351 = vmatprep.subr.mxu0 0.0
    %1352 = vmatpush1.msra.mxu0 0.0
    %1353 = vmatprep.subr.mxu0 0.0
    %1354 = vmatpush1.msra.mxu0 0.0
    %1355 = vmatprep.subr.mxu0 0.0
    %1356 = vmatpush1.msra.mxu0 0.0
    %1357 = vmatprep.subr.mxu0 %v1336
    %1358 = vmatpush1.msra.mxu0 %v1335
    %1359 = vmatprep.subr.mxu0 %v1333
    %1360 = vmatpush1.msra.mxu0 %v1332
    %1361 = vmatprep.subr.mxu0 %v1330
    %1362 = vmatpush1.msra.mxu0 %v1329
    %1363 = vmatprep.subr.mxu0 %v1327
    %1364 = vmatpush1.msra.mxu0 %v1326
    %1365 = vmatprep.subr.mxu0 %v1324
    %1366 = vmatpush1.msra.mxu0 %v1323
    %1367 = vmatprep.subr.mxu0 %v1321
    %1368 = vmatpush1.msra.mxu0 %v1320
    %1369 = vmatprep.subr.mxu0 %v1318
    %1370 = vmatpush1.msra.mxu0 %v1317
    %1371 = vmatprep.subr.mxu0 %v1315
    %1372 = vmatpush1.msra.mxu0 %v1314
    %1373 = vmatprep.subr.mxu0 0.0
    %1374 = vmatpush2.msra.mxu0 0.0
    %1375 = vmatprep.subr.mxu0 0.0
    %1376 = vmatpush2.msra.mxu0 0.0
    %1377 = vmatprep.subr.mxu0 0.0
    %1378 = vmatpush2.msra.mxu0 0.0
    %1379 = vmatprep.subr.mxu0 0.0
    %1380 = vmatpush2.msra.mxu0 0.0
    %1381 = vmatprep.subr.mxu0 0.0
    %1382 = vmatpush2.msra.mxu0 0.0
    %1383 = vmatprep.subr.mxu0 0.0
    %1384 = vmatpush2.msra.mxu0 0.0
    %1385 = vmatprep.subr.mxu0 0.0
    %1386 = vmatpush2.msra.mxu0 0.0
    %1387 = vmatprep.subr.mxu0 0.0
    %1388 = vmatpush2.msra.mxu0 0.0
    %1389 = vmatprep.subr.mxu0 0.0
    %1390 = vmatpush2.msra.mxu0 0.0
    %1391 = vmatprep.subr.mxu0 0.0
    %1392 = vmatpush2.msra.mxu0 0.0
    %1393 = vmatprep.subr.mxu0 0.0
    %1394 = vmatpush2.msra.mxu0 0.0
    %1395 = vmatprep.subr.mxu0 0.0
    %1396 = vmatpush2.msra.mxu0 0.0
    %1397 = vmatprep.subr.mxu0 0.0
    %1398 = vmatpush2.msra.mxu0 0.0
    %1399 = vmatprep.subr.mxu0 0.0
    %1400 = vmatpush2.msra.mxu0 0.0
    %1401 = vmatprep.subr.mxu0 0.0
    %1402 = vmatpush2.msra.mxu0 0.0
    %1403 = vmatprep.subr.mxu0 0.0
    %1404 = vmatpush2.msra.mxu0 0.0
    %1405 = vmatprep.mubr.f32.mxu0 0.0
    %1406 = vmatmul.mubr.f32.gmra.mxu0 %v1339
    %v1407 = vpop.f32.mrf.mxu0
    %v1408 = vadd.f32 0.0, %v1407
    %v1409 = vpop.f32.mrf.mxu0
    %v1410 = vadd.f32 0.0, %v1409
    %1411 = vdwg.mxu0
    %1412 = vmatprep.subr.mxu0 0.0
    %1413 = vmatpush1.msra.mxu0 0.0
    %1414 = vmatprep.subr.mxu0 0.0
    %1415 = vmatpush1.msra.mxu0 0.0
    %1416 = vmatprep.subr.mxu0 0.0
    %1417 = vmatpush1.msra.mxu0 0.0
    %1418 = vmatprep.subr.mxu0 0.0
    %1419 = vmatpush1.msra.mxu0 0.0
    %1420 = vmatprep.subr.mxu0 0.0
    %1421 = vmatpush1.msra.mxu0 0.0
    %1422 = vmatprep.subr.mxu0 0.0
    %1423 = vmatpush1.msra.mxu0 0.0
    %1424 = vmatprep.subr.mxu0 0.0
    %1425 = vmatpush1.msra.mxu0 0.0
    %1426 = vmatprep.subr.mxu0 0.0
    %1427 = vmatpush1.msra.mxu0 0.0
    %1428 = vmatprep.subr.mxu0 0.0
    %1429 = vmatpush1.msra.mxu0 %v1337
    %1430 = vmatprep.subr.mxu0 0.0
    %1431 = vmatpush1.msra.mxu0 %v1334
    %1432 = vmatprep.subr.mxu0 0.0
    %1433 = vmatpush1.msra.mxu0 %v1331
    %1434 = vmatprep.subr.mxu0 0.0
    %1435 = vmatpush1.msra.mxu0 %v1328
    %1436 = vmatprep.subr.mxu0 0.0
    %1437 = vmatpush1.msra.mxu0 %v1325
    %1438 = vmatprep.subr.mxu0 0.0
    %1439 = vmatpush1.msra.mxu0 %v1322
    %1440 = vmatprep.subr.mxu0 0.0
    %1441 = vmatpush1.msra.mxu0 %v1319
    %1442 = vmatprep.subr.mxu0 0.0
    %1443 = vmatpush1.msra.mxu0 %v1316
    %1444 = vmatprep.subr.mxu0 0.0
    %1445 = vmatpush2.msra.mxu0 0.0
    %1446 = vmatprep.subr.mxu0 0.0
    %1447 = vmatpush2.msra.mxu0 0.0
    %1448 = vmatprep.subr.mxu0 0.0
    %1449 = vmatpush2.msra.mxu0 0.0
    %1450 = vmatprep.subr.mxu0 0.0
    %1451 = vmatpush2.msra.mxu0 0.0
    %1452 = vmatprep.subr.mxu0 0.0
    %1453 = vmatpush2.msra.mxu0 0.0
    %1454 = vmatprep.subr.mxu0 0.0
    %1455 = vmatpush2.msra.mxu0 0.0
    %1456 = vmatprep.subr.mxu0 0.0
    %1457 = vmatpush2.msra.mxu0 0.0
    %1458 = vmatprep.subr.mxu0 0.0
    %1459 = vmatpush2.msra.mxu0 0.0
    %1460 = vmatprep.subr.mxu0 0.0
    %1461 = vmatpush2.msra.mxu0 0.0
    %1462 = vmatprep.subr.mxu0 0.0
    %1463 = vmatpush2.msra.mxu0 0.0
    %1464 = vmatprep.subr.mxu0 0.0
    %1465 = vmatpush2.msra.mxu0 0.0
    %1466 = vmatprep.subr.mxu0 0.0
    %1467 = vmatpush2.msra.mxu0 0.0
    %1468 = vmatprep.subr.mxu0 0.0
    %1469 = vmatpush2.msra.mxu0 0.0
    %1470 = vmatprep.subr.mxu0 0.0
    %1471 = vmatpush2.msra.mxu0 0.0
    %1472 = vmatprep.subr.mxu0 0.0
    %1473 = vmatpush2.msra.mxu0 0.0
    %1474 = vmatprep.subr.mxu0 0.0
    %1475 = vmatpush2.msra.mxu0 0.0
    %1476 = vmatprep.mubr.f32.mxu0 0.0
    %1477 = vmatmul.mubr.f32.gmra.mxu0 %v1339
    %v1478 = vpop.f32.mrf.mxu0
    %v1479 = vadd.f32 0.0, %v1478
    %v1480 = vpop.f32.mrf.mxu0
    %1481 = vdwg.mxu0
    %v1482 = vadd.f32 %v1311, %v1408
    %v1483 = vxor.u32 %v1482, 2147483648
    %v1484 = vmul.f32 %v1483, 1.442695
    %v1485 = vpow.pop %v1484
    %v1486 = vadd.f32 %v1485, 1.0
    %v1487 = vrcp.pop %v1486
    %v1488 = vmul.f32 1.0, %v1487
    %v1489 = vadd.f32 %v1312, %v1410
    %v1490 = vxor.u32 %v1489, 2147483648
    %v1491 = vmul.f32 %v1490, 1.442695
    %v1492 = vpow.pop %v1491
    %v1493 = vadd.f32 %v1492, 1.0
    %v1494 = vrcp.pop %v1493
    %v1495 = vmul.f32 1.0, %v1494
    %v1496 = vadd.f32 %v1479, %v527
    %v1497 = vmul.f32 %v1488, %v1496
    %v1498 = vadd.f32 %v1313, %v1497
    %v1499 = vtanh.pop %v1498
    %v1500 = vsub.f32 1.0, %v1495
    %v1501 = vmul.f32 %v1500, %v1499
    %v1502 = vmul.f32 %v1495, %v1308
    %v1503 = vadd.f32 %v1501, %v1502
    %1504 = vst.msk [vmem:[#allocation4 + $0x20] sm:$0xff] %vm64, %v1503
    %1505 = vst.msk [vmem:[#allocation4 + $0x18] sm:$0xff] %vm724, %v1503
    %v1506 = vld [vmem:[#allocation3 + $0x78] sm:$0xff]
    %v1507 = vld [vmem:[#allocation3 + $0x80] sm:$0xff]
    %v1508 = vld [vmem:[#allocation3 + $0x88] sm:$0xff]
    %v1509 = vld [vmem:[#allocation10] sm:$0xff]
    %v1510 = vld [vmem:[#allocation10 + $0x8] sm:$0xff]
    %v1511 = vld [vmem:[#allocation10 + $0x10] sm:$0xff]
    %v1512 = vld [vmem:[#allocation10 + $0x18] sm:$0xff]
    %v1513 = vld [vmem:[#allocation10 + $0x20] sm:$0xff]
    %v1514 = vld [vmem:[#allocation10 + $0x28] sm:$0xff]
    %v1515 = vld [vmem:[#allocation10 + $0x30] sm:$0xff]
    %v1516 = vld [vmem:[#allocation10 + $0x38] sm:$0xff]
    %v1517 = vld [vmem:[#allocation10 + $0x40] sm:$0xff]
    %v1518 = vld [vmem:[#allocation10 + $0x48] sm:$0xff]
    %v1519 = vld [vmem:[#allocation10 + $0x50] sm:$0xff]
    %v1520 = vld [vmem:[#allocation10 + $0x58] sm:$0xff]
    %v1521 = vld [vmem:[#allocation10 + $0x60] sm:$0xff]
    %v1522 = vld [vmem:[#allocation10 + $0x68] sm:$0xff]
    %v1523 = vld [vmem:[#allocation10 + $0x70] sm:$0xff]
    %v1524 = vld [vmem:[#allocation10 + $0x78] sm:$0xff]
    %v1525 = vld [vmem:[#allocation10 + $0x80] sm:$0xff]
    %v1526 = vld [vmem:[#allocation10 + $0x88] sm:$0xff]
    %v1527 = vld [vmem:[#allocation10 + $0x90] sm:$0xff]
    %v1528 = vld [vmem:[#allocation10 + $0x98] sm:$0xff]
    %v1529 = vld [vmem:[#allocation10 + $0xa0] sm:$0xff]
    %v1530 = vld [vmem:[#allocation10 + $0xa8] sm:$0xff]
    %v1531 = vld [vmem:[#allocation10 + $0xb0] sm:$0xff]
    %v1532 = vld [vmem:[#allocation10 + $0xb8] sm:$0xff]
    %v1534 = vsel %vm556, %v1503, 0
    %1536 = vmatprep.subr.mxu0 0.0
    %1537 = vmatpush1.msra.mxu0 0.0
    %1538 = vmatprep.subr.mxu0 0.0
    %1539 = vmatpush1.msra.mxu0 0.0
    %1540 = vmatprep.subr.mxu0 0.0
    %1541 = vmatpush1.msra.mxu0 0.0
    %1542 = vmatprep.subr.mxu0 0.0
    %1543 = vmatpush1.msra.mxu0 0.0
    %1544 = vmatprep.subr.mxu0 0.0
    %1545 = vmatpush1.msra.mxu0 0.0
    %1546 = vmatprep.subr.mxu0 0.0
    %1547 = vmatpush1.msra.mxu0 0.0
    %1548 = vmatprep.subr.mxu0 0.0
    %1549 = vmatpush1.msra.mxu0 0.0
    %1550 = vmatprep.subr.mxu0 0.0
    %1551 = vmatpush1.msra.mxu0 0.0
    %1552 = vmatprep.subr.mxu0 %v1531
    %1553 = vmatpush1.msra.mxu0 %v1530
    %1554 = vmatprep.subr.mxu0 %v1528
    %1555 = vmatpush1.msra.mxu0 %v1527
    %1556 = vmatprep.subr.mxu0 %v1525
    %1557 = vmatpush1.msra.mxu0 %v1524
    %1558 = vmatprep.subr.mxu0 %v1522
    %1559 = vmatpush1.msra.mxu0 %v1521
    %1560 = vmatprep.subr.mxu0 %v1519
    %1561 = vmatpush1.msra.mxu0 %v1518
    %1562 = vmatprep.subr.mxu0 %v1516
    %1563 = vmatpush1.msra.mxu0 %v1515
    %1564 = vmatprep.subr.mxu0 %v1513
    %1565 = vmatpush1.msra.mxu0 %v1512
    %1566 = vmatprep.subr.mxu0 %v1510
    %1567 = vmatpush1.msra.mxu0 %v1509
    %1568 = vmatprep.subr.mxu0 0.0
    %1569 = vmatpush2.msra.mxu0 0.0
    %1570 = vmatprep.subr.mxu0 0.0
    %1571 = vmatpush2.msra.mxu0 0.0
    %1572 = vmatprep.subr.mxu0 0.0
    %1573 = vmatpush2.msra.mxu0 0.0
    %1574 = vmatprep.subr.mxu0 0.0
    %1575 = vmatpush2.msra.mxu0 0.0
    %1576 = vmatprep.subr.mxu0 0.0
    %1577 = vmatpush2.msra.mxu0 0.0
    %1578 = vmatprep.subr.mxu0 0.0
    %1579 = vmatpush2.msra.mxu0 0.0
    %1580 = vmatprep.subr.mxu0 0.0
    %1581 = vmatpush2.msra.mxu0 0.0
    %1582 = vmatprep.subr.mxu0 0.0
    %1583 = vmatpush2.msra.mxu0 0.0
    %1584 = vmatprep.subr.mxu0 0.0
    %1585 = vmatpush2.msra.mxu0 0.0
    %1586 = vmatprep.subr.mxu0 0.0
    %1587 = vmatpush2.msra.mxu0 0.0
    %1588 = vmatprep.subr.mxu0 0.0
    %1589 = vmatpush2.msra.mxu0 0.0
    %1590 = vmatprep.subr.mxu0 0.0
    %1591 = vmatpush2.msra.mxu0 0.0
    %1592 = vmatprep.subr.mxu0 0.0
    %1593 = vmatpush2.msra.mxu0 0.0
    %1594 = vmatprep.subr.mxu0 0.0
    %1595 = vmatpush2.msra.mxu0 0.0
    %1596 = vmatprep.subr.mxu0 0.0
    %1597 = vmatpush2.msra.mxu0 0.0
    %1598 = vmatprep.subr.mxu0 0.0
    %1599 = vmatpush2.msra.mxu0 0.0
    %1600 = vmatprep.mubr.f32.mxu0 0.0
    %1601 = vmatmul.mubr.f32.gmra.mxu0 %v1534
    %v1602 = vpop.f32.mrf.mxu0
    %v1603 = vadd.f32 0.0, %v1602
    %v1604 = vpop.f32.mrf.mxu0
    %v1605 = vadd.f32 0.0, %v1604
    %1606 = vdwg.mxu0
    %1607 = vmatprep.subr.mxu0 0.0
    %1608 = vmatpush1.msra.mxu0 0.0
    %1609 = vmatprep.subr.mxu0 0.0
    %1610 = vmatpush1.msra.mxu0 0.0
    %1611 = vmatprep.subr.mxu0 0.0
    %1612 = vmatpush1.msra.mxu0 0.0
    %1613 = vmatprep.subr.mxu0 0.0
    %1614 = vmatpush1.msra.mxu0 0.0
    %1615 = vmatprep.subr.mxu0 0.0
    %1616 = vmatpush1.msra.mxu0 0.0
    %1617 = vmatprep.subr.mxu0 0.0
    %1618 = vmatpush1.msra.mxu0 0.0
    %1619 = vmatprep.subr.mxu0 0.0
    %1620 = vmatpush1.msra.mxu0 0.0
    %1621 = vmatprep.subr.mxu0 0.0
    %1622 = vmatpush1.msra.mxu0 0.0
    %1623 = vmatprep.subr.mxu0 0.0
    %1624 = vmatpush1.msra.mxu0 %v1532
    %1625 = vmatprep.subr.mxu0 0.0
    %1626 = vmatpush1.msra.mxu0 %v1529
    %1627 = vmatprep.subr.mxu0 0.0
    %1628 = vmatpush1.msra.mxu0 %v1526
    %1629 = vmatprep.subr.mxu0 0.0
    %1630 = vmatpush1.msra.mxu0 %v1523
    %1631 = vmatprep.subr.mxu0 0.0
    %1632 = vmatpush1.msra.mxu0 %v1520
    %1633 = vmatprep.subr.mxu0 0.0
    %1634 = vmatpush1.msra.mxu0 %v1517
    %1635 = vmatprep.subr.mxu0 0.0
    %1636 = vmatpush1.msra.mxu0 %v1514
    %1637 = vmatprep.subr.mxu0 0.0
    %1638 = vmatpush1.msra.mxu0 %v1511
    %1639 = vmatprep.subr.mxu0 0.0
    %1640 = vmatpush2.msra.mxu0 0.0
    %1641 = vmatprep.subr.mxu0 0.0
    %1642 = vmatpush2.msra.mxu0 0.0
    %1643 = vmatprep.subr.mxu0 0.0
    %1644 = vmatpush2.msra.mxu0 0.0
    %1645 = vmatprep.subr.mxu0 0.0
    %1646 = vmatpush2.msra.mxu0 0.0
    %1647 = vmatprep.subr.mxu0 0.0
    %1648 = vmatpush2.msra.mxu0 0.0
    %1649 = vmatprep.subr.mxu0 0.0
    %1650 = vmatpush2.msra.mxu0 0.0
    %1651 = vmatprep.subr.mxu0 0.0
    %1652 = vmatpush2.msra.mxu0 0.0
    %1653 = vmatprep.subr.mxu0 0.0
    %1654 = vmatpush2.msra.mxu0 0.0
    %1655 = vmatprep.subr.mxu0 0.0
    %1656 = vmatpush2.msra.mxu0 0.0
    %1657 = vmatprep.subr.mxu0 0.0
    %1658 = vmatpush2.msra.mxu0 0.0
    %1659 = vmatprep.subr.mxu0 0.0
    %1660 = vmatpush2.msra.mxu0 0.0
    %1661 = vmatprep.subr.mxu0 0.0
    %1662 = vmatpush2.msra.mxu0 0.0
    %1663 = vmatprep.subr.mxu0 0.0
    %1664 = vmatpush2.msra.mxu0 0.0
    %1665 = vmatprep.subr.mxu0 0.0
    %1666 = vmatpush2.msra.mxu0 0.0
    %1667 = vmatprep.subr.mxu0 0.0
    %1668 = vmatpush2.msra.mxu0 0.0
    %1669 = vmatprep.subr.mxu0 0.0
    %1670 = vmatpush2.msra.mxu0 0.0
    %1671 = vmatprep.mubr.f32.mxu0 0.0
    %1672 = vmatmul.mubr.f32.gmra.mxu0 %v1534
    %v1673 = vpop.f32.mrf.mxu0
    %v1674 = vadd.f32 0.0, %v1673
    %v1675 = vpop.f32.mrf.mxu0
    %1676 = vdwg.mxu0
    %v1677 = vadd.f32 %v1506, %v1603
    %v1678 = vxor.u32 %v1677, 2147483648
    %v1679 = vmul.f32 %v1678, 1.442695
    %v1680 = vpow.pop %v1679
    %v1681 = vadd.f32 %v1680, 1.0
    %v1682 = vrcp.pop %v1681
    %v1683 = vmul.f32 1.0, %v1682
    %v1684 = vadd.f32 %v1507, %v1605
    %v1685 = vxor.u32 %v1684, 2147483648
    %v1686 = vmul.f32 %v1685, 1.442695
    %v1687 = vpow.pop %v1686
    %v1688 = vadd.f32 %v1687, 1.0
    %v1689 = vrcp.pop %v1688
    %v1690 = vmul.f32 1.0, %v1689
    %v1691 = vadd.f32 %v1674, %v527
    %v1692 = vmul.f32 %v1683, %v1691
    %v1693 = vadd.f32 %v1508, %v1692
    %v1694 = vtanh.pop %v1693
    %v1695 = vsub.f32 1.0, %v1690
    %v1696 = vmul.f32 %v1695, %v1694
    %v1697 = vmul.f32 %v1690, %v1503
    %v1698 = vadd.f32 %v1696, %v1697
    %1699 = vst.msk [vmem:[#allocation4 + $0x28] sm:$0xff] %vm64, %v1698
    %1700 = vst.msk [vmem:[#allocation4 + $0x10] sm:$0xff] %vm724, %v1698
    %v1701 = vld [vmem:[#allocation3 + $0x90] sm:$0xff]
    %v1702 = vld [vmem:[#allocation3 + $0x98] sm:$0xff]
    %v1703 = vld [vmem:[#allocation3 + $0xa0] sm:$0xff]
    %v1704 = vld [vmem:[#allocation10] sm:$0xff]
    %v1705 = vld [vmem:[#allocation10 + $0x8] sm:$0xff]
    %v1706 = vld [vmem:[#allocation10 + $0x10] sm:$0xff]
    %v1707 = vld [vmem:[#allocation10 + $0x18] sm:$0xff]
    %v1708 = vld [vmem:[#allocation10 + $0x20] sm:$0xff]
    %v1709 = vld [vmem:[#allocation10 + $0x28] sm:$0xff]
    %v1710 = vld [vmem:[#allocation10 + $0x30] sm:$0xff]
    %v1711 = vld [vmem:[#allocation10 + $0x38] sm:$0xff]
    %v1712 = vld [vmem:[#allocation10 + $0x40] sm:$0xff]
    %v1713 = vld [vmem:[#allocation10 + $0x48] sm:$0xff]
    %v1714 = vld [vmem:[#allocation10 + $0x50] sm:$0xff]
    %v1715 = vld [vmem:[#allocation10 + $0x58] sm:$0xff]
    %v1716 = vld [vmem:[#allocation10 + $0x60] sm:$0xff]
    %v1717 = vld [vmem:[#allocation10 + $0x68] sm:$0xff]
    %v1718 = vld [vmem:[#allocation10 + $0x70] sm:$0xff]
    %v1719 = vld [vmem:[#allocation10 + $0x78] sm:$0xff]
    %v1720 = vld [vmem:[#allocation10 + $0x80] sm:$0xff]
    %v1721 = vld [vmem:[#allocation10 + $0x88] sm:$0xff]
    %v1722 = vld [vmem:[#allocation10 + $0x90] sm:$0xff]
    %v1723 = vld [vmem:[#allocation10 + $0x98] sm:$0xff]
    %v1724 = vld [vmem:[#allocation10 + $0xa0] sm:$0xff]
    %v1725 = vld [vmem:[#allocation10 + $0xa8] sm:$0xff]
    %v1726 = vld [vmem:[#allocation10 + $0xb0] sm:$0xff]
    %v1727 = vld [vmem:[#allocation10 + $0xb8] sm:$0xff]
    %v1729 = vsel %vm556, %v1698, 0
    %1731 = vmatprep.subr.mxu0 0.0
    %1732 = vmatpush1.msra.mxu0 0.0
    %1733 = vmatprep.subr.mxu0 0.0
    %1734 = vmatpush1.msra.mxu0 0.0
    %1735 = vmatprep.subr.mxu0 0.0
    %1736 = vmatpush1.msra.mxu0 0.0
    %1737 = vmatprep.subr.mxu0 0.0
    %1738 = vmatpush1.msra.mxu0 0.0
    %1739 = vmatprep.subr.mxu0 0.0
    %1740 = vmatpush1.msra.mxu0 0.0
    %1741 = vmatprep.subr.mxu0 0.0
    %1742 = vmatpush1.msra.mxu0 0.0
    %1743 = vmatprep.subr.mxu0 0.0
    %1744 = vmatpush1.msra.mxu0 0.0
    %1745 = vmatprep.subr.mxu0 0.0
    %1746 = vmatpush1.msra.mxu0 0.0
    %1747 = vmatprep.subr.mxu0 %v1726
    %1748 = vmatpush1.msra.mxu0 %v1725
    %1749 = vmatprep.subr.mxu0 %v1723
    %1750 = vmatpush1.msra.mxu0 %v1722
    %1751 = vmatprep.subr.mxu0 %v1720
    %1752 = vmatpush1.msra.mxu0 %v1719
    %1753 = vmatprep.subr.mxu0 %v1717
    %1754 = vmatpush1.msra.mxu0 %v1716
    %1755 = vmatprep.subr.mxu0 %v1714
    %1756 = vmatpush1.msra.mxu0 %v1713
    %1757 = vmatprep.subr.mxu0 %v1711
    %1758 = vmatpush1.msra.mxu0 %v1710
    %1759 = vmatprep.subr.mxu0 %v1708
    %1760 = vmatpush1.msra.mxu0 %v1707
    %1761 = vmatprep.subr.mxu0 %v1705
    %1762 = vmatpush1.msra.mxu0 %v1704
    %1763 = vmatprep.subr.mxu0 0.0
    %1764 = vmatpush2.msra.mxu0 0.0
    %1765 = vmatprep.subr.mxu0 0.0
    %1766 = vmatpush2.msra.mxu0 0.0
    %1767 = vmatprep.subr.mxu0 0.0
    %1768 = vmatpush2.msra.mxu0 0.0
    %1769 = vmatprep.subr.mxu0 0.0
    %1770 = vmatpush2.msra.mxu0 0.0
    %1771 = vmatprep.subr.mxu0 0.0
    %1772 = vmatpush2.msra.mxu0 0.0
    %1773 = vmatprep.subr.mxu0 0.0
    %1774 = vmatpush2.msra.mxu0 0.0
    %1775 = vmatprep.subr.mxu0 0.0
    %1776 = vmatpush2.msra.mxu0 0.0
    %1777 = vmatprep.subr.mxu0 0.0
    %1778 = vmatpush2.msra.mxu0 0.0
    %1779 = vmatprep.subr.mxu0 0.0
    %1780 = vmatpush2.msra.mxu0 0.0
    %1781 = vmatprep.subr.mxu0 0.0
    %1782 = vmatpush2.msra.mxu0 0.0
    %1783 = vmatprep.subr.mxu0 0.0
    %1784 = vmatpush2.msra.mxu0 0.0
    %1785 = vmatprep.subr.mxu0 0.0
    %1786 = vmatpush2.msra.mxu0 0.0
    %1787 = vmatprep.subr.mxu0 0.0
    %1788 = vmatpush2.msra.mxu0 0.0
    %1789 = vmatprep.subr.mxu0 0.0
    %1790 = vmatpush2.msra.mxu0 0.0
    %1791 = vmatprep.subr.mxu0 0.0
    %1792 = vmatpush2.msra.mxu0 0.0
    %1793 = vmatprep.subr.mxu0 0.0
    %1794 = vmatpush2.msra.mxu0 0.0
    %1795 = vmatprep.mubr.f32.mxu0 0.0
    %1796 = vmatmul.mubr.f32.gmra.mxu0 %v1729
    %v1797 = vpop.f32.mrf.mxu0
    %v1798 = vadd.f32 0.0, %v1797
    %v1799 = vpop.f32.mrf.mxu0
    %v1800 = vadd.f32 0.0, %v1799
    %1801 = vdwg.mxu0
    %1802 = vmatprep.subr.mxu0 0.0
    %1803 = vmatpush1.msra.mxu0 0.0
    %1804 = vmatprep.subr.mxu0 0.0
    %1805 = vmatpush1.msra.mxu0 0.0
    %1806 = vmatprep.subr.mxu0 0.0
    %1807 = vmatpush1.msra.mxu0 0.0
    %1808 = vmatprep.subr.mxu0 0.0
    %1809 = vmatpush1.msra.mxu0 0.0
    %1810 = vmatprep.subr.mxu0 0.0
    %1811 = vmatpush1.msra.mxu0 0.0
    %1812 = vmatprep.subr.mxu0 0.0
    %1813 = vmatpush1.msra.mxu0 0.0
    %1814 = vmatprep.subr.mxu0 0.0
    %1815 = vmatpush1.msra.mxu0 0.0
    %1816 = vmatprep.subr.mxu0 0.0
    %1817 = vmatpush1.msra.mxu0 0.0
    %1818 = vmatprep.subr.mxu0 0.0
    %1819 = vmatpush1.msra.mxu0 %v1727
    %1820 = vmatprep.subr.mxu0 0.0
    %1821 = vmatpush1.msra.mxu0 %v1724
    %1822 = vmatprep.subr.mxu0 0.0
    %1823 = vmatpush1.msra.mxu0 %v1721
    %1824 = vmatprep.subr.mxu0 0.0
    %1825 = vmatpush1.msra.mxu0 %v1718
    %1826 = vmatprep.subr.mxu0 0.0
    %1827 = vmatpush1.msra.mxu0 %v1715
    %1828 = vmatprep.subr.mxu0 0.0
    %1829 = vmatpush1.msra.mxu0 %v1712
    %1830 = vmatprep.subr.mxu0 0.0
    %1831 = vmatpush1.msra.mxu0 %v1709
    %1832 = vmatprep.subr.mxu0 0.0
    %1833 = vmatpush1.msra.mxu0 %v1706
    %1834 = vmatprep.subr.mxu0 0.0
    %1835 = vmatpush2.msra.mxu0 0.0
    %1836 = vmatprep.subr.mxu0 0.0
    %1837 = vmatpush2.msra.mxu0 0.0
    %1838 = vmatprep.subr.mxu0 0.0
    %1839 = vmatpush2.msra.mxu0 0.0
    %1840 = vmatprep.subr.mxu0 0.0
    %1841 = vmatpush2.msra.mxu0 0.0
    %1842 = vmatprep.subr.mxu0 0.0
    %1843 = vmatpush2.msra.mxu0 0.0
    %1844 = vmatprep.subr.mxu0 0.0
    %1845 = vmatpush2.msra.mxu0 0.0
    %1846 = vmatprep.subr.mxu0 0.0
    %1847 = vmatpush2.msra.mxu0 0.0
    %1848 = vmatprep.subr.mxu0 0.0
    %1849 = vmatpush2.msra.mxu0 0.0
    %1850 = vmatprep.subr.mxu0 0.0
    %1851 = vmatpush2.msra.mxu0 0.0
    %1852 = vmatprep.subr.mxu0 0.0
    %1853 = vmatpush2.msra.mxu0 0.0
    %1854 = vmatprep.subr.mxu0 0.0
    %1855 = vmatpush2.msra.mxu0 0.0
    %1856 = vmatprep.subr.mxu0 0.0
    %1857 = vmatpush2.msra.mxu0 0.0
    %1858 = vmatprep.subr.mxu0 0.0
    %1859 = vmatpush2.msra.mxu0 0.0
    %1860 = vmatprep.subr.mxu0 0.0
    %1861 = vmatpush2.msra.mxu0 0.0
    %1862 = vmatprep.subr.mxu0 0.0
    %1863 = vmatpush2.msra.mxu0 0.0
    %1864 = vmatprep.subr.mxu0 0.0
    %1865 = vmatpush2.msra.mxu0 0.0
    %1866 = vmatprep.mubr.f32.mxu0 0.0
    %1867 = vmatmul.mubr.f32.gmra.mxu0 %v1729
    %v1868 = vpop.f32.mrf.mxu0
    %v1869 = vadd.f32 0.0, %v1868
    %v1870 = vpop.f32.mrf.mxu0
    %1871 = vdwg.mxu0
    %v1872 = vadd.f32 %v1701, %v1798
    %v1873 = vxor.u32 %v1872, 2147483648
    %v1874 = vmul.f32 %v1873, 1.442695
    %v1875 = vpow.pop %v1874
    %v1876 = vadd.f32 %v1875, 1.0
    %v1877 = vrcp.pop %v1876
    %v1878 = vmul.f32 1.0, %v1877
    %v1879 = vadd.f32 %v1702, %v1800
    %v1880 = vxor.u32 %v1879, 2147483648
    %v1881 = vmul.f32 %v1880, 1.442695
    %v1882 = vpow.pop %v1881
    %v1883 = vadd.f32 %v1882, 1.0
    %v1884 = vrcp.pop %v1883
    %v1885 = vmul.f32 1.0, %v1884
    %v1886 = vadd.f32 %v1869, %v527
    %v1887 = vmul.f32 %v1878, %v1886
    %v1888 = vadd.f32 %v1703, %v1887
    %v1889 = vtanh.pop %v1888
    %v1890 = vsub.f32 1.0, %v1885
    %v1891 = vmul.f32 %v1890, %v1889
    %v1892 = vmul.f32 %v1885, %v1698
    %v1893 = vadd.f32 %v1891, %v1892
    %1894 = vst.msk [vmem:[#allocation4 + $0x30] sm:$0xff] %vm64, %v1893
    %1895 = vst.msk [vmem:[#allocation4 + $0x8] sm:$0xff] %vm724, %v1893
    %v1896 = vld [vmem:[#allocation3 + $0xa8] sm:$0xff]
    %v1897 = vld [vmem:[#allocation3 + $0xb0] sm:$0xff]
    %v1898 = vld [vmem:[#allocation3 + $0xb8] sm:$0xff]
    %v1899 = vld [vmem:[#allocation10] sm:$0xff]
    %v1900 = vld [vmem:[#allocation10 + $0x8] sm:$0xff]
    %v1901 = vld [vmem:[#allocation10 + $0x10] sm:$0xff]
    %v1902 = vld [vmem:[#allocation10 + $0x18] sm:$0xff]
    %v1903 = vld [vmem:[#allocation10 + $0x20] sm:$0xff]
    %v1904 = vld [vmem:[#allocation10 + $0x28] sm:$0xff]
    %v1905 = vld [vmem:[#allocation10 + $0x30] sm:$0xff]
    %v1906 = vld [vmem:[#allocation10 + $0x38] sm:$0xff]
    %v1907 = vld [vmem:[#allocation10 + $0x40] sm:$0xff]
    %v1908 = vld [vmem:[#allocation10 + $0x48] sm:$0xff]
    %v1909 = vld [vmem:[#allocation10 + $0x50] sm:$0xff]
    %v1910 = vld [vmem:[#allocation10 + $0x58] sm:$0xff]
    %v1911 = vld [vmem:[#allocation10 + $0x60] sm:$0xff]
    %v1912 = vld [vmem:[#allocation10 + $0x68] sm:$0xff]
    %v1913 = vld [vmem:[#allocation10 + $0x70] sm:$0xff]
    %v1914 = vld [vmem:[#allocation10 + $0x78] sm:$0xff]
    %v1915 = vld [vmem:[#allocation10 + $0x80] sm:$0xff]
    %v1916 = vld [vmem:[#allocation10 + $0x88] sm:$0xff]
    %v1917 = vld [vmem:[#allocation10 + $0x90] sm:$0xff]
    %v1918 = vld [vmem:[#allocation10 + $0x98] sm:$0xff]
    %v1919 = vld [vmem:[#allocation10 + $0xa0] sm:$0xff]
    %v1920 = vld [vmem:[#allocation10 + $0xa8] sm:$0xff]
    %v1921 = vld [vmem:[#allocation10 + $0xb0] sm:$0xff]
    %v1922 = vld [vmem:[#allocation10 + $0xb8] sm:$0xff]
    %v1924 = vsel %vm556, %v1893, 0
    %1926 = vmatprep.subr.mxu0 0.0
    %1927 = vmatpush1.msra.mxu0 0.0
    %1928 = vmatprep.subr.mxu0 0.0
    %1929 = vmatpush1.msra.mxu0 0.0
    %1930 = vmatprep.subr.mxu0 0.0
    %1931 = vmatpush1.msra.mxu0 0.0
    %1932 = vmatprep.subr.mxu0 0.0
    %1933 = vmatpush1.msra.mxu0 0.0
    %1934 = vmatprep.subr.mxu0 0.0
    %1935 = vmatpush1.msra.mxu0 0.0
    %1936 = vmatprep.subr.mxu0 0.0
    %1937 = vmatpush1.msra.mxu0 0.0
    %1938 = vmatprep.subr.mxu0 0.0
    %1939 = vmatpush1.msra.mxu0 0.0
    %1940 = vmatprep.subr.mxu0 0.0
    %1941 = vmatpush1.msra.mxu0 0.0
    %1942 = vmatprep.subr.mxu0 %v1921
    %1943 = vmatpush1.msra.mxu0 %v1920
    %1944 = vmatprep.subr.mxu0 %v1918
    %1945 = vmatpush1.msra.mxu0 %v1917
    %1946 = vmatprep.subr.mxu0 %v1915
    %1947 = vmatpush1.msra.mxu0 %v1914
    %1948 = vmatprep.subr.mxu0 %v1912
    %1949 = vmatpush1.msra.mxu0 %v1911
    %1950 = vmatprep.subr.mxu0 %v1909
    %1951 = vmatpush1.msra.mxu0 %v1908
    %1952 = vmatprep.subr.mxu0 %v1906
    %1953 = vmatpush1.msra.mxu0 %v1905
    %1954 = vmatprep.subr.mxu0 %v1903
    %1955 = vmatpush1.msra.mxu0 %v1902
    %1956 = vmatprep.subr.mxu0 %v1900
    %1957 = vmatpush1.msra.mxu0 %v1899
    %1958 = vmatprep.subr.mxu0 0.0
    %1959 = vmatpush2.msra.mxu0 0.0
    %1960 = vmatprep.subr.mxu0 0.0
    %1961 = vmatpush2.msra.mxu0 0.0
    %1962 = vmatprep.subr.mxu0 0.0
    %1963 = vmatpush2.msra.mxu0 0.0
    %1964 = vmatprep.subr.mxu0 0.0
    %1965 = vmatpush2.msra.mxu0 0.0
    %1966 = vmatprep.subr.mxu0 0.0
    %1967 = vmatpush2.msra.mxu0 0.0
    %1968 = vmatprep.subr.mxu0 0.0
    %1969 = vmatpush2.msra.mxu0 0.0
    %1970 = vmatprep.subr.mxu0 0.0
    %1971 = vmatpush2.msra.mxu0 0.0
    %1972 = vmatprep.subr.mxu0 0.0
    %1973 = vmatpush2.msra.mxu0 0.0
    %1974 = vmatprep.subr.mxu0 0.0
    %1975 = vmatpush2.msra.mxu0 0.0
    %1976 = vmatprep.subr.mxu0 0.0
    %1977 = vmatpush2.msra.mxu0 0.0
    %1978 = vmatprep.subr.mxu0 0.0
    %1979 = vmatpush2.msra.mxu0 0.0
    %1980 = vmatprep.subr.mxu0 0.0
    %1981 = vmatpush2.msra.mxu0 0.0
    %1982 = vmatprep.subr.mxu0 0.0
    %1983 = vmatpush2.msra.mxu0 0.0
    %1984 = vmatprep.subr.mxu0 0.0
    %1985 = vmatpush2.msra.mxu0 0.0
    %1986 = vmatprep.subr.mxu0 0.0
    %1987 = vmatpush2.msra.mxu0 0.0
    %1988 = vmatprep.subr.mxu0 0.0
    %1989 = vmatpush2.msra.mxu0 0.0
    %1990 = vmatprep.mubr.f32.mxu0 0.0
    %1991 = vmatmul.mubr.f32.gmra.mxu0 %v1924
    %v1992 = vpop.f32.mrf.mxu0
    %v1993 = vadd.f32 0.0, %v1992
    %v1994 = vpop.f32.mrf.mxu0
    %v1995 = vadd.f32 0.0, %v1994
    %1996 = vdwg.mxu0
    %1997 = vmatprep.subr.mxu0 0.0
    %1998 = vmatpush1.msra.mxu0 0.0
    %1999 = vmatprep.subr.mxu0 0.0
    %2000 = vmatpush1.msra.mxu0 0.0
    %2001 = vmatprep.subr.mxu0 0.0
    %2002 = vmatpush1.msra.mxu0 0.0
    %2003 = vmatprep.subr.mxu0 0.0
    %2004 = vmatpush1.msra.mxu0 0.0
    %2005 = vmatprep.subr.mxu0 0.0
    %2006 = vmatpush1.msra.mxu0 0.0
    %2007 = vmatprep.subr.mxu0 0.0
    %2008 = vmatpush1.msra.mxu0 0.0
    %2009 = vmatprep.subr.mxu0 0.0
    %2010 = vmatpush1.msra.mxu0 0.0
    %2011 = vmatprep.subr.mxu0 0.0
    %2012 = vmatpush1.msra.mxu0 0.0
    %2013 = vmatprep.subr.mxu0 0.0
    %2014 = vmatpush1.msra.mxu0 %v1922
    %2015 = vmatprep.subr.mxu0 0.0
    %2016 = vmatpush1.msra.mxu0 %v1919
    %2017 = vmatprep.subr.mxu0 0.0
    %2018 = vmatpush1.msra.mxu0 %v1916
    %2019 = vmatprep.subr.mxu0 0.0
    %2020 = vmatpush1.msra.mxu0 %v1913
    %2021 = vmatprep.subr.mxu0 0.0
    %2022 = vmatpush1.msra.mxu0 %v1910
    %2023 = vmatprep.subr.mxu0 0.0
    %2024 = vmatpush1.msra.mxu0 %v1907
    %2025 = vmatprep.subr.mxu0 0.0
    %2026 = vmatpush1.msra.mxu0 %v1904
    %2027 = vmatprep.subr.mxu0 0.0
    %2028 = vmatpush1.msra.mxu0 %v1901
    %2029 = vmatprep.subr.mxu0 0.0
    %2030 = vmatpush2.msra.mxu0 0.0
    %2031 = vmatprep.subr.mxu0 0.0
    %2032 = vmatpush2.msra.mxu0 0.0
    %2033 = vmatprep.subr.mxu0 0.0
    %2034 = vmatpush2.msra.mxu0 0.0
    %2035 = vmatprep.subr.mxu0 0.0
    %2036 = vmatpush2.msra.mxu0 0.0
    %2037 = vmatprep.subr.mxu0 0.0
    %2038 = vmatpush2.msra.mxu0 0.0
    %2039 = vmatprep.subr.mxu0 0.0
    %2040 = vmatpush2.msra.mxu0 0.0
    %2041 = vmatprep.subr.mxu0 0.0
    %2042 = vmatpush2.msra.mxu0 0.0
    %2043 = vmatprep.subr.mxu0 0.0
    %2044 = vmatpush2.msra.mxu0 0.0
    %2045 = vmatprep.subr.mxu0 0.0
    %2046 = vmatpush2.msra.mxu0 0.0
    %2047 = vmatprep.subr.mxu0 0.0
    %2048 = vmatpush2.msra.mxu0 0.0
    %2049 = vmatprep.subr.mxu0 0.0
    %2050 = vmatpush2.msra.mxu0 0.0
    %2051 = vmatprep.subr.mxu0 0.0
    %2052 = vmatpush2.msra.mxu0 0.0
    %2053 = vmatprep.subr.mxu0 0.0
    %2054 = vmatpush2.msra.mxu0 0.0
    %2055 = vmatprep.subr.mxu0 0.0
    %2056 = vmatpush2.msra.mxu0 0.0
    %2057 = vmatprep.subr.mxu0 0.0
    %2058 = vmatpush2.msra.mxu0 0.0
    %2059 = vmatprep.subr.mxu0 0.0
    %2060 = vmatpush2.msra.mxu0 0.0
    %2061 = vmatprep.mubr.f32.mxu0 0.0
    %2062 = vmatmul.mubr.f32.gmra.mxu0 %v1924
    %v2063 = vpop.f32.mrf.mxu0
    %v2064 = vadd.f32 0.0, %v2063
    %v2065 = vpop.f32.mrf.mxu0
    %2066 = vdwg.mxu0
    %v2067 = vadd.f32 %v1896, %v1993
    %v2068 = vxor.u32 %v2067, 2147483648
    %v2069 = vmul.f32 %v2068, 1.442695
    %v2070 = vpow.pop %v2069
    %v2071 = vadd.f32 %v2070, 1.0
    %v2072 = vrcp.pop %v2071
    %v2073 = vmul.f32 1.0, %v2072
    %v2074 = vadd.f32 %v1897, %v1995
    %v2075 = vxor.u32 %v2074, 2147483648
    %v2076 = vmul.f32 %v2075, 1.442695
    %v2077 = vpow.pop %v2076
    %v2078 = vadd.f32 %v2077, 1.0
    %v2079 = vrcp.pop %v2078
    %v2080 = vmul.f32 1.0, %v2079
    %v2081 = vadd.f32 %v2064, %v527
    %v2082 = vmul.f32 %v2073, %v2081
    %v2083 = vadd.f32 %v1898, %v2082
    %v2084 = vtanh.pop %v2083
    %v2085 = vsub.f32 1.0, %v2080
    %v2086 = vmul.f32 %v2085, %v2084
    %v2087 = vmul.f32 %v2080, %v1893
    %v2088 = vadd.f32 %v2086, %v2087
    %2089 = vst.msk [vmem:[#allocation4 + $0x38] sm:$0xff] %vm64, %v2088
    %2090 = vst.msk [vmem:[#allocation4] sm:$0xff] %vm724, %v2088
    %v2091 = vld [vmem:[#allocation4] sm:$0xff]
    %v2092 = vld [vmem:[#allocation4 + $0x8] sm:$0xff]
    %v2093 = vld [vmem:[#allocation4 + $0x10] sm:$0xff]
    %v2094 = vld [vmem:[#allocation4 + $0x18] sm:$0xff]
    %v2095 = vld [vmem:[#allocation4 + $0x20] sm:$0xff]
    %v2096 = vld [vmem:[#allocation4 + $0x28] sm:$0xff]
    %v2097 = vld [vmem:[#allocation4 + $0x30] sm:$0xff]
    %v2098 = vld [vmem:[#allocation4 + $0x38] sm:$0xff]
    %v2099 = vld [vmem:[%s6] sm:$0xff]
    %v2100 = vld [vmem:[%s6 + $0x8] sm:$0xff]
    %v2101 = vld [vmem:[%s6 + $0x10] sm:$0xff]
    %v2102 = vld [vmem:[%s6 + $0x18] sm:$0xff]
    %v2103 = vld [vmem:[%s6 + $0x20] sm:$0xff]
    %v2104 = vld [vmem:[%s6 + $0x28] sm:$0xff]
    %v2105 = vld [vmem:[%s6 + $0x30] sm:$0xff]
    %v2106 = vld [vmem:[%s6 + $0x38] sm:$0xff]
    %s2107 = sld [smem:[#allocation5]]
    %v2108 = vstv %s2107
    %v2110 = vsel %vm556, %v2091, 0
    %v2113 = vsel %vm556, %v2092, 0
    %v2116 = vsel %vm556, %v2093, 0
    %v2119 = vsel %vm556, %v2094, 0
    %v2122 = vsel %vm556, %v2095, 0
    %v2125 = vsel %vm556, %v2096, 0
    %v2128 = vsel %vm556, %v2097, 0
    %v2131 = vsel %vm556, %v2098, 0
    %2133 = vmatprep.subr.mxu0 0.0
    %2134 = vmatpush1.msra.mxu0 0.0
    %2135 = vmatprep.subr.mxu0 0.0
    %2136 = vmatpush1.msra.mxu0 0.0
    %2137 = vmatprep.subr.mxu0 0.0
    %2138 = vmatpush1.msra.mxu0 0.0
    %2139 = vmatprep.subr.mxu0 0.0
    %2140 = vmatpush1.msra.mxu0 0.0
    %2141 = vmatprep.subr.mxu0 0.0
    %2142 = vmatpush1.msra.mxu0 0.0
    %2143 = vmatprep.subr.mxu0 0.0
    %2144 = vmatpush1.msra.mxu0 0.0
    %2145 = vmatprep.subr.mxu0 0.0
    %2146 = vmatpush1.msra.mxu0 0.0
    %2147 = vmatprep.subr.mxu0 0.0
    %2148 = vmatpush1.msra.mxu0 0.0
    %2149 = vmatprep.subr.mxu0 0.0
    %2150 = vmatpush1.msra.mxu0 %v2106
    %2151 = vmatprep.subr.mxu0 0.0
    %2152 = vmatpush1.msra.mxu0 %v2105
    %2153 = vmatprep.subr.mxu0 0.0
    %2154 = vmatpush1.msra.mxu0 %v2104
    %2155 = vmatprep.subr.mxu0 0.0
    %2156 = vmatpush1.msra.mxu0 %v2103
    %2157 = vmatprep.subr.mxu0 0.0
    %2158 = vmatpush1.msra.mxu0 %v2102
    %2159 = vmatprep.subr.mxu0 0.0
    %2160 = vmatpush1.msra.mxu0 %v2101
    %2161 = vmatprep.subr.mxu0 0.0
    %2162 = vmatpush1.msra.mxu0 %v2100
    %2163 = vmatprep.subr.mxu0 0.0
    %2164 = vmatpush1.msra.mxu0 %v2099
    %2165 = vmatprep.subr.mxu0 0.0
    %2166 = vmatpush2.msra.mxu0 0.0
    %2167 = vmatprep.subr.mxu0 0.0
    %2168 = vmatpush2.msra.mxu0 0.0
    %2169 = vmatprep.subr.mxu0 0.0
    %2170 = vmatpush2.msra.mxu0 0.0
    %2171 = vmatprep.subr.mxu0 0.0
    %2172 = vmatpush2.msra.mxu0 0.0
    %2173 = vmatprep.subr.mxu0 0.0
    %2174 = vmatpush2.msra.mxu0 0.0
    %2175 = vmatprep.subr.mxu0 0.0
    %2176 = vmatpush2.msra.mxu0 0.0
    %2177 = vmatprep.subr.mxu0 0.0
    %2178 = vmatpush2.msra.mxu0 0.0
    %2179 = vmatprep.subr.mxu0 0.0
    %2180 = vmatpush2.msra.mxu0 0.0
    %2181 = vmatprep.subr.mxu0 0.0
    %2182 = vmatpush2.msra.mxu0 0.0
    %2183 = vmatprep.subr.mxu0 0.0
    %2184 = vmatpush2.msra.mxu0 0.0
    %2185 = vmatprep.subr.mxu0 0.0
    %2186 = vmatpush2.msra.mxu0 0.0
    %2187 = vmatprep.subr.mxu0 0.0
    %2188 = vmatpush2.msra.mxu0 0.0
    %2189 = vmatprep.subr.mxu0 0.0
    %2190 = vmatpush2.msra.mxu0 0.0
    %2191 = vmatprep.subr.mxu0 0.0
    %2192 = vmatpush2.msra.mxu0 0.0
    %2193 = vmatprep.subr.mxu0 0.0
    %2194 = vmatpush2.msra.mxu0 0.0
    %2195 = vmatprep.subr.mxu0 0.0
    %2196 = vmatpush2.msra.mxu0 0.0
    %2197 = vmatprep.mubr.f32.mxu0 0.0
    %2198 = vmatmul.mubr.f32.gmra.mxu0 %v2110
    %v2199 = vpop.f32.mrf.mxu0
    %v2200 = vadd.f32 %v2108, %v2199
    %v2201 = vpop.f32.mrf.mxu0
    %2202 = vmatprep.mubr.f32.mxu0 0.0
    %2203 = vmatmul.mubr.f32.gmra.mxu0 %v2113
    %v2204 = vpop.f32.mrf.mxu0
    %v2205 = vadd.f32 %v2108, %v2204
    %v2206 = vpop.f32.mrf.mxu0
    %2207 = vmatprep.mubr.f32.mxu0 0.0
    %2208 = vmatmul.mubr.f32.gmra.mxu0 %v2116
    %v2209 = vpop.f32.mrf.mxu0
    %v2210 = vadd.f32 %v2108, %v2209
    %v2211 = vpop.f32.mrf.mxu0
    %2212 = vmatprep.mubr.f32.mxu0 0.0
    %2213 = vmatmul.mubr.f32.gmra.mxu0 %v2119
    %v2214 = vpop.f32.mrf.mxu0
    %v2215 = vadd.f32 %v2108, %v2214
    %v2216 = vpop.f32.mrf.mxu0
    %2217 = vmatprep.mubr.f32.mxu0 0.0
    %2218 = vmatmul.mubr.f32.gmra.mxu0 %v2122
    %v2219 = vpop.f32.mrf.mxu0
    %v2220 = vadd.f32 %v2108, %v2219
    %v2221 = vpop.f32.mrf.mxu0
    %2222 = vmatprep.mubr.f32.mxu0 0.0
    %2223 = vmatmul.mubr.f32.gmra.mxu0 %v2125
    %v2224 = vpop.f32.mrf.mxu0
    %v2225 = vadd.f32 %v2108, %v2224
    %v2226 = vpop.f32.mrf.mxu0
    %2227 = vmatprep.mubr.f32.mxu0 0.0
    %2228 = vmatmul.mubr.f32.gmra.mxu0 %v2128
    %v2229 = vpop.f32.mrf.mxu0
    %v2230 = vadd.f32 %v2108, %v2229
    %v2231 = vpop.f32.mrf.mxu0
    %2232 = vmatprep.mubr.f32.mxu0 0.0
    %2233 = vmatmul.mubr.f32.gmra.mxu0 %v2131
    %v2234 = vpop.f32.mrf.mxu0
    %v2235 = vadd.f32 %v2108, %v2234
    %v2236 = vpop.f32.mrf.mxu0
    %2237 = vdwg.mxu0
    %v2238 = vtanh.pop %v2200
    %v2239 = vtanh.pop %v2205
    %v2240 = vtanh.pop %v2210
    %v2241 = vtanh.pop %v2215
    %v2242 = vtanh.pop %v2220
    %v2243 = vtanh.pop %v2225
    %v2244 = vtanh.pop %v2230
    %v2245 = vtanh.pop %v2235
    %v2246 = vmax.f32 %v2238, %v2239
    %v2247 = vmax.f32 %v2246, %v2240
    %v2248 = vmax.f32 %v2247, %v2241
    %v2249 = vmax.f32 %v2248, %v2242
    %v2250 = vmax.f32 %v2249, %v2243
    %v2251 = vmax.f32 %v2250, %v2244
    %v2252 = vmax.f32 %v2251, %v2245
    %v2253 = vsub.f32 %v2238, %v2252
    %v2254 = vmul.f32 %v2253, 1.442695
    %v2255 = vpow.pop %v2254
    %v2256 = vsub.f32 %v2239, %v2252
    %v2257 = vmul.f32 %v2256, 1.442695
    %v2258 = vpow.pop %v2257
    %v2259 = vsub.f32 %v2240, %v2252
    %v2260 = vmul.f32 %v2259, 1.442695
    %v2261 = vpow.pop %v2260
    %v2262 = vsub.f32 %v2241, %v2252
    %v2263 = vmul.f32 %v2262, 1.442695
    %v2264 = vpow.pop %v2263
    %v2265 = vsub.f32 %v2242, %v2252
    %v2266 = vmul.f32 %v2265, 1.442695
    %v2267 = vpow.pop %v2266
    %v2268 = vsub.f32 %v2243, %v2252
    %v2269 = vmul.f32 %v2268, 1.442695
    %v2270 = vpow.pop %v2269
    %v2271 = vsub.f32 %v2244, %v2252
    %v2272 = vmul.f32 %v2271, 1.442695
    %v2273 = vpow.pop %v2272
    %v2274 = vsub.f32 %v2245, %v2252
    %v2275 = vmul.f32 %v2274, 1.442695
    %v2276 = vpow.pop %v2275
    %v2277 = vadd.f32 %v2255, %v2258
    %v2278 = vadd.f32 %v2277, %v2261
    %v2279 = vadd.f32 %v2278, %v2264
    %v2280 = vadd.f32 %v2279, %v2267
    %v2281 = vadd.f32 %v2280, %v2270
    %v2282 = vadd.f32 %v2281, %v2273
    %v2283 = vadd.f32 %v2282, %v2276
    %v2284 = vrcp.pop %v2283
    %2286 = vset.pattern.permute.xlu0 0
    %2287 = vperm.xlu0 %2286, %v2255
    %v2288 = vpop.permute.xlu0 %2287
    %v2290 = vmul.f32 %v2288, %v2091
    %2292 = vset.pattern.permute.xlu0 0
    %2293 = vperm.xlu0 %2292, %v2258
    %v2294 = vpop.permute.xlu0 %2293
    %v2296 = vmul.f32 %v2294, %v2092
    %v2297 = vadd.f32 %v2290, %v2296
    %2299 = vset.pattern.permute.xlu0 0
    %2300 = vperm.xlu0 %2299, %v2261
    %v2301 = vpop.permute.xlu0 %2300
    %v2303 = vmul.f32 %v2301, %v2093
    %v2304 = vadd.f32 %v2297, %v2303
    %2306 = vset.pattern.permute.xlu0 0
    %2307 = vperm.xlu0 %2306, %v2264
    %v2308 = vpop.permute.xlu0 %2307
    %v2310 = vmul.f32 %v2308, %v2094
    %v2311 = vadd.f32 %v2304, %v2310
    %2313 = vset.pattern.permute.xlu0 0
    %2314 = vperm.xlu0 %2313, %v2267
    %v2315 = vpop.permute.xlu0 %2314
    %v2317 = vmul.f32 %v2315, %v2095
    %v2318 = vadd.f32 %v2311, %v2317
    %2320 = vset.pattern.permute.xlu0 0
    %2321 = vperm.xlu0 %2320, %v2270
    %v2322 = vpop.permute.xlu0 %2321
    %v2324 = vmul.f32 %v2322, %v2096
    %v2325 = vadd.f32 %v2318, %v2324
    %2327 = vset.pattern.permute.xlu0 0
    %2328 = vperm.xlu0 %2327, %v2273
    %v2329 = vpop.permute.xlu0 %2328
    %v2331 = vmul.f32 %v2329, %v2097
    %v2332 = vadd.f32 %v2325, %v2331
    %2334 = vset.pattern.permute.xlu0 0
    %2335 = vperm.xlu0 %2334, %v2276
    %v2336 = vpop.permute.xlu0 %2335
    %v2338 = vmul.f32 %v2336, %v2098
    %v2339 = vadd.f32 %v2332, %v2338
    %2341 = vset.pattern.permute.xlu0 0
    %2342 = vperm.xlu0 %2341, %v2284
    %v2343 = vpop.permute.xlu0 %2342
    %v2345 = vmul.f32 %v2339, %v2343
    %v2346 = vld [vmem:[%s8] sm:$0xff]
    %v2347 = vld [vmem:[%s8 + $0x8] sm:$0xff]
    %v2348 = vld [vmem:[%s8 + $0x10] sm:$0xff]
    %v2349 = vld [vmem:[%s8 + $0x18] sm:$0xff]
    %v2350 = vld [vmem:[%s8 + $0x20] sm:$0xff]
    %v2351 = vld [vmem:[%s8 + $0x28] sm:$0xff]
    %v2352 = vld [vmem:[%s8 + $0x30] sm:$0xff]
    %v2353 = vld [vmem:[%s8 + $0x38] sm:$0xff]
    %v2354 = vld [vmem:[%s9] sm:$0x1]
    %v2356 = vlaneseq
    %v2357 = vshrl.u32 %v2356, 7
    %v2358 = vsub.s32 0, %v2357
    %v2359 = vrot.slane %v2354, %v2358
    %v2362 = vsel %vm556, %v2345, 0
    %2364 = vmatprep.subr.mxu0 0.0
    %2365 = vmatpush1.msra.mxu0 0.0
    %2366 = vmatprep.subr.mxu0 0.0
    %2367 = vmatpush1.msra.mxu0 0.0
    %2368 = vmatprep.subr.mxu0 0.0
    %2369 = vmatpush1.msra.mxu0 0.0
    %2370 = vmatprep.subr.mxu0 0.0
    %2371 = vmatpush1.msra.mxu0 0.0
    %2372 = vmatprep.subr.mxu0 0.0
    %2373 = vmatpush1.msra.mxu0 0.0
    %2374 = vmatprep.subr.mxu0 0.0
    %2375 = vmatpush1.msra.mxu0 0.0
    %2376 = vmatprep.subr.mxu0 0.0
    %2377 = vmatpush1.msra.mxu0 0.0
    %2378 = vmatprep.subr.mxu0 0.0
    %2379 = vmatpush1.msra.mxu0 0.0
    %2380 = vmatprep.subr.mxu0 0.0
    %2381 = vmatpush1.msra.mxu0 %v2353
    %2382 = vmatprep.subr.mxu0 0.0
    %2383 = vmatpush1.msra.mxu0 %v2352
    %2384 = vmatprep.subr.mxu0 0.0
    %2385 = vmatpush1.msra.mxu0 %v2351
    %2386 = vmatprep.subr.mxu0 0.0
    %2387 = vmatpush1.msra.mxu0 %v2350
    %2388 = vmatprep.subr.mxu0 0.0
    %2389 = vmatpush1.msra.mxu0 %v2349
    %2390 = vmatprep.subr.mxu0 0.0
    %2391 = vmatpush1.msra.mxu0 %v2348
    %2392 = vmatprep.subr.mxu0 0.0
    %2393 = vmatpush1.msra.mxu0 %v2347
    %2394 = vmatprep.subr.mxu0 0.0
    %2395 = vmatpush1.msra.mxu0 %v2346
    %2396 = vmatprep.subr.mxu0 0.0
    %2397 = vmatpush2.msra.mxu0 0.0
    %2398 = vmatprep.subr.mxu0 0.0
    %2399 = vmatpush2.msra.mxu0 0.0
    %2400 = vmatprep.subr.mxu0 0.0
    %2401 = vmatpush2.msra.mxu0 0.0
    %2402 = vmatprep.subr.mxu0 0.0
    %2403 = vmatpush2.msra.mxu0 0.0
    %2404 = vmatprep.subr.mxu0 0.0
    %2405 = vmatpush2.msra.mxu0 0.0
    %2406 = vmatprep.subr.mxu0 0.0
    %2407 = vmatpush2.msra.mxu0 0.0
    %2408 = vmatprep.subr.mxu0 0.0
    %2409 = vmatpush2.msra.mxu0 0.0
    %2410 = vmatprep.subr.mxu0 0.0
    %2411 = vmatpush2.msra.mxu0 0.0
    %2412 = vmatprep.subr.mxu0 0.0
    %2413 = vmatpush2.msra.mxu0 0.0
    %2414 = vmatprep.subr.mxu0 0.0
    %2415 = vmatpush2.msra.mxu0 0.0
    %2416 = vmatprep.subr.mxu0 0.0
    %2417 = vmatpush2.msra.mxu0 0.0
    %2418 = vmatprep.subr.mxu0 0.0
    %2419 = vmatpush2.msra.mxu0 0.0
    %2420 = vmatprep.subr.mxu0 0.0
    %2421 = vmatpush2.msra.mxu0 0.0
    %2422 = vmatprep.subr.mxu0 0.0
    %2423 = vmatpush2.msra.mxu0 0.0
    %2424 = vmatprep.subr.mxu0 0.0
    %2425 = vmatpush2.msra.mxu0 0.0
    %2426 = vmatprep.subr.mxu0 0.0
    %2427 = vmatpush2.msra.mxu0 0.0
    %2428 = vmatprep.mubr.f32.mxu0 0.0
    %2429 = vmatmul.mubr.f32.gmra.mxu0 %v2362
    %v2430 = vpop.f32.mrf.mxu0
    %v2431 = vadd.f32 %v2359, %v2430
    %v2432 = vpop.f32.mrf.mxu0
    %2433 = vdwg.mxu0
    %vm2434 = vcmask 23552
    %v2435 = vsel %vm2434, %v2431, -inf
    %2436 = vmax.xlane.f32.xlu0 %v2435
    %v2437 = vpop.xlane.xlu0 %2436
    %v2438 = vsub.f32 %v2431, %v2437
    %v2439 = vmul.f32 %v2438, 1.442695
    %v2440 = vpow.pop %v2439
    %v2441 = vsel %vm2434, %v2440, 0.0
    %2442 = vadd.xlane.f32.xlu0 %v2441
    %v2443 = vpop.xlane.xlu0 %2442
    %v2444 = vrcp.pop %v2443
    %v2445 = vmul.f32 %v2440, %v2444
    %vm2446 = vcmask 17408
    %2447 = vst.msk [vmem:[#allocation11] sm:$0x3] %vm2446, %v2445
    // Predicated region
    $region50: #{tpu_custom_call.1} parent=1 // pred_check
      _
    $region51: #{tpu_custom_call.1} parent=1 // pred_check_branch
      %2449 = sbr.rel (0) target = $region53
    $region52: #{tpu_custom_call.1} parent=1 // pred_region
      %s2451 = ssub.s32 32, 32
      %2452 = vsyncadd [#allocation8], %s2451
      %s2454 = sshll.u32 [#allocation11], 4
      %s2455 = int_to_ptr.vmem [resolvable:$true] %s2454
      %2457 = dma.vmem_to_hbm [thread:$0]  %s2455, 32, %s10, [#allocation8]
    $region53: #{tpu_custom_call.1} parent=1 // pred_fallthru
      _
    // Predicated region
    $region54: #{tpu_custom_call.1} parent=1 // pred_check
      _
    $region55: #{tpu_custom_call.1} parent=1 // pred_check_branch
      %2459 = sbr.rel (0) target = $region57
    $region56: #{tpu_custom_call.1} parent=1 // pred_region
      %2460 = dma.done [#allocation8], 32
    $region57: #{tpu_custom_call.1} parent=1 // pred_fallthru
      _
    %2461 = vsyncpa [#allocation7], 1
    %2462 = vsyncpa [#allocation8], 1
    %2463 = vsyncpa [#allocation9], 1

</llo_original>
